<compile_context>
chip_gen: v5e
topology: v5e:2x2
jax: 0.10.0
libtpu: 0.0.40
codegen_flags: <defaults>
</compile_context>

<pallas_src>
import functools

import numpy as np
import jax
import jax.numpy as jnp
from jax import lax
from jax.experimental import pallas as pl
from jax.experimental.pallas import tpu as pltpu

_K = 3        # conv kernel size (all layers)
_PAD = 1      # padding (all layers)
_STRIDES = (2, 2, 1, 1)
_ACTS = ("none", "relu", "relu", "relu_clamp")


def _conv_out(size, stride):
    return (size + 2 * _PAD - _K) // stride + 1


# ---------------------------------------------------------------------------
# Fused kernel: 4 x (patch assembly + ONE matmul + bias + activation).
# ---------------------------------------------------------------------------
def _encoder_kernel(*refs, meta, acts):
    nl = len(meta)
    x_ref = refs[0]
    o_ref = refs[1 + 3 * nl]
    patch_refs = refs[2 + 3 * nl:]

    x = x_ref[...]                                        # (M_in0, Cin0) f32
    for l, lm in enumerate(meta):
        aux_ref, w_ref, b_ref = refs[1 + 3 * l: 4 + 3 * l]
        patch_ref = patch_refs[l]
        m_in, m_out = lm["m_in"], lm["m_out"]
        cin, cout = lm["cin"], lm["cout"]

        if lm["kind"] == "gather":
            # Stride-2 layer: ONE stacked one-hot gather matmul (tap-major
            # rows, bf16 operands, exact selection), then scatter the 9 row
            # blocks into the lane-stacked patch scratch.
            g = jnp.dot(aux_ref[...], x.astype(jnp.bfloat16),
                        preferred_element_type=jnp.float32)   # (9*M_out, Cin)
            for t in range(_K * _K):
                patch_ref[:, t * cin:(t + 1) * cin] = \
                    g[t * m_out:(t + 1) * m_out, :]
        else:
            # Stride-1 layer: each tap is a constant row offset -> XLU roll
            # along the row axis + precomputed boundary / zero-padding mask.
            for t, off in enumerate(lm["offs"]):
                shifted = x if off == 0 else pltpu.roll(x, (-off) % m_in, 0)
                patch_ref[:, t * cin:(t + 1) * cin] = shifted * aux_ref[t]

        # ONE weight matmul per layer: (M_out, 9*Cin) @ (9*Cin, Cout),
        # bf16 operands, f32 accumulation (MRB-friendly on v7x).
        acc = jnp.dot(patch_ref[...].astype(jnp.bfloat16), w_ref[...],
                      preferred_element_type=jnp.float32)
        acc = acc + b_ref[...]                              # (1, Cout) broadcast
        act = acts[l]
        if act == "relu":
            acc = jnp.maximum(acc, 0.0)
        elif act == "relu_clamp":
            acc = jnp.minimum(jnp.maximum(acc, 0.0), 1.0)
        x = acc                                             # stays in VMEM/vregs

    o_ref[...] = x


# ---------------------------------------------------------------------------
# One-time prep (vectorized numpy, hoisted out of the per-forward path).
# ---------------------------------------------------------------------------
def _make_sel_stacked(n, hin, win, hout, wout, stride):
    """Stacked one-hot gather matrix, tap-major rows: (9*M_out, M_in) bf16."""
    m_out, m_in = n * hout * wout, n * hin * win
    bb, ii, jj = np.meshgrid(np.arange(n), np.arange(hout), np.arange(wout),
                             indexing="ij")
    rows = (bb * hout * wout + ii * wout + jj).reshape(-1)
    sel = np.zeros((_K * _K, m_out, m_in), np.float32)
    for t in range(_K * _K):
        kh, kw = divmod(t, _K)
        hs = ii * stride + kh - _PAD
        ws = jj * stride + kw - _PAD
        valid = ((hs >= 0) & (hs < hin) & (ws >= 0) & (ws < win)).reshape(-1)
        src = (bb * hin * win + hs * win + ws).reshape(-1)
        sel[t, rows[valid], src[valid]] = 1.0
    return jnp.asarray(sel.reshape(_K * _K * m_out, m_in), dtype=jnp.bfloat16)


def _make_roll_aux(n, hout, wout):
    """Per-tap row offsets + boundary masks (9, M, 1) f32 for stride-1 layers."""
    m = n * hout * wout
    ii, jj = np.meshgrid(np.arange(hout), np.arange(wout), indexing="ij")
    offs, masks = [], []
    for t in range(_K * _K):
        kh, kw = divmod(t, _K)
        dh, dw = kh - _PAD, kw - _PAD
        offs.append(dh * wout + dw)
        valid = ((ii + dh >= 0) & (ii + dh < hout) &
                 (jj + dw >= 0) & (jj + dw < wout)).astype(np.float32)
        masks.append(np.broadcast_to(valid[None], (n, hout, wout)).reshape(m, 1))
    return tuple(int(o) for o in offs), jnp.asarray(np.stack(masks, axis=0))


def prepare_encoder(params, input_shape):
    """Pack weights to (9*Cin, Cout) bf16 and build gather/roll tables once."""
    n, _, h, w = input_shape
    arrays, meta = [], []
    hin, win = h, w
    for (weight, bias), stride in zip(params, _STRIDES):
        cout, cin, kh, kw = weight.shape
        assert (kh, kw) == (_K, _K)
        hout, wout = _conv_out(hin, stride), _conv_out(win, stride)
        m_in, m_out = n * hin * win, n * hout * wout
        # (Cout,Cin,3,3) -> (3,3,Cin,Cout) -> (9*Cin, Cout); row = tap*Cin + ci
        wflat = jnp.transpose(jnp.asarray(weight, jnp.float32),
                              (2, 3, 1, 0)).reshape(_K * _K * cin, cout)
        wflat = wflat.astype(jnp.bfloat16)
        b = jnp.asarray(bias, jnp.float32).reshape(1, cout)
        if stride == 2:
            aux = _make_sel_stacked(n, hin, win, hout, wout, stride)
            meta.append(dict(kind="gather", m_in=m_in, m_out=m_out,
                             cin=cin, cout=cout, offs=None))
        else:
            offs, aux = _make_roll_aux(n, hout, wout)
            meta.append(dict(kind="roll", m_in=m_in, m_out=m_out,
                             cin=cin, cout=cout, offs=offs))
        arrays.append((aux, wflat, b))
        hin, win = hout, wout
    out_geom = (n, hin, win, params[-1][0].shape[0])
    return tuple(arrays), tuple(meta), out_geom


# ---------------------------------------------------------------------------
# Forward (single pallas_call, whole-array blocks, grid=(1,)).
# ---------------------------------------------------------------------------
def _full_block_spec(arr):
    zeros = (0,) * arr.ndim
    return pl.BlockSpec(arr.shape, lambda i, _z=zeros: _z)


def _encoder_pallas(x2d, arrays, meta):
    inputs = [x2d]
    in_specs = [_full_block_spec(x2d)]
    scratch = []
    for (aux, wflat, b), lm in zip(arrays, meta):
        inputs += [aux, wflat, b]
        in_specs += [_full_block_spec(aux), _full_block_spec(wflat),
                     _full_block_spec(b)]
        scratch.append(pltpu.VMEM((lm["m_out"], _K * _K * lm["cin"]),
                                  jnp.float32))
    m_out, cout = meta[-1]["m_out"], meta[-1]["cout"]
    kernel = functools.partial(_encoder_kernel, meta=meta, acts=_ACTS)
    # NOTE: at realistic resolutions, add a grid axis over the output-row dim
    # marked "parallel" (2 TCs on v7x), set vmem_limit_bytes explicitly, and
    # present a lane-dense output; at this tiny size a single block per layer
    # is launch-latency optimal.
    return pl.pallas_call(
        kernel,
        out_shape=jax.ShapeDtypeStruct((m_out, cout), jnp.float32),
        grid=(1,),
        in_specs=in_specs,
        out_specs=pl.BlockSpec((m_out, cout), lambda i: (0, 0)),
        scratch_shapes=scratch,
        compiler_params=pltpu.CompilerParams(dimension_semantics=("arbitrary",)),
    )(*inputs)


def encoder_forward_prepared(x_nchw, arrays, meta, out_geom):
    n, c, h, w = x_nchw.shape
    # TODO(synk): the NCHW<->pixel-major layout plumbing stays as two tiny XLA
    # transposes at the boundary; fold into the kernel (or accept NHWC at the
    # API boundary) when scaling up.
    x2d = jnp.transpose(x_nchw, (0, 2, 3, 1)).reshape(n * h * w, c)
    out2d = _encoder_pallas(x2d.astype(jnp.float32), arrays, meta)
    n_, hout, wout, cout = out_geom
    out = out2d.reshape(n_, hout, wout, cout)
    return jnp.transpose(out, (0, 3, 1, 2))                 # NHWC -> NCHW


def encoder_forward(x_nchw, params):
    arrays, meta, out_geom = prepare_encoder(params, x_nchw.shape)
    return encoder_forward_prepared(x_nchw, arrays, meta, out_geom)


# ---------------------------------------------------------------------------
# Init (matches PyTorch Conv2d default init) + pure-XLA reference.
# ---------------------------------------------------------------------------
def init_params(key, in_channels=3):
    def conv_init(k, cout, cin, ksz):
        kw_, kb_ = jax.random.split(k)
        fan_in = cin * ksz * ksz
        bound = 1.0 / (fan_in ** 0.5)
        w = jax.random.uniform(kw_, (cout, cin, ksz, ksz), jnp.float32, -bound, bound)
        b = jax.random.uniform(kb_, (cout,), jnp.float32, -bound, bound)
        return w, b

    k1, k2, k3, k4 = jax.random.split(key, 4)
    return (
        conv_init(k1, 12, in_channels, 3),
        conv_init(k2, 16, 12, 3),
        conv_init(k3, 16, 16, 3),
        conv_init(k4, 3, 16, 3),
    )


def encoder_reference(x_nchw, params):
    x = x_nchw
    for (weight, bias), stride, act in zip(params, _STRIDES, _ACTS):
        x = lax.conv_general_dilated(
            x, weight, window_strides=(stride, stride),
            padding=((_PAD, _PAD), (_PAD, _PAD)),
            dimension_numbers=("NCHW", "OIHW", "NCHW"),
            precision=lax.Precision.HIGHEST)
        x = x + bias.reshape(1, -1, 1, 1)
        if act in ("relu", "relu_clamp"):
            x = jnp.maximum(x, 0.0)
    return jnp.clip(x, 0.0, 1.0)


if __name__ == "__main__":
    key = jax.random.PRNGKey(0)
    k_x, k_p = jax.random.split(key)
    x = jax.random.uniform(k_x, (2, 3, 16, 16), jnp.float32)   # NCHW, in_channels=3
    params = init_params(k_p, in_channels=3)

    arrays, meta, out_geom = prepare_encoder(params, x.shape)
    fwd = jax.jit(lambda xx: encoder_forward_prepared(xx, arrays, meta, out_geom))

    out = jax.block_until_ready(fwd(x))
    assert out.shape == (2, 3, 4, 4), out.shape                # 16 -> 8 -> 4 -> 4 -> 4
    assert bool(jnp.all(out >= 0.0)) and bool(jnp.all(out <= 1.0))

    ref = jax.block_until_ready(encoder_reference(x, params))
    max_err = float(jnp.max(jnp.abs(out - ref)))
    assert max_err < 2e-2, f"mismatch vs reference: max_err={max_err}"

    print("KERNEL_OK")
</pallas_src>

<mosaic_0001>
module attributes {stable_mosaic.version = 11 : i64} {
  func.func @_encoder_kernel(%arg0: i32, %arg1: memref<512x3xf32, #tpu.memory_space<vmem>>, %arg2: memref<1152x512xbf16, #tpu.memory_space<vmem>>, %arg3: memref<27x12xbf16, #tpu.memory_space<vmem>>, %arg4: memref<1x12xf32, #tpu.memory_space<vmem>>, %arg5: memref<288x128xbf16, #tpu.memory_space<vmem>>, %arg6: memref<108x16xbf16, #tpu.memory_space<vmem>>, %arg7: memref<1x16xf32, #tpu.memory_space<vmem>>, %arg8: memref<9x32x1xf32, #tpu.memory_space<vmem>>, %arg9: memref<144x16xbf16, #tpu.memory_space<vmem>>, %arg10: memref<1x16xf32, #tpu.memory_space<vmem>>, %arg11: memref<9x32x1xf32, #tpu.memory_space<vmem>>, %arg12: memref<144x3xbf16, #tpu.memory_space<vmem>>, %arg13: memref<1x3xf32, #tpu.memory_space<vmem>>, %arg14: memref<32x3xf32, #tpu.memory_space<vmem>>, %arg15: memref<128x27xf32, #tpu.memory_space<vmem>>, %arg16: memref<32x108xf32, #tpu.memory_space<vmem>>, %arg17: memref<32x144xf32, #tpu.memory_space<vmem>>, %arg18: memref<32x144xf32, #tpu.memory_space<vmem>>) attributes {dimension_semantics = [#tpu.dimension_semantics<arbitrary>], iteration_bounds = array<i64: 1>, scalar_prefetch = 0 : i64, scratch_operands = 4 : i64, tpu.core_type = #tpu.core_type<tc>, window_params = [{pipeline_mode = #tpu.pipeline_mode<synchronous>, transform_indices = @transform_0, window_bounds = array<i64: 512, 3>}, {pipeline_mode = #tpu.pipeline_mode<synchronous>, transform_indices = @transform_1, window_bounds = array<i64: 1152, 512>}, {pipeline_mode = #tpu.pipeline_mode<synchronous>, transform_indices = @transform_2, window_bounds = array<i64: 27, 12>}, {pipeline_mode = #tpu.pipeline_mode<synchronous>, transform_indices = @transform_3, window_bounds = array<i64: 1, 12>}, {pipeline_mode = #tpu.pipeline_mode<synchronous>, transform_indices = @transform_4, window_bounds = array<i64: 288, 128>}, {pipeline_mode = #tpu.pipeline_mode<synchronous>, transform_indices = @transform_5, window_bounds = array<i64: 108, 16>}, {pipeline_mode = #tpu.pipeline_mode<synchronous>, transform_indices = @transform_6, window_bounds = array<i64: 1, 16>}, {pipeline_mode = #tpu.pipeline_mode<synchronous>, transform_indices = @transform_7, window_bounds = array<i64: 9, 32, 1>}, {pipeline_mode = #tpu.pipeline_mode<synchronous>, transform_indices = @transform_8, window_bounds = array<i64: 144, 16>}, {pipeline_mode = #tpu.pipeline_mode<synchronous>, transform_indices = @transform_9, window_bounds = array<i64: 1, 16>}, {pipeline_mode = #tpu.pipeline_mode<synchronous>, transform_indices = @transform_10, window_bounds = array<i64: 9, 32, 1>}, {pipeline_mode = #tpu.pipeline_mode<synchronous>, transform_indices = @transform_11, window_bounds = array<i64: 144, 3>}, {pipeline_mode = #tpu.pipeline_mode<synchronous>, transform_indices = @transform_12, window_bounds = array<i64: 1, 3>}, {pipeline_mode = #tpu.pipeline_mode<synchronous>, transform_indices = @transform_13, window_bounds = array<i64: 32, 3>}]} {
    %c0 = arith.constant 0 : index
    %c0_0 = arith.constant 0 : index
    %0 = vector.load %arg1[%c0, %c0_0] : memref<512x3xf32, #tpu.memory_space<vmem>>, vector<512x3xf32>
    %c0_1 = arith.constant 0 : index
    %c0_2 = arith.constant 0 : index
    %1 = vector.load %arg2[%c0_1, %c0_2] : memref<1152x512xbf16, #tpu.memory_space<vmem>>, vector<1152x512xbf16>
    %2 = arith.truncf %0 : vector<512x3xf32> to vector<512x3xbf16>
    %cst = arith.constant dense<0.000000e+00> : vector<1152x3xf32>
    %3 = tpu.matmul %1, %2, %cst {dimension_numbers = #tpu.dot_dimension_numbers<[1], [0], [0], [1], [0, 0, 1, 1], [], []>} : vector<1152x512xbf16>, vector<512x3xbf16>, vector<1152x3xf32> -> vector<1152x3xf32>
    %4 = vector.extract_strided_slice %3 {offsets = [0, 0], sizes = [128, 3], strides = [1, 1]} : vector<1152x3xf32> to vector<128x3xf32>
    %c0_3 = arith.constant 0 : index
    %c0_4 = arith.constant 0 : index
    %5 = vector.load %arg15[%c0_3, %c0_4] : memref<128x27xf32, #tpu.memory_space<vmem>>, vector<128x3xf32>
    tpu.vector_store %arg15[%c0_3, %c0_4], %4 {strides = array<i32>} : memref<128x27xf32, #tpu.memory_space<vmem>>, vector<128x3xf32>,
    %6 = vector.extract_strided_slice %3 {offsets = [128, 0], sizes = [128, 3], strides = [1, 1]} : vector<1152x3xf32> to vector<128x3xf32>
    %c0_5 = arith.constant 0 : index
    %c3 = arith.constant 3 : index
    %7 = vector.load %arg15[%c0_5, %c3] : memref<128x27xf32, #tpu.memory_space<vmem>>, vector<128x3xf32>
    tpu.vector_store %arg15[%c0_5, %c3], %6 {strides = array<i32>} : memref<128x27xf32, #tpu.memory_space<vmem>>, vector<128x3xf32>,
    %8 = vector.extract_strided_slice %3 {offsets = [256, 0], sizes = [128, 3], strides = [1, 1]} : vector<1152x3xf32> to vector<128x3xf32>
    %c0_6 = arith.constant 0 : index
    %c6 = arith.constant 6 : index
    %9 = vector.load %arg15[%c0_6, %c6] : memref<128x27xf32, #tpu.memory_space<vmem>>, vector<128x3xf32>
    tpu.vector_store %arg15[%c0_6, %c6], %8 {strides = array<i32>} : memref<128x27xf32, #tpu.memory_space<vmem>>, vector<128x3xf32>,
    %10 = vector.extract_strided_slice %3 {offsets = [384, 0], sizes = [128, 3], strides = [1, 1]} : vector<1152x3xf32> to vector<128x3xf32>
    %c0_7 = arith.constant 0 : index
    %c9 = arith.constant 9 : index
    %11 = vector.load %arg15[%c0_7, %c9] : memref<128x27xf32, #tpu.memory_space<vmem>>, vector<128x3xf32>
    tpu.vector_store %arg15[%c0_7, %c9], %10 {strides = array<i32>} : memref<128x27xf32, #tpu.memory_space<vmem>>, vector<128x3xf32>,
    %12 = vector.extract_strided_slice %3 {offsets = [512, 0], sizes = [128, 3], strides = [1, 1]} : vector<1152x3xf32> to vector<128x3xf32>
    %c0_8 = arith.constant 0 : index
    %c12 = arith.constant 12 : index
    %13 = vector.load %arg15[%c0_8, %c12] : memref<128x27xf32, #tpu.memory_space<vmem>>, vector<128x3xf32>
    tpu.vector_store %arg15[%c0_8, %c12], %12 {strides = array<i32>} : memref<128x27xf32, #tpu.memory_space<vmem>>, vector<128x3xf32>,
    %14 = vector.extract_strided_slice %3 {offsets = [640, 0], sizes = [128, 3], strides = [1, 1]} : vector<1152x3xf32> to vector<128x3xf32>
    %c0_9 = arith.constant 0 : index
    %c15 = arith.constant 15 : index
    %15 = vector.load %arg15[%c0_9, %c15] : memref<128x27xf32, #tpu.memory_space<vmem>>, vector<128x3xf32>
    tpu.vector_store %arg15[%c0_9, %c15], %14 {strides = array<i32>} : memref<128x27xf32, #tpu.memory_space<vmem>>, vector<128x3xf32>,
    %16 = vector.extract_strided_slice %3 {offsets = [768, 0], sizes = [128, 3], strides = [1, 1]} : vector<1152x3xf32> to vector<128x3xf32>
    %c0_10 = arith.constant 0 : index
    %c18 = arith.constant 18 : index
    %17 = vector.load %arg15[%c0_10, %c18] : memref<128x27xf32, #tpu.memory_space<vmem>>, vector<128x3xf32>
    tpu.vector_store %arg15[%c0_10, %c18], %16 {strides = array<i32>} : memref<128x27xf32, #tpu.memory_space<vmem>>, vector<128x3xf32>,
    %18 = vector.extract_strided_slice %3 {offsets = [896, 0], sizes = [128, 3], strides = [1, 1]} : vector<1152x3xf32> to vector<128x3xf32>
    %c0_11 = arith.constant 0 : index
    %c21 = arith.constant 21 : index
    %19 = vector.load %arg15[%c0_11, %c21] : memref<128x27xf32, #tpu.memory_space<vmem>>, vector<128x3xf32>
    tpu.vector_store %arg15[%c0_11, %c21], %18 {strides = array<i32>} : memref<128x27xf32, #tpu.memory_space<vmem>>, vector<128x3xf32>,
    %20 = vector.extract_strided_slice %3 {offsets = [1024, 0], sizes = [128, 3], strides = [1, 1]} : vector<1152x3xf32> to vector<128x3xf32>
    %c0_12 = arith.constant 0 : index
    %c24 = arith.constant 24 : index
    %21 = vector.load %arg15[%c0_12, %c24] : memref<128x27xf32, #tpu.memory_space<vmem>>, vector<128x3xf32>
    tpu.vector_store %arg15[%c0_12, %c24], %20 {strides = array<i32>} : memref<128x27xf32, #tpu.memory_space<vmem>>, vector<128x3xf32>,
    %c0_13 = arith.constant 0 : index
    %c0_14 = arith.constant 0 : index
    %22 = vector.load %arg15[%c0_13, %c0_14] : memref<128x27xf32, #tpu.memory_space<vmem>>, vector<128x27xf32>
    %23 = arith.truncf %22 : vector<128x27xf32> to vector<128x27xbf16>
    %c0_15 = arith.constant 0 : index
    %c0_16 = arith.constant 0 : index
    %24 = vector.load %arg3[%c0_15, %c0_16] : memref<27x12xbf16, #tpu.memory_space<vmem>>, vector<27x12xbf16>
    %cst_17 = arith.constant dense<0.000000e+00> : vector<128x12xf32>
    %25 = tpu.matmul %23, %24, %cst_17 {dimension_numbers = #tpu.dot_dimension_numbers<[1], [0], [0], [1], [0, 0, 1, 1], [], []>} : vector<128x27xbf16>, vector<27x12xbf16>, vector<128x12xf32> -> vector<128x12xf32>
    %c0_18 = arith.constant 0 : index
    %c0_19 = arith.constant 0 : index
    %26 = vector.load %arg4[%c0_18, %c0_19] : memref<1x12xf32, #tpu.memory_space<vmem>>, vector<1x12xf32>
    %27 = vector.broadcast %26 : vector<1x12xf32> to vector<128x12xf32>
    %28 = arith.addf %25, %27 : vector<128x12xf32>
    %c0_20 = arith.constant 0 : index
    %c0_21 = arith.constant 0 : index
    %29 = vector.load %arg5[%c0_20, %c0_21] : memref<288x128xbf16, #tpu.memory_space<vmem>>, vector<288x128xbf16>
    %30 = arith.truncf %28 : vector<128x12xf32> to vector<128x12xbf16>
    %cst_22 = arith.constant dense<0.000000e+00> : vector<288x12xf32>
    %31 = tpu.matmul %29, %30, %cst_22 {dimension_numbers = #tpu.dot_dimension_numbers<[1], [0], [0], [1], [0, 0, 1, 1], [], []>} : vector<288x128xbf16>, vector<128x12xbf16>, vector<288x12xf32> -> vector<288x12xf32>
    %32 = vector.extract_strided_slice %31 {offsets = [0, 0], sizes = [32, 12], strides = [1, 1]} : vector<288x12xf32> to vector<32x12xf32>
    %c0_23 = arith.constant 0 : index
    %c0_24 = arith.constant 0 : index
    %33 = vector.load %arg16[%c0_23, %c0_24] : memref<32x108xf32, #tpu.memory_space<vmem>>, vector<32x12xf32>
    tpu.vector_store %arg16[%c0_23, %c0_24], %32 {strides = array<i32>} : memref<32x108xf32, #tpu.memory_space<vmem>>, vector<32x12xf32>,
    %34 = vector.extract_strided_slice %31 {offsets = [32, 0], sizes = [32, 12], strides = [1, 1]} : vector<288x12xf32> to vector<32x12xf32>
    %c0_25 = arith.constant 0 : index
    %c12_26 = arith.constant 12 : index
    %35 = vector.load %arg16[%c0_25, %c12_26] : memref<32x108xf32, #tpu.memory_space<vmem>>, vector<32x12xf32>
    tpu.vector_store %arg16[%c0_25, %c12_26], %34 {strides = array<i32>} : memref<32x108xf32, #tpu.memory_space<vmem>>, vector<32x12xf32>,
    %36 = vector.extract_strided_slice %31 {offsets = [64, 0], sizes = [32, 12], strides = [1, 1]} : vector<288x12xf32> to vector<32x12xf32>
    %c0_27 = arith.constant 0 : index
    %c24_28 = arith.constant 24 : index
    %37 = vector.load %arg16[%c0_27, %c24_28] : memref<32x108xf32, #tpu.memory_space<vmem>>, vector<32x12xf32>
    tpu.vector_store %arg16[%c0_27, %c24_28], %36 {strides = array<i32>} : memref<32x108xf32, #tpu.memory_space<vmem>>, vector<32x12xf32>,
    %38 = vector.extract_strided_slice %31 {offsets = [96, 0], sizes = [32, 12], strides = [1, 1]} : vector<288x12xf32> to vector<32x12xf32>
    %c0_29 = arith.constant 0 : index
    %c36 = arith.constant 36 : index
    %39 = vector.load %arg16[%c0_29, %c36] : memref<32x108xf32, #tpu.memory_space<vmem>>, vector<32x12xf32>
    tpu.vector_store %arg16[%c0_29, %c36], %38 {strides = array<i32>} : memref<32x108xf32, #tpu.memory_space<vmem>>, vector<32x12xf32>,
    %40 = vector.extract_strided_slice %31 {offsets = [128, 0], sizes = [32, 12], strides = [1, 1]} : vector<288x12xf32> to vector<32x12xf32>
    %c0_30 = arith.constant 0 : index
    %c48 = arith.constant 48 : index
    %41 = vector.load %arg16[%c0_30, %c48] : memref<32x108xf32, #tpu.memory_space<vmem>>, vector<32x12xf32>
    tpu.vector_store %arg16[%c0_30, %c48], %40 {strides = array<i32>} : memref<32x108xf32, #tpu.memory_space<vmem>>, vector<32x12xf32>,
    %42 = vector.extract_strided_slice %31 {offsets = [160, 0], sizes = [32, 12], strides = [1, 1]} : vector<288x12xf32> to vector<32x12xf32>
    %c0_31 = arith.constant 0 : index
    %c60 = arith.constant 60 : index
    %43 = vector.load %arg16[%c0_31, %c60] : memref<32x108xf32, #tpu.memory_space<vmem>>, vector<32x12xf32>
    tpu.vector_store %arg16[%c0_31, %c60], %42 {strides = array<i32>} : memref<32x108xf32, #tpu.memory_space<vmem>>, vector<32x12xf32>,
    %44 = vector.extract_strided_slice %31 {offsets = [192, 0], sizes = [32, 12], strides = [1, 1]} : vector<288x12xf32> to vector<32x12xf32>
    %c0_32 = arith.constant 0 : index
    %c72 = arith.constant 72 : index
    %45 = vector.load %arg16[%c0_32, %c72] : memref<32x108xf32, #tpu.memory_space<vmem>>, vector<32x12xf32>
    tpu.vector_store %arg16[%c0_32, %c72], %44 {strides = array<i32>} : memref<32x108xf32, #tpu.memory_space<vmem>>, vector<32x12xf32>,
    %46 = vector.extract_strided_slice %31 {offsets = [224, 0], sizes = [32, 12], strides = [1, 1]} : vector<288x12xf32> to vector<32x12xf32>
    %c0_33 = arith.constant 0 : index
    %c84 = arith.constant 84 : index
    %47 = vector.load %arg16[%c0_33, %c84] : memref<32x108xf32, #tpu.memory_space<vmem>>, vector<32x12xf32>
    tpu.vector_store %arg16[%c0_33, %c84], %46 {strides = array<i32>} : memref<32x108xf32, #tpu.memory_space<vmem>>, vector<32x12xf32>,
    %48 = vector.extract_strided_slice %31 {offsets = [256, 0], sizes = [32, 12], strides = [1, 1]} : vector<288x12xf32> to vector<32x12xf32>
    %c0_34 = arith.constant 0 : index
    %c96 = arith.constant 96 : index
    %49 = vector.load %arg16[%c0_34, %c96] : memref<32x108xf32, #tpu.memory_space<vmem>>, vector<32x12xf32>
    tpu.vector_store %arg16[%c0_34, %c96], %48 {strides = array<i32>} : memref<32x108xf32, #tpu.memory_space<vmem>>, vector<32x12xf32>,
    %c0_35 = arith.constant 0 : index
    %c0_36 = arith.constant 0 : index
    %50 = vector.load %arg16[%c0_35, %c0_36] : memref<32x108xf32, #tpu.memory_space<vmem>>, vector<32x108xf32>
    %51 = arith.truncf %50 : vector<32x108xf32> to vector<32x108xbf16>
    %c0_37 = arith.constant 0 : index
    %c0_38 = arith.constant 0 : index
    %52 = vector.load %arg6[%c0_37, %c0_38] : memref<108x16xbf16, #tpu.memory_space<vmem>>, vector<108x16xbf16>
    %cst_39 = arith.constant dense<0.000000e+00> : vector<32x16xf32>
    %53 = tpu.matmul %51, %52, %cst_39 {dimension_numbers = #tpu.dot_dimension_numbers<[1], [0], [0], [1], [0, 0, 1, 1], [], []>} : vector<32x108xbf16>, vector<108x16xbf16>, vector<32x16xf32> -> vector<32x16xf32>
    %c0_40 = arith.constant 0 : index
    %c0_41 = arith.constant 0 : index
    %54 = vector.load %arg7[%c0_40, %c0_41] : memref<1x16xf32, #tpu.memory_space<vmem>>, vector<1x16xf32>
    %55 = vector.broadcast %54 : vector<1x16xf32> to vector<32x16xf32>
    %56 = arith.addf %53, %55 : vector<32x16xf32>
    %cst_42 = arith.constant 0.000000e+00 : f32
    %57 = vector.broadcast %cst_42 : f32 to vector<32x16xf32>
    %58 = arith.maximumf %56, %57 : vector<32x16xf32>
    %c5_i32 = arith.constant 5 : i32
    %59 = tpu.dynamic_rotate %58 by %c5_i32 dim 0 : vector<32x16xf32>, i32 -> vector<32x16xf32>
    %c0_43 = arith.constant 0 : index
    %c0_44 = arith.constant 0 : index
    %c0_45 = arith.constant 0 : index
    %60 = vector.load %arg8[%c0_43, %c0_44, %c0_45] : memref<9x32x1xf32, #tpu.memory_space<vmem>>, vector<1x32x1xf32>
    %61 = vector.shape_cast %60 : vector<1x32x1xf32> to vector<32x1xf32>
    %62 = vector.broadcast %61 : vector<32x1xf32> to vector<32x16xf32>
    %63 = arith.mulf %59, %62 : vector<32x16xf32>
    %c0_46 = arith.constant 0 : index
    %c0_47 = arith.constant 0 : index
    %64 = vector.load %arg17[%c0_46, %c0_47] : memref<32x144xf32, #tpu.memory_space<vmem>>, vector<32x16xf32>
    tpu.vector_store %arg17[%c0_46, %c0_47], %63 {strides = array<i32>} : memref<32x144xf32, #tpu.memory_space<vmem>>, vector<32x16xf32>,
    %c4_i32 = arith.constant 4 : i32
    %65 = tpu.dynamic_rotate %58 by %c4_i32 dim 0 : vector<32x16xf32>, i32 -> vector<32x16xf32>
    %c1 = arith.constant 1 : index
    %c0_48 = arith.constant 0 : index
    %c0_49 = arith.constant 0 : index
    %66 = vector.load %arg8[%c1, %c0_48, %c0_49] : memref<9x32x1xf32, #tpu.memory_space<vmem>>, vector<1x32x1xf32>
    %67 = vector.shape_cast %66 : vector<1x32x1xf32> to vector<32x1xf32>
    %68 = vector.broadcast %67 : vector<32x1xf32> to vector<32x16xf32>
    %69 = arith.mulf %65, %68 : vector<32x16xf32>
    %c0_50 = arith.constant 0 : index
    %c16 = arith.constant 16 : index
    %70 = vector.load %arg17[%c0_50, %c16] : memref<32x144xf32, #tpu.memory_space<vmem>>, vector<32x16xf32>
    tpu.vector_store %arg17[%c0_50, %c16], %69 {strides = array<i32>} : memref<32x144xf32, #tpu.memory_space<vmem>>, vector<32x16xf32>,
    %c3_i32 = arith.constant 3 : i32
    %71 = tpu.dynamic_rotate %58 by %c3_i32 dim 0 : vector<32x16xf32>, i32 -> vector<32x16xf32>
    %c2 = arith.constant 2 : index
    %c0_51 = arith.constant 0 : index
    %c0_52 = arith.constant 0 : index
    %72 = vector.load %arg8[%c2, %c0_51, %c0_52] : memref<9x32x1xf32, #tpu.memory_space<vmem>>, vector<1x32x1xf32>
    %73 = vector.shape_cast %72 : vector<1x32x1xf32> to vector<32x1xf32>
    %74 = vector.broadcast %73 : vector<32x1xf32> to vector<32x16xf32>
    %75 = arith.mulf %71, %74 : vector<32x16xf32>
    %c0_53 = arith.constant 0 : index
    %c32 = arith.constant 32 : index
    %76 = vector.load %arg17[%c0_53, %c32] : memref<32x144xf32, #tpu.memory_space<vmem>>, vector<32x16xf32>
    tpu.vector_store %arg17[%c0_53, %c32], %75 {strides = array<i32>} : memref<32x144xf32, #tpu.memory_space<vmem>>, vector<32x16xf32>,
    %c1_i32 = arith.constant 1 : i32
    %77 = tpu.dynamic_rotate %58 by %c1_i32 dim 0 : vector<32x16xf32>, i32 -> vector<32x16xf32>
    %c3_54 = arith.constant 3 : index
    %c0_55 = arith.constant 0 : index
    %c0_56 = arith.constant 0 : index
    %78 = vector.load %arg8[%c3_54, %c0_55, %c0_56] : memref<9x32x1xf32, #tpu.memory_space<vmem>>, vector<1x32x1xf32>
    %79 = vector.shape_cast %78 : vector<1x32x1xf32> to vector<32x1xf32>
    %80 = vector.broadcast %79 : vector<32x1xf32> to vector<32x16xf32>
    %81 = arith.mulf %77, %80 : vector<32x16xf32>
    %c0_57 = arith.constant 0 : index
    %c48_58 = arith.constant 48 : index
    %82 = vector.load %arg17[%c0_57, %c48_58] : memref<32x144xf32, #tpu.memory_space<vmem>>, vector<32x16xf32>
    tpu.vector_store %arg17[%c0_57, %c48_58], %81 {strides = array<i32>} : memref<32x144xf32, #tpu.memory_space<vmem>>, vector<32x16xf32>,
    %c4 = arith.constant 4 : index
    %c0_59 = arith.constant 0 : index
    %c0_60 = arith.constant 0 : index
    %83 = vector.load %arg8[%c4, %c0_59, %c0_60] : memref<9x32x1xf32, #tpu.memory_space<vmem>>, vector<1x32x1xf32>
    %84 = vector.shape_cast %83 : vector<1x32x1xf32> to vector<32x1xf32>
    %85 = vector.broadcast %84 : vector<32x1xf32> to vector<32x16xf32>
    %86 = arith.mulf %58, %85 : vector<32x16xf32>
    %c0_61 = arith.constant 0 : index
    %c64 = arith.constant 64 : index
    %87 = vector.load %arg17[%c0_61, %c64] : memref<32x144xf32, #tpu.memory_space<vmem>>, vector<32x16xf32>
    tpu.vector_store %arg17[%c0_61, %c64], %86 {strides = array<i32>} : memref<32x144xf32, #tpu.memory_space<vmem>>, vector<32x16xf32>,
    %c31_i32 = arith.constant 31 : i32
    %88 = tpu.dynamic_rotate %58 by %c31_i32 dim 0 : vector<32x16xf32>, i32 -> vector<32x16xf32>
    %c5 = arith.constant 5 : index
    %c0_62 = arith.constant 0 : index
    %c0_63 = arith.constant 0 : index
    %89 = vector.load %arg8[%c5, %c0_62, %c0_63] : memref<9x32x1xf32, #tpu.memory_space<vmem>>, vector<1x32x1xf32>
    %90 = vector.shape_cast %89 : vector<1x32x1xf32> to vector<32x1xf32>
    %91 = vector.broadcast %90 : vector<32x1xf32> to vector<32x16xf32>
    %92 = arith.mulf %88, %91 : vector<32x16xf32>
    %c0_64 = arith.constant 0 : index
    %c80 = arith.constant 80 : index
    %93 = vector.load %arg17[%c0_64, %c80] : memref<32x144xf32, #tpu.memory_space<vmem>>, vector<32x16xf32>
    tpu.vector_store %arg17[%c0_64, %c80], %92 {strides = array<i32>} : memref<32x144xf32, #tpu.memory_space<vmem>>, vector<32x16xf32>,
    %c29_i32 = arith.constant 29 : i32
    %94 = tpu.dynamic_rotate %58 by %c29_i32 dim 0 : vector<32x16xf32>, i32 -> vector<32x16xf32>
    %c6_65 = arith.constant 6 : index
    %c0_66 = arith.constant 0 : index
    %c0_67 = arith.constant 0 : index
    %95 = vector.load %arg8[%c6_65, %c0_66, %c0_67] : memref<9x32x1xf32, #tpu.memory_space<vmem>>, vector<1x32x1xf32>
    %96 = vector.shape_cast %95 : vector<1x32x1xf32> to vector<32x1xf32>
    %97 = vector.broadcast %96 : vector<32x1xf32> to vector<32x16xf32>
    %98 = arith.mulf %94, %97 : vector<32x16xf32>
    %c0_68 = arith.constant 0 : index
    %c96_69 = arith.constant 96 : index
    %99 = vector.load %arg17[%c0_68, %c96_69] : memref<32x144xf32, #tpu.memory_space<vmem>>, vector<32x16xf32>
    tpu.vector_store %arg17[%c0_68, %c96_69], %98 {strides = array<i32>} : memref<32x144xf32, #tpu.memory_space<vmem>>, vector<32x16xf32>,
    %c28_i32 = arith.constant 28 : i32
    %100 = tpu.dynamic_rotate %58 by %c28_i32 dim 0 : vector<32x16xf32>, i32 -> vector<32x16xf32>
    %c7 = arith.constant 7 : index
    %c0_70 = arith.constant 0 : index
    %c0_71 = arith.constant 0 : index
    %101 = vector.load %arg8[%c7, %c0_70, %c0_71] : memref<9x32x1xf32, #tpu.memory_space<vmem>>, vector<1x32x1xf32>
    %102 = vector.shape_cast %101 : vector<1x32x1xf32> to vector<32x1xf32>
    %103 = vector.broadcast %102 : vector<32x1xf32> to vector<32x16xf32>
    %104 = arith.mulf %100, %103 : vector<32x16xf32>
    %c0_72 = arith.constant 0 : index
    %c112 = arith.constant 112 : index
    %105 = vector.load %arg17[%c0_72, %c112] : memref<32x144xf32, #tpu.memory_space<vmem>>, vector<32x16xf32>
    tpu.vector_store %arg17[%c0_72, %c112], %104 {strides = array<i32>} : memref<32x144xf32, #tpu.memory_space<vmem>>, vector<32x16xf32>,
    %c27_i32 = arith.constant 27 : i32
    %106 = tpu.dynamic_rotate %58 by %c27_i32 dim 0 : vector<32x16xf32>, i32 -> vector<32x16xf32>
    %c8 = arith.constant 8 : index
    %c0_73 = arith.constant 0 : index
    %c0_74 = arith.constant 0 : index
    %107 = vector.load %arg8[%c8, %c0_73, %c0_74] : memref<9x32x1xf32, #tpu.memory_space<vmem>>, vector<1x32x1xf32>
    %108 = vector.shape_cast %107 : vector<1x32x1xf32> to vector<32x1xf32>
    %109 = vector.broadcast %108 : vector<32x1xf32> to vector<32x16xf32>
    %110 = arith.mulf %106, %109 : vector<32x16xf32>
    %c0_75 = arith.constant 0 : index
    %c128 = arith.constant 128 : index
    %111 = vector.load %arg17[%c0_75, %c128] : memref<32x144xf32, #tpu.memory_space<vmem>>, vector<32x16xf32>
    tpu.vector_store %arg17[%c0_75, %c128], %110 {strides = array<i32>} : memref<32x144xf32, #tpu.memory_space<vmem>>, vector<32x16xf32>,
    %c0_76 = arith.constant 0 : index
    %c0_77 = arith.constant 0 : index
    %112 = vector.load %arg17[%c0_76, %c0_77] : memref<32x144xf32, #tpu.memory_space<vmem>>, vector<32x144xf32>
    %113 = arith.truncf %112 : vector<32x144xf32> to vector<32x144xbf16>
    %c0_78 = arith.constant 0 : index
    %c0_79 = arith.constant 0 : index
    %114 = vector.load %arg9[%c0_78, %c0_79] : memref<144x16xbf16, #tpu.memory_space<vmem>>, vector<144x16xbf16>
    %cst_80 = arith.constant dense<0.000000e+00> : vector<32x16xf32>
    %115 = tpu.matmul %113, %114, %cst_80 {dimension_numbers = #tpu.dot_dimension_numbers<[1], [0], [0], [1], [0, 0, 1, 1], [], []>} : vector<32x144xbf16>, vector<144x16xbf16>, vector<32x16xf32> -> vector<32x16xf32>
    %c0_81 = arith.constant 0 : index
    %c0_82 = arith.constant 0 : index
    %116 = vector.load %arg10[%c0_81, %c0_82] : memref<1x16xf32, #tpu.memory_space<vmem>>, vector<1x16xf32>
    %117 = vector.broadcast %116 : vector<1x16xf32> to vector<32x16xf32>
    %118 = arith.addf %115, %117 : vector<32x16xf32>
    %cst_83 = arith.constant 0.000000e+00 : f32
    %119 = vector.broadcast %cst_83 : f32 to vector<32x16xf32>
    %120 = arith.maximumf %118, %119 : vector<32x16xf32>
    %c5_i32_84 = arith.constant 5 : i32
    %121 = tpu.dynamic_rotate %120 by %c5_i32_84 dim 0 : vector<32x16xf32>, i32 -> vector<32x16xf32>
    %c0_85 = arith.constant 0 : index
    %c0_86 = arith.constant 0 : index
    %c0_87 = arith.constant 0 : index
    %122 = vector.load %arg11[%c0_85, %c0_86, %c0_87] : memref<9x32x1xf32, #tpu.memory_space<vmem>>, vector<1x32x1xf32>
    %123 = vector.shape_cast %122 : vector<1x32x1xf32> to vector<32x1xf32>
    %124 = vector.broadcast %123 : vector<32x1xf32> to vector<32x16xf32>
    %125 = arith.mulf %121, %124 : vector<32x16xf32>
    %c0_88 = arith.constant 0 : index
    %c0_89 = arith.constant 0 : index
    %126 = vector.load %arg18[%c0_88, %c0_89] : memref<32x144xf32, #tpu.memory_space<vmem>>, vector<32x16xf32>
    tpu.vector_store %arg18[%c0_88, %c0_89], %125 {strides = array<i32>} : memref<32x144xf32, #tpu.memory_space<vmem>>, vector<32x16xf32>,
    %c4_i32_90 = arith.constant 4 : i32
    %127 = tpu.dynamic_rotate %120 by %c4_i32_90 dim 0 : vector<32x16xf32>, i32 -> vector<32x16xf32>
    %c1_91 = arith.constant 1 : index
    %c0_92 = arith.constant 0 : index
    %c0_93 = arith.constant 0 : index
    %128 = vector.load %arg11[%c1_91, %c0_92, %c0_93] : memref<9x32x1xf32, #tpu.memory_space<vmem>>, vector<1x32x1xf32>
    %129 = vector.shape_cast %128 : vector<1x32x1xf32> to vector<32x1xf32>
    %130 = vector.broadcast %129 : vector<32x1xf32> to vector<32x16xf32>
    %131 = arith.mulf %127, %130 : vector<32x16xf32>
    %c0_94 = arith.constant 0 : index
    %c16_95 = arith.constant 16 : index
    %132 = vector.load %arg18[%c0_94, %c16_95] : memref<32x144xf32, #tpu.memory_space<vmem>>, vector<32x16xf32>
    tpu.vector_store %arg18[%c0_94, %c16_95], %131 {strides = array<i32>} : memref<32x144xf32, #tpu.memory_space<vmem>>, vector<32x16xf32>,
    %c3_i32_96 = arith.constant 3 : i32
    %133 = tpu.dynamic_rotate %120 by %c3_i32_96 dim 0 : vector<32x16xf32>, i32 -> vector<32x16xf32>
    %c2_97 = arith.constant 2 : index
    %c0_98 = arith.constant 0 : index
    %c0_99 = arith.constant 0 : index
    %134 = vector.load %arg11[%c2_97, %c0_98, %c0_99] : memref<9x32x1xf32, #tpu.memory_space<vmem>>, vector<1x32x1xf32>
    %135 = vector.shape_cast %134 : vector<1x32x1xf32> to vector<32x1xf32>
    %136 = vector.broadcast %135 : vector<32x1xf32> to vector<32x16xf32>
    %137 = arith.mulf %133, %136 : vector<32x16xf32>
    %c0_100 = arith.constant 0 : index
    %c32_101 = arith.constant 32 : index
    %138 = vector.load %arg18[%c0_100, %c32_101] : memref<32x144xf32, #tpu.memory_space<vmem>>, vector<32x16xf32>
    tpu.vector_store %arg18[%c0_100, %c32_101], %137 {strides = array<i32>} : memref<32x144xf32, #tpu.memory_space<vmem>>, vector<32x16xf32>,
    %c1_i32_102 = arith.constant 1 : i32
    %139 = tpu.dynamic_rotate %120 by %c1_i32_102 dim 0 : vector<32x16xf32>, i32 -> vector<32x16xf32>
    %c3_103 = arith.constant 3 : index
    %c0_104 = arith.constant 0 : index
    %c0_105 = arith.constant 0 : index
    %140 = vector.load %arg11[%c3_103, %c0_104, %c0_105] : memref<9x32x1xf32, #tpu.memory_space<vmem>>, vector<1x32x1xf32>
    %141 = vector.shape_cast %140 : vector<1x32x1xf32> to vector<32x1xf32>
    %142 = vector.broadcast %141 : vector<32x1xf32> to vector<32x16xf32>
    %143 = arith.mulf %139, %142 : vector<32x16xf32>
    %c0_106 = arith.constant 0 : index
    %c48_107 = arith.constant 48 : index
    %144 = vector.load %arg18[%c0_106, %c48_107] : memref<32x144xf32, #tpu.memory_space<vmem>>, vector<32x16xf32>
    tpu.vector_store %arg18[%c0_106, %c48_107], %143 {strides = array<i32>} : memref<32x144xf32, #tpu.memory_space<vmem>>, vector<32x16xf32>,
    %c4_108 = arith.constant 4 : index
    %c0_109 = arith.constant 0 : index
    %c0_110 = arith.constant 0 : index
    %145 = vector.load %arg11[%c4_108, %c0_109, %c0_110] : memref<9x32x1xf32, #tpu.memory_space<vmem>>, vector<1x32x1xf32>
    %146 = vector.shape_cast %145 : vector<1x32x1xf32> to vector<32x1xf32>
    %147 = vector.broadcast %146 : vector<32x1xf32> to vector<32x16xf32>
    %148 = arith.mulf %120, %147 : vector<32x16xf32>
    %c0_111 = arith.constant 0 : index
    %c64_112 = arith.constant 64 : index
    %149 = vector.load %arg18[%c0_111, %c64_112] : memref<32x144xf32, #tpu.memory_space<vmem>>, vector<32x16xf32>
    tpu.vector_store %arg18[%c0_111, %c64_112], %148 {strides = array<i32>} : memref<32x144xf32, #tpu.memory_space<vmem>>, vector<32x16xf32>,
    %c31_i32_113 = arith.constant 31 : i32
    %150 = tpu.dynamic_rotate %120 by %c31_i32_113 dim 0 : vector<32x16xf32>, i32 -> vector<32x16xf32>
    %c5_114 = arith.constant 5 : index
    %c0_115 = arith.constant 0 : index
    %c0_116 = arith.constant 0 : index
    %151 = vector.load %arg11[%c5_114, %c0_115, %c0_116] : memref<9x32x1xf32, #tpu.memory_space<vmem>>, vector<1x32x1xf32>
    %152 = vector.shape_cast %151 : vector<1x32x1xf32> to vector<32x1xf32>
    %153 = vector.broadcast %152 : vector<32x1xf32> to vector<32x16xf32>
    %154 = arith.mulf %150, %153 : vector<32x16xf32>
    %c0_117 = arith.constant 0 : index
    %c80_118 = arith.constant 80 : index
    %155 = vector.load %arg18[%c0_117, %c80_118] : memref<32x144xf32, #tpu.memory_space<vmem>>, vector<32x16xf32>
    tpu.vector_store %arg18[%c0_117, %c80_118], %154 {strides = array<i32>} : memref<32x144xf32, #tpu.memory_space<vmem>>, vector<32x16xf32>,
    %c29_i32_119 = arith.constant 29 : i32
    %156 = tpu.dynamic_rotate %120 by %c29_i32_119 dim 0 : vector<32x16xf32>, i32 -> vector<32x16xf32>
    %c6_120 = arith.constant 6 : index
    %c0_121 = arith.constant 0 : index
    %c0_122 = arith.constant 0 : index
    %157 = vector.load %arg11[%c6_120, %c0_121, %c0_122] : memref<9x32x1xf32, #tpu.memory_space<vmem>>, vector<1x32x1xf32>
    %158 = vector.shape_cast %157 : vector<1x32x1xf32> to vector<32x1xf32>
    %159 = vector.broadcast %158 : vector<32x1xf32> to vector<32x16xf32>
    %160 = arith.mulf %156, %159 : vector<32x16xf32>
    %c0_123 = arith.constant 0 : index
    %c96_124 = arith.constant 96 : index
    %161 = vector.load %arg18[%c0_123, %c96_124] : memref<32x144xf32, #tpu.memory_space<vmem>>, vector<32x16xf32>
    tpu.vector_store %arg18[%c0_123, %c96_124], %160 {strides = array<i32>} : memref<32x144xf32, #tpu.memory_space<vmem>>, vector<32x16xf32>,
    %c28_i32_125 = arith.constant 28 : i32
    %162 = tpu.dynamic_rotate %120 by %c28_i32_125 dim 0 : vector<32x16xf32>, i32 -> vector<32x16xf32>
    %c7_126 = arith.constant 7 : index
    %c0_127 = arith.constant 0 : index
    %c0_128 = arith.constant 0 : index
    %163 = vector.load %arg11[%c7_126, %c0_127, %c0_128] : memref<9x32x1xf32, #tpu.memory_space<vmem>>, vector<1x32x1xf32>
    %164 = vector.shape_cast %163 : vector<1x32x1xf32> to vector<32x1xf32>
    %165 = vector.broadcast %164 : vector<32x1xf32> to vector<32x16xf32>
    %166 = arith.mulf %162, %165 : vector<32x16xf32>
    %c0_129 = arith.constant 0 : index
    %c112_130 = arith.constant 112 : index
    %167 = vector.load %arg18[%c0_129, %c112_130] : memref<32x144xf32, #tpu.memory_space<vmem>>, vector<32x16xf32>
    tpu.vector_store %arg18[%c0_129, %c112_130], %166 {strides = array<i32>} : memref<32x144xf32, #tpu.memory_space<vmem>>, vector<32x16xf32>,
    %c27_i32_131 = arith.constant 27 : i32
    %168 = tpu.dynamic_rotate %120 by %c27_i32_131 dim 0 : vector<32x16xf32>, i32 -> vector<32x16xf32>
    %c8_132 = arith.constant 8 : index
    %c0_133 = arith.constant 0 : index
    %c0_134 = arith.constant 0 : index
    %169 = vector.load %arg11[%c8_132, %c0_133, %c0_134] : memref<9x32x1xf32, #tpu.memory_space<vmem>>, vector<1x32x1xf32>
    %170 = vector.shape_cast %169 : vector<1x32x1xf32> to vector<32x1xf32>
    %171 = vector.broadcast %170 : vector<32x1xf32> to vector<32x16xf32>
    %172 = arith.mulf %168, %171 : vector<32x16xf32>
    %c0_135 = arith.constant 0 : index
    %c128_136 = arith.constant 128 : index
    %173 = vector.load %arg18[%c0_135, %c128_136] : memref<32x144xf32, #tpu.memory_space<vmem>>, vector<32x16xf32>
    tpu.vector_store %arg18[%c0_135, %c128_136], %172 {strides = array<i32>} : memref<32x144xf32, #tpu.memory_space<vmem>>, vector<32x16xf32>,
    %c0_137 = arith.constant 0 : index
    %c0_138 = arith.constant 0 : index
    %174 = vector.load %arg18[%c0_137, %c0_138] : memref<32x144xf32, #tpu.memory_space<vmem>>, vector<32x144xf32>
    %175 = arith.truncf %174 : vector<32x144xf32> to vector<32x144xbf16>
    %c0_139 = arith.constant 0 : index
    %c0_140 = arith.constant 0 : index
    %176 = vector.load %arg12[%c0_139, %c0_140] : memref<144x3xbf16, #tpu.memory_space<vmem>>, vector<144x3xbf16>
    %cst_141 = arith.constant dense<0.000000e+00> : vector<32x3xf32>
    %177 = tpu.matmul %175, %176, %cst_141 {dimension_numbers = #tpu.dot_dimension_numbers<[1], [0], [0], [1], [0, 0, 1, 1], [], []>} : vector<32x144xbf16>, vector<144x3xbf16>, vector<32x3xf32> -> vector<32x3xf32>
    %c0_142 = arith.constant 0 : index
    %c0_143 = arith.constant 0 : index
    %178 = vector.load %arg13[%c0_142, %c0_143] : memref<1x3xf32, #tpu.memory_space<vmem>>, vector<1x3xf32>
    %179 = vector.broadcast %178 : vector<1x3xf32> to vector<32x3xf32>
    %180 = arith.addf %177, %179 : vector<32x3xf32>
    %cst_144 = arith.constant 0.000000e+00 : f32
    %181 = vector.broadcast %cst_144 : f32 to vector<32x3xf32>
    %182 = arith.maximumf %180, %181 : vector<32x3xf32>
    %cst_145 = arith.constant 1.000000e+00 : f32
    %183 = vector.broadcast %cst_145 : f32 to vector<32x3xf32>
    %184 = arith.minimumf %182, %183 : vector<32x3xf32>
    %c0_146 = arith.constant 0 : index
    %c0_147 = arith.constant 0 : index
    %185 = vector.load %arg14[%c0_146, %c0_147] : memref<32x3xf32, #tpu.memory_space<vmem>>, vector<32x3xf32>
    tpu.vector_store %arg14[%c0_146, %c0_147], %184 {strides = array<i32>} : memref<32x3xf32, #tpu.memory_space<vmem>>, vector<32x3xf32>,
    return
  }
  func.func @transform_0(%arg0: i32) -> (i32, i32) {
    %c0_i32 = arith.constant 0 : i32
    %c0_i32_0 = arith.constant 0 : i32
    %c0_i32_1 = arith.constant 0 : i32
    return %c0_i32, %c0_i32_0 : i32, i32
  }
  func.func @transform_1(%arg0: i32) -> (i32, i32) {
    %c0_i32 = arith.constant 0 : i32
    %c0_i32_0 = arith.constant 0 : i32
    %c0_i32_1 = arith.constant 0 : i32
    return %c0_i32, %c0_i32_0 : i32, i32
  }
  func.func @transform_2(%arg0: i32) -> (i32, i32) {
    %c0_i32 = arith.constant 0 : i32
    %c0_i32_0 = arith.constant 0 : i32
    %c0_i32_1 = arith.constant 0 : i32
    return %c0_i32, %c0_i32_0 : i32, i32
  }
  func.func @transform_3(%arg0: i32) -> (i32, i32) {
    %c0_i32 = arith.constant 0 : i32
    %c0_i32_0 = arith.constant 0 : i32
    %c0_i32_1 = arith.constant 0 : i32
    return %c0_i32, %c0_i32_0 : i32, i32
  }
  func.func @transform_4(%arg0: i32) -> (i32, i32) {
    %c0_i32 = arith.constant 0 : i32
    %c0_i32_0 = arith.constant 0 : i32
    %c0_i32_1 = arith.constant 0 : i32
    return %c0_i32, %c0_i32_0 : i32, i32
  }
  func.func @transform_5(%arg0: i32) -> (i32, i32) {
    %c0_i32 = arith.constant 0 : i32
    %c0_i32_0 = arith.constant 0 : i32
    %c0_i32_1 = arith.constant 0 : i32
    return %c0_i32, %c0_i32_0 : i32, i32
  }
  func.func @transform_6(%arg0: i32) -> (i32, i32) {
    %c0_i32 = arith.constant 0 : i32
    %c0_i32_0 = arith.constant 0 : i32
    %c0_i32_1 = arith.constant 0 : i32
    return %c0_i32, %c0_i32_0 : i32, i32
  }
  func.func @transform_7(%arg0: i32) -> (i32, i32, i32) {
    %c0_i32 = arith.constant 0 : i32
    %c0_i32_0 = arith.constant 0 : i32
    %c0_i32_1 = arith.constant 0 : i32
    %c0_i32_2 = arith.constant 0 : i32
    return %c0_i32, %c0_i32_0, %c0_i32_1 : i32, i32, i32
  }
  func.func @transform_8(%arg0: i32) -> (i32, i32) {
    %c0_i32 = arith.constant 0 : i32
    %c0_i32_0 = arith.constant 0 : i32
    %c0_i32_1 = arith.constant 0 : i32
    return %c0_i32, %c0_i32_0 : i32, i32
  }
  func.func @transform_9(%arg0: i32) -> (i32, i32) {
    %c0_i32 = arith.constant 0 : i32
    %c0_i32_0 = arith.constant 0 : i32
    %c0_i32_1 = arith.constant 0 : i32
    return %c0_i32, %c0_i32_0 : i32, i32
  }
  func.func @transform_10(%arg0: i32) -> (i32, i32, i32) {
    %c0_i32 = arith.constant 0 : i32
    %c0_i32_0 = arith.constant 0 : i32
    %c0_i32_1 = arith.constant 0 : i32
    %c0_i32_2 = arith.constant 0 : i32
    return %c0_i32, %c0_i32_0, %c0_i32_1 : i32, i32, i32
  }
  func.func @transform_11(%arg0: i32) -> (i32, i32) {
    %c0_i32 = arith.constant 0 : i32
    %c0_i32_0 = arith.constant 0 : i32
    %c0_i32_1 = arith.constant 0 : i32
    return %c0_i32, %c0_i32_0 : i32, i32
  }
  func.func @transform_12(%arg0: i32) -> (i32, i32) {
    %c0_i32 = arith.constant 0 : i32
    %c0_i32_0 = arith.constant 0 : i32
    %c0_i32_1 = arith.constant 0 : i32
    return %c0_i32, %c0_i32_0 : i32, i32
  }
  func.func @transform_13(%arg0: i32) -> (i32, i32) {
    %c0_i32 = arith.constant 0 : i32
    %c0_i32_0 = arith.constant 0 : i32
    %c0_i32_1 = arith.constant 0 : i32
    return %c0_i32, %c0_i32_0 : i32, i32
  }
}

</mosaic_0001>

<llo_original>
// kernel: _lambda_.1
$region0: #{_lambda_.1}
  #allocation0 [shape = 'u32[]', space=smem, size = 0x4, offset = 0x4, fixed_abs, tag = 'smem constant byte address 0x4 - core index']
  #allocation1 [shape = 'u32[72,128]{1,0:T(1,128)}', space=vmem, size = 0x9000, scoped, tag = 'internal scratch']
  #allocation2 [shape = 'f32[128,27]{1,0:T(8,128)}', space=vmem, size = 0x10000, scoped, tag = 'scratch operand']
  #allocation3 [shape = 'f32[32,108]{1,0:T(8,128)}', space=vmem, size = 0x4000, scoped, tag = 'scratch operand']
  #allocation4 [shape = 'f32[32,144]{1,0:T(8,128)}', space=vmem, size = 0x8000, scoped, tag = 'scratch operand']
  #allocation5 [shape = 'f32[32,144]{1,0:T(8,128)}', space=vmem, size = 0x8000, scoped, tag = 'scratch operand']
  %s0 = inlined_call_operand.vmem [shape: f32[512,3], index: 0, kind: input, shape index: {}]
  %s1 = inlined_call_operand.hbm [shape: bf16[1152,512], index: 1, kind: input, shape index: {}]
  %s2 = inlined_call_operand.hbm [shape: bf16[27,12], index: 2, kind: input, shape index: {}]
  %s3 = inlined_call_operand.hbm [shape: f32[1,12], index: 3, kind: input, shape index: {}]
  %s4 = inlined_call_operand.hbm [shape: bf16[288,128], index: 4, kind: input, shape index: {}]
  %s5 = inlined_call_operand.hbm [shape: bf16[108,16], index: 5, kind: input, shape index: {}]
  %s6 = inlined_call_operand.hbm [shape: f32[1,16], index: 6, kind: input, shape index: {}]
  %s7 = inlined_call_operand.hbm [shape: f32[9,32,1], index: 7, kind: input, shape index: {}, may-alias: {7,10}]
  %s8 = inlined_call_operand.hbm [shape: bf16[144,16], index: 8, kind: input, shape index: {}]
  %s9 = inlined_call_operand.hbm [shape: f32[1,16], index: 9, kind: input, shape index: {}]
  %s10 = inlined_call_operand.hbm [shape: f32[9,32,1], index: 10, kind: input, shape index: {}, may-alias: {7,10}]
  %s11 = inlined_call_operand.hbm [shape: bf16[144,3], index: 11, kind: input, shape index: {}]
  %s12 = inlined_call_operand.hbm [shape: f32[1,3], index: 12, kind: input, shape index: {}]
  %s13 = inlined_call_operand.vmem [shape: f32[32,3], index: 13, kind: output, shape index: {}]
  %s14 = sld [smem:[#allocation0]]
  $region110: #{_lambda_.1} parent=0
    _
  %s16 = ssub.s32 1, %s14
  %s17 = scalar_select 0, %s16, %s14
  $region1: #{_lambda_.1} parent=0
    #allocation6 [shape = 'u8[1179648]{0}', space=vmem, size = 0x120000, scoped, tag = 'input window, operand 1, single buffered']
    #allocation7 [shape = 's32[1]{0}', space=sflag, size = 0x4, scoped, tag = 'scoped memory for _lambda_.1']
    #allocation8 [shape = 'u8[8192]{0}', space=vmem, size = 0x2000, scoped, tag = 'input window, operand 2, single buffered']
    #allocation9 [shape = 's32[1]{0}', space=sflag, size = 0x4, scoped, tag = 'scoped memory for _lambda_.1']
    #allocation10 [shape = 'u8[512]{0}', space=vmem, size = 0x400, scoped, tag = 'input window, operand 3, single buffered']
    #allocation11 [shape = 'u8[73728]{0}', space=vmem, size = 0x12000, scoped, tag = 'input window, operand 4, single buffered']
    #allocation12 [shape = 's32[1]{0}', space=sflag, size = 0x4, scoped, tag = 'scoped memory for _lambda_.1']
    #allocation13 [shape = 'u8[28672]{0}', space=vmem, size = 0x7000, scoped, tag = 'input window, operand 5, single buffered']
    #allocation14 [shape = 'u8[512]{0}', space=vmem, size = 0x400, scoped, tag = 'input window, operand 6, single buffered']
    #allocation15 [shape = 's32[1]{0}', space=sflag, size = 0x4, scoped, tag = 'scoped memory for _lambda_.1']
    #allocation16 [shape = 'u8[147456]{0}', space=vmem, size = 0x24000, scoped, tag = 'input window, operand 7, single buffered']
    #allocation17 [shape = 'u8[36864]{0}', space=vmem, size = 0x9000, scoped, tag = 'input window, operand 8, single buffered']
    #allocation18 [shape = 's32[1]{0}', space=sflag, size = 0x4, scoped, tag = 'scoped memory for _lambda_.1']
    #allocation19 [shape = 'u8[512]{0}', space=vmem, size = 0x400, scoped, tag = 'input window, operand 9, single buffered']
    #allocation20 [shape = 'u8[147456]{0}', space=vmem, size = 0x24000, scoped, tag = 'input window, operand 10, single buffered']
    #allocation21 [shape = 's32[1]{0}', space=sflag, size = 0x4, scoped, tag = 'scoped memory for _lambda_.1']
    #allocation22 [shape = 'u8[36864]{0}', space=vmem, size = 0x9000, scoped, tag = 'input window, operand 11, single buffered']
    #allocation23 [shape = 'u8[512]{0}', space=vmem, size = 0x400, scoped, tag = 'input window, operand 12, single buffered']
    #allocation24 [shape = 's32[1]{0}', space=sflag, size = 0x4, scoped, tag = 'scoped memory for _lambda_.1']
    %18 = vsyncpa [#allocation7], 0
    %19 = vsyncpa [#allocation9], 0
    %20 = vsyncpa [#allocation12], 0
    %21 = vsyncpa [#allocation15], 0
    %22 = vsyncpa [#allocation18], 0
    %23 = vsyncpa [#allocation21], 0
    %24 = vsyncpa [#allocation24], 0
    // Predicated region
    $region2: #{_lambda_.1} parent=1 // pred_check
      _
    $region3: #{_lambda_.1} parent=1 // pred_check_branch
      %26 = sbr.rel (0) target = $region5
    $region4: #{_lambda_.1} parent=1 // pred_region
      _
    $region5: #{_lambda_.1} parent=1 // pred_fallthru
      _
    // Predicated region
    $region6: #{_lambda_.1} parent=1 // pred_check
      _
    $region7: #{_lambda_.1} parent=1 // pred_check_branch
      %28 = sbr.rel (0) target = $region9
    $region8: #{_lambda_.1} parent=1 // pred_region
      %30 = vsyncadd [#allocation7], 0
      %s31 = sshll.u32 %s1, 4
      %s32 = int_to_ptr.hbm [resolvable:$true] %s31
      %s33 = sshll.u32 [#allocation6], 4
      %s34 = int_to_ptr.vmem [resolvable:$true] %s33
      %39 = dma.hbm_to_vmem [thread:$0]  %s32, 36864, %s34, [#allocation7], 256, 256, 16
    $region9: #{_lambda_.1} parent=1 // pred_fallthru
      _
    // Predicated region
    $region10: #{_lambda_.1} parent=1 // pred_check
      _
    $region11: #{_lambda_.1} parent=1 // pred_check_branch
      %41 = sbr.rel (0) target = $region13
    $region12: #{_lambda_.1} parent=1 // pred_region
      %43 = vsyncadd [#allocation9], 0
      %s44 = sshll.u32 %s2, 4
      %s45 = int_to_ptr.hbm [resolvable:$true] %s44
      %s46 = sshll.u32 [#allocation8], 4
      %s47 = int_to_ptr.vmem [resolvable:$true] %s46
      %52 = dma.hbm_to_vmem [thread:$0]  %s45, 256, %s47, [#allocation9], 64, 64, 4
    $region13: #{_lambda_.1} parent=1 // pred_fallthru
      _
    // Predicated region
    $region14: #{_lambda_.1} parent=1 // pred_check
      _
    $region15: #{_lambda_.1} parent=1 // pred_check_branch
      %54 = sbr.rel (0) target = $region17
    $region16: #{_lambda_.1} parent=1 // pred_region
      %56 = vsyncadd [#allocation9], 0
      %s58 = sshll.u32 %s3, 4
      %s59 = int_to_ptr.hbm [resolvable:$true] %s58
      %s60 = sshll.u32 [#allocation10], 4
      %s61 = int_to_ptr.vmem [resolvable:$true] %s60
      %63 = dma.hbm_to_vmem [thread:$0]  %s59, 16, %s61, [#allocation9]
    $region17: #{_lambda_.1} parent=1 // pred_fallthru
      _
    // Predicated region
    $region18: #{_lambda_.1} parent=1 // pred_check
      _
    $region19: #{_lambda_.1} parent=1 // pred_check_branch
      %65 = sbr.rel (0) target = $region21
    $region20: #{_lambda_.1} parent=1 // pred_region
      %67 = vsyncadd [#allocation12], 0
      %s68 = sshll.u32 %s4, 4
      %s69 = int_to_ptr.hbm [resolvable:$true] %s68
      %s70 = sshll.u32 [#allocation11], 4
      %s71 = int_to_ptr.vmem [resolvable:$true] %s70
      %76 = dma.hbm_to_vmem [thread:$0]  %s69, 2304, %s71, [#allocation12], 64, 64, 4
    $region21: #{_lambda_.1} parent=1 // pred_fallthru
      _
    // Predicated region
    $region22: #{_lambda_.1} parent=1 // pred_check
      _
    $region23: #{_lambda_.1} parent=1 // pred_check_branch
      %78 = sbr.rel (0) target = $region25
    $region24: #{_lambda_.1} parent=1 // pred_region
      %80 = vsyncadd [#allocation12], 0
      %s81 = sshll.u32 %s5, 4
      %s82 = int_to_ptr.hbm [resolvable:$true] %s81
      %s83 = sshll.u32 [#allocation13], 4
      %s84 = int_to_ptr.vmem [resolvable:$true] %s83
      %89 = dma.hbm_to_vmem [thread:$0]  %s82, 896, %s84, [#allocation12], 64, 64, 4
    $region25: #{_lambda_.1} parent=1 // pred_fallthru
      _
    // Predicated region
    $region26: #{_lambda_.1} parent=1 // pred_check
      _
    $region27: #{_lambda_.1} parent=1 // pred_check_branch
      %91 = sbr.rel (0) target = $region29
    $region28: #{_lambda_.1} parent=1 // pred_region
      %93 = vsyncadd [#allocation15], 0
      %s95 = sshll.u32 %s6, 4
      %s96 = int_to_ptr.hbm [resolvable:$true] %s95
      %s97 = sshll.u32 [#allocation14], 4
      %s98 = int_to_ptr.vmem [resolvable:$true] %s97
      %100 = dma.hbm_to_vmem [thread:$0]  %s96, 16, %s98, [#allocation15]
    $region29: #{_lambda_.1} parent=1 // pred_fallthru
      _
    // Predicated region
    $region30: #{_lambda_.1} parent=1 // pred_check
      _
    $region31: #{_lambda_.1} parent=1 // pred_check_branch
      %102 = sbr.rel (0) target = $region33
    $region32: #{_lambda_.1} parent=1 // pred_region
      %104 = vsyncadd [#allocation15], 0
      %s105 = sshll.u32 %s7, 4
      %s106 = int_to_ptr.hbm [resolvable:$true] %s105
      %s107 = sshll.u32 [#allocation16], 4
      %s108 = int_to_ptr.vmem [resolvable:$true] %s107
      %113 = dma.hbm_to_vmem [thread:$0]  %s106, 4608, %s108, [#allocation15], 128, 128, 8
    $region33: #{_lambda_.1} parent=1 // pred_fallthru
      _
    // Predicated region
    $region34: #{_lambda_.1} parent=1 // pred_check
      _
    $region35: #{_lambda_.1} parent=1 // pred_check_branch
      %115 = sbr.rel (0) target = $region37
    $region36: #{_lambda_.1} parent=1 // pred_region
      %117 = vsyncadd [#allocation18], 0
      %s118 = sshll.u32 %s8, 4
      %s119 = int_to_ptr.hbm [resolvable:$true] %s118
      %s120 = sshll.u32 [#allocation17], 4
      %s121 = int_to_ptr.vmem [resolvable:$true] %s120
      %126 = dma.hbm_to_vmem [thread:$0]  %s119, 1152, %s121, [#allocation18], 64, 64, 4
    $region37: #{_lambda_.1} parent=1 // pred_fallthru
      _
    // Predicated region
    $region38: #{_lambda_.1} parent=1 // pred_check
      _
    $region39: #{_lambda_.1} parent=1 // pred_check_branch
      %128 = sbr.rel (0) target = $region41
    $region40: #{_lambda_.1} parent=1 // pred_region
      %130 = vsyncadd [#allocation18], 0
      %s132 = sshll.u32 %s9, 4
      %s133 = int_to_ptr.hbm [resolvable:$true] %s132
      %s134 = sshll.u32 [#allocation19], 4
      %s135 = int_to_ptr.vmem [resolvable:$true] %s134
      %137 = dma.hbm_to_vmem [thread:$0]  %s133, 16, %s135, [#allocation18]
    $region41: #{_lambda_.1} parent=1 // pred_fallthru
      _
    // Predicated region
    $region42: #{_lambda_.1} parent=1 // pred_check
      _
    $region43: #{_lambda_.1} parent=1 // pred_check_branch
      %139 = sbr.rel (0) target = $region45
    $region44: #{_lambda_.1} parent=1 // pred_region
      %141 = vsyncadd [#allocation21], 0
      %s142 = sshll.u32 %s10, 4
      %s143 = int_to_ptr.hbm [resolvable:$true] %s142
      %s144 = sshll.u32 [#allocation20], 4
      %s145 = int_to_ptr.vmem [resolvable:$true] %s144
      %150 = dma.hbm_to_vmem [thread:$0]  %s143, 4608, %s145, [#allocation21], 128, 128, 8
    $region45: #{_lambda_.1} parent=1 // pred_fallthru
      _
    // Predicated region
    $region46: #{_lambda_.1} parent=1 // pred_check
      _
    $region47: #{_lambda_.1} parent=1 // pred_check_branch
      %152 = sbr.rel (0) target = $region49
    $region48: #{_lambda_.1} parent=1 // pred_region
      %154 = vsyncadd [#allocation21], 0
      %s155 = sshll.u32 %s11, 4
      %s156 = int_to_ptr.hbm [resolvable:$true] %s155
      %s157 = sshll.u32 [#allocation22], 4
      %s158 = int_to_ptr.vmem [resolvable:$true] %s157
      %163 = dma.hbm_to_vmem [thread:$0]  %s156, 1152, %s158, [#allocation21], 64, 64, 4
    $region49: #{_lambda_.1} parent=1 // pred_fallthru
      _
    // Predicated region
    $region50: #{_lambda_.1} parent=1 // pred_check
      _
    $region51: #{_lambda_.1} parent=1 // pred_check_branch
      %165 = sbr.rel (0) target = $region53
    $region52: #{_lambda_.1} parent=1 // pred_region
      %167 = vsyncadd [#allocation24], 0
      %s169 = sshll.u32 %s12, 4
      %s170 = int_to_ptr.hbm [resolvable:$true] %s169
      %s171 = sshll.u32 [#allocation23], 4
      %s172 = int_to_ptr.vmem [resolvable:$true] %s171
      %174 = dma.hbm_to_vmem [thread:$0]  %s170, 16, %s172, [#allocation24]
    $region53: #{_lambda_.1} parent=1 // pred_fallthru
      _
    // Predicated region
    $region54: #{_lambda_.1} parent=1 // pred_check
      _
    $region55: #{_lambda_.1} parent=1 // pred_check_branch
      %176 = sbr.rel (0) target = $region57
    $region56: #{_lambda_.1} parent=1 // pred_region
      %178 = dma.done [#allocation7], 36864
    $region57: #{_lambda_.1} parent=1 // pred_fallthru
      _
    // Predicated region
    $region58: #{_lambda_.1} parent=1 // pred_check
      _
    $region59: #{_lambda_.1} parent=1 // pred_check_branch
      %180 = sbr.rel (0) target = $region61
    $region60: #{_lambda_.1} parent=1 // pred_region
      %182 = dma.done [#allocation9], 256
    $region61: #{_lambda_.1} parent=1 // pred_fallthru
      _
    // Predicated region
    $region62: #{_lambda_.1} parent=1 // pred_check
      _
    $region63: #{_lambda_.1} parent=1 // pred_check_branch
      %184 = sbr.rel (0) target = $region65
    $region64: #{_lambda_.1} parent=1 // pred_region
      %186 = dma.done [#allocation9], 16
    $region65: #{_lambda_.1} parent=1 // pred_fallthru
      _
    // Predicated region
    $region66: #{_lambda_.1} parent=1 // pred_check
      _
    $region67: #{_lambda_.1} parent=1 // pred_check_branch
      %188 = sbr.rel (0) target = $region69
    $region68: #{_lambda_.1} parent=1 // pred_region
      %190 = dma.done [#allocation12], 2304
    $region69: #{_lambda_.1} parent=1 // pred_fallthru
      _
    // Predicated region
    $region70: #{_lambda_.1} parent=1 // pred_check
      _
    $region71: #{_lambda_.1} parent=1 // pred_check_branch
      %192 = sbr.rel (0) target = $region73
    $region72: #{_lambda_.1} parent=1 // pred_region
      %194 = dma.done [#allocation12], 896
    $region73: #{_lambda_.1} parent=1 // pred_fallthru
      _
    // Predicated region
    $region74: #{_lambda_.1} parent=1 // pred_check
      _
    $region75: #{_lambda_.1} parent=1 // pred_check_branch
      %196 = sbr.rel (0) target = $region77
    $region76: #{_lambda_.1} parent=1 // pred_region
      %198 = dma.done [#allocation15], 16
    $region77: #{_lambda_.1} parent=1 // pred_fallthru
      _
    // Predicated region
    $region78: #{_lambda_.1} parent=1 // pred_check
      _
    $region79: #{_lambda_.1} parent=1 // pred_check_branch
      %200 = sbr.rel (0) target = $region81
    $region80: #{_lambda_.1} parent=1 // pred_region
      %202 = dma.done [#allocation15], 4608
    $region81: #{_lambda_.1} parent=1 // pred_fallthru
      _
    // Predicated region
    $region82: #{_lambda_.1} parent=1 // pred_check
      _
    $region83: #{_lambda_.1} parent=1 // pred_check_branch
      %204 = sbr.rel (0) target = $region85
    $region84: #{_lambda_.1} parent=1 // pred_region
      %206 = dma.done [#allocation18], 1152
    $region85: #{_lambda_.1} parent=1 // pred_fallthru
      _
    // Predicated region
    $region86: #{_lambda_.1} parent=1 // pred_check
      _
    $region87: #{_lambda_.1} parent=1 // pred_check_branch
      %208 = sbr.rel (0) target = $region89
    $region88: #{_lambda_.1} parent=1 // pred_region
      %210 = dma.done [#allocation18], 16
    $region89: #{_lambda_.1} parent=1 // pred_fallthru
      _
    // Predicated region
    $region90: #{_lambda_.1} parent=1 // pred_check
      _
    $region91: #{_lambda_.1} parent=1 // pred_check_branch
      %212 = sbr.rel (0) target = $region93
    $region92: #{_lambda_.1} parent=1 // pred_region
      %214 = dma.done [#allocation21], 4608
    $region93: #{_lambda_.1} parent=1 // pred_fallthru
      _
    // Predicated region
    $region94: #{_lambda_.1} parent=1 // pred_check
      _
    $region95: #{_lambda_.1} parent=1 // pred_check_branch
      %216 = sbr.rel (0) target = $region97
    $region96: #{_lambda_.1} parent=1 // pred_region
      %218 = dma.done [#allocation21], 1152
    $region97: #{_lambda_.1} parent=1 // pred_fallthru
      _
    // Predicated region
    $region98: #{_lambda_.1} parent=1 // pred_check
      _
    $region99: #{_lambda_.1} parent=1 // pred_check_branch
      %220 = sbr.rel (0) target = $region101
    $region100: #{_lambda_.1} parent=1 // pred_region
      %222 = dma.done [#allocation24], 16
    $region101: #{_lambda_.1} parent=1 // pred_fallthru
      _
    %v224 = vld [vmem:[%s0] sm:$0xff]
    %v225 = vld [vmem:[%s0 + $0x8] sm:$0xff]
    %v226 = vld [vmem:[%s0 + $0x10] sm:$0xff]
    %v227 = vld [vmem:[%s0 + $0x18] sm:$0xff]
    %v228 = vld [vmem:[%s0 + $0x20] sm:$0xff]
    %v229 = vld [vmem:[%s0 + $0x28] sm:$0xff]
    %v230 = vld [vmem:[%s0 + $0x30] sm:$0xff]
    %v231 = vld [vmem:[%s0 + $0x38] sm:$0xff]
    %v232 = vld [vmem:[%s0 + $0x40] sm:$0xff]
    %v233 = vld [vmem:[%s0 + $0x48] sm:$0xff]
    %v234 = vld [vmem:[%s0 + $0x50] sm:$0xff]
    %v235 = vld [vmem:[%s0 + $0x58] sm:$0xff]
    %v236 = vld [vmem:[%s0 + $0x60] sm:$0xff]
    %v237 = vld [vmem:[%s0 + $0x68] sm:$0xff]
    %v238 = vld [vmem:[%s0 + $0x70] sm:$0xff]
    %v239 = vld [vmem:[%s0 + $0x78] sm:$0xff]
    %v240 = vld [vmem:[%s0 + $0x80] sm:$0xff]
    %v241 = vld [vmem:[%s0 + $0x88] sm:$0xff]
    %v242 = vld [vmem:[%s0 + $0x90] sm:$0xff]
    %v243 = vld [vmem:[%s0 + $0x98] sm:$0xff]
    %v244 = vld [vmem:[%s0 + $0xa0] sm:$0xff]
    %v245 = vld [vmem:[%s0 + $0xa8] sm:$0xff]
    %v246 = vld [vmem:[%s0 + $0xb0] sm:$0xff]
    %v247 = vld [vmem:[%s0 + $0xb8] sm:$0xff]
    %v248 = vld [vmem:[%s0 + $0xc0] sm:$0xff]
    %v249 = vld [vmem:[%s0 + $0xc8] sm:$0xff]
    %v250 = vld [vmem:[%s0 + $0xd0] sm:$0xff]
    %v251 = vld [vmem:[%s0 + $0xd8] sm:$0xff]
    %v252 = vld [vmem:[%s0 + $0xe0] sm:$0xff]
    %v253 = vld [vmem:[%s0 + $0xe8] sm:$0xff]
    %v254 = vld [vmem:[%s0 + $0xf0] sm:$0xff]
    %v255 = vld [vmem:[%s0 + $0xf8] sm:$0xff]
    %v256 = vld [vmem:[%s0 + $0x100] sm:$0xff]
    %v257 = vld [vmem:[%s0 + $0x108] sm:$0xff]
    %v258 = vld [vmem:[%s0 + $0x110] sm:$0xff]
    %v259 = vld [vmem:[%s0 + $0x118] sm:$0xff]
    %v260 = vld [vmem:[%s0 + $0x120] sm:$0xff]
    %v261 = vld [vmem:[%s0 + $0x128] sm:$0xff]
    %v262 = vld [vmem:[%s0 + $0x130] sm:$0xff]
    %v263 = vld [vmem:[%s0 + $0x138] sm:$0xff]
    %v264 = vld [vmem:[%s0 + $0x140] sm:$0xff]
    %v265 = vld [vmem:[%s0 + $0x148] sm:$0xff]
    %v266 = vld [vmem:[%s0 + $0x150] sm:$0xff]
    %v267 = vld [vmem:[%s0 + $0x158] sm:$0xff]
    %v268 = vld [vmem:[%s0 + $0x160] sm:$0xff]
    %v269 = vld [vmem:[%s0 + $0x168] sm:$0xff]
    %v270 = vld [vmem:[%s0 + $0x170] sm:$0xff]
    %v271 = vld [vmem:[%s0 + $0x178] sm:$0xff]
    %v272 = vld [vmem:[%s0 + $0x180] sm:$0xff]
    %v273 = vld [vmem:[%s0 + $0x188] sm:$0xff]
    %v274 = vld [vmem:[%s0 + $0x190] sm:$0xff]
    %v275 = vld [vmem:[%s0 + $0x198] sm:$0xff]
    %v276 = vld [vmem:[%s0 + $0x1a0] sm:$0xff]
    %v277 = vld [vmem:[%s0 + $0x1a8] sm:$0xff]
    %v278 = vld [vmem:[%s0 + $0x1b0] sm:$0xff]
    %v279 = vld [vmem:[%s0 + $0x1b8] sm:$0xff]
    %v280 = vld [vmem:[%s0 + $0x1c0] sm:$0xff]
    %v281 = vld [vmem:[%s0 + $0x1c8] sm:$0xff]
    %v282 = vld [vmem:[%s0 + $0x1d0] sm:$0xff]
    %v283 = vld [vmem:[%s0 + $0x1d8] sm:$0xff]
    %v284 = vld [vmem:[%s0 + $0x1e0] sm:$0xff]
    %v285 = vld [vmem:[%s0 + $0x1e8] sm:$0xff]
    %v286 = vld [vmem:[%s0 + $0x1f0] sm:$0xff]
    %v287 = vld [vmem:[%s0 + $0x1f8] sm:$0xff]
    %v288 = vld [vmem:[#allocation6] sm:$0xff]
    %v289 = vld [vmem:[#allocation6 + $0x8] sm:$0xff]
    %v290 = vld [vmem:[#allocation6 + $0x10] sm:$0xff]
    %v291 = vld [vmem:[#allocation6 + $0x18] sm:$0xff]
    %v292 = vld [vmem:[#allocation6 + $0x20] sm:$0xff]
    %v293 = vld [vmem:[#allocation6 + $0x28] sm:$0xff]
    %v294 = vld [vmem:[#allocation6 + $0x30] sm:$0xff]
    %v295 = vld [vmem:[#allocation6 + $0x38] sm:$0xff]
    %v296 = vld [vmem:[#allocation6 + $0x40] sm:$0xff]
    %v297 = vld [vmem:[#allocation6 + $0x48] sm:$0xff]
    %v298 = vld [vmem:[#allocation6 + $0x50] sm:$0xff]
    %v299 = vld [vmem:[#allocation6 + $0x58] sm:$0xff]
    %v300 = vld [vmem:[#allocation6 + $0x60] sm:$0xff]
    %v301 = vld [vmem:[#allocation6 + $0x68] sm:$0xff]
    %v302 = vld [vmem:[#allocation6 + $0x70] sm:$0xff]
    %v303 = vld [vmem:[#allocation6 + $0x78] sm:$0xff]
    %v304 = vld [vmem:[#allocation6 + $0x80] sm:$0xff]
    %v305 = vld [vmem:[#allocation6 + $0x88] sm:$0xff]
    %v306 = vld [vmem:[#allocation6 + $0x90] sm:$0xff]
    %v307 = vld [vmem:[#allocation6 + $0x98] sm:$0xff]
    %v308 = vld [vmem:[#allocation6 + $0xa0] sm:$0xff]
    %v309 = vld [vmem:[#allocation6 + $0xa8] sm:$0xff]
    %v310 = vld [vmem:[#allocation6 + $0xb0] sm:$0xff]
    %v311 = vld [vmem:[#allocation6 + $0xb8] sm:$0xff]
    %v312 = vld [vmem:[#allocation6 + $0xc0] sm:$0xff]
    %v313 = vld [vmem:[#allocation6 + $0xc8] sm:$0xff]
    %v314 = vld [vmem:[#allocation6 + $0xd0] sm:$0xff]
    %v315 = vld [vmem:[#allocation6 + $0xd8] sm:$0xff]
    %v316 = vld [vmem:[#allocation6 + $0xe0] sm:$0xff]
    %v317 = vld [vmem:[#allocation6 + $0xe8] sm:$0xff]
    %v318 = vld [vmem:[#allocation6 + $0xf0] sm:$0xff]
    %v319 = vld [vmem:[#allocation6 + $0xf8] sm:$0xff]
    %v320 = vld [vmem:[#allocation6 + $0x100] sm:$0xff]
    %v321 = vld [vmem:[#allocation6 + $0x108] sm:$0xff]
    %v322 = vld [vmem:[#allocation6 + $0x110] sm:$0xff]
    %v323 = vld [vmem:[#allocation6 + $0x118] sm:$0xff]
    %v324 = vld [vmem:[#allocation6 + $0x120] sm:$0xff]
    %v325 = vld [vmem:[#allocation6 + $0x128] sm:$0xff]
    %v326 = vld [vmem:[#allocation6 + $0x130] sm:$0xff]
    %v327 = vld [vmem:[#allocation6 + $0x138] sm:$0xff]
    %v328 = vld [vmem:[#allocation6 + $0x140] sm:$0xff]
    %v329 = vld [vmem:[#allocation6 + $0x148] sm:$0xff]
    %v330 = vld [vmem:[#allocation6 + $0x150] sm:$0xff]
    %v331 = vld [vmem:[#allocation6 + $0x158] sm:$0xff]
    %v332 = vld [vmem:[#allocation6 + $0x160] sm:$0xff]
    %v333 = vld [vmem:[#allocation6 + $0x168] sm:$0xff]
    %v334 = vld [vmem:[#allocation6 + $0x170] sm:$0xff]
    %v335 = vld [vmem:[#allocation6 + $0x178] sm:$0xff]
    %v336 = vld [vmem:[#allocation6 + $0x180] sm:$0xff]
    %v337 = vld [vmem:[#allocation6 + $0x188] sm:$0xff]
    %v338 = vld [vmem:[#allocation6 + $0x190] sm:$0xff]
    %v339 = vld [vmem:[#allocation6 + $0x198] sm:$0xff]
    %v340 = vld [vmem:[#allocation6 + $0x1a0] sm:$0xff]
    %v341 = vld [vmem:[#allocation6 + $0x1a8] sm:$0xff]
    %v342 = vld [vmem:[#allocation6 + $0x1b0] sm:$0xff]
    %v343 = vld [vmem:[#allocation6 + $0x1b8] sm:$0xff]
    %v344 = vld [vmem:[#allocation6 + $0x1c0] sm:$0xff]
    %v345 = vld [vmem:[#allocation6 + $0x1c8] sm:$0xff]
    %v346 = vld [vmem:[#allocation6 + $0x1d0] sm:$0xff]
    %v347 = vld [vmem:[#allocation6 + $0x1d8] sm:$0xff]
    %v348 = vld [vmem:[#allocation6 + $0x1e0] sm:$0xff]
    %v349 = vld [vmem:[#allocation6 + $0x1e8] sm:$0xff]
    %v350 = vld [vmem:[#allocation6 + $0x1f0] sm:$0xff]
    %v351 = vld [vmem:[#allocation6 + $0x1f8] sm:$0xff]
    %v352 = vld [vmem:[#allocation6 + $0x200] sm:$0xff]
    %v353 = vld [vmem:[#allocation6 + $0x208] sm:$0xff]
    %v354 = vld [vmem:[#allocation6 + $0x210] sm:$0xff]
    %v355 = vld [vmem:[#allocation6 + $0x218] sm:$0xff]
    %v356 = vld [vmem:[#allocation6 + $0x220] sm:$0xff]
    %v357 = vld [vmem:[#allocation6 + $0x228] sm:$0xff]
    %v358 = vld [vmem:[#allocation6 + $0x230] sm:$0xff]
    %v359 = vld [vmem:[#allocation6 + $0x238] sm:$0xff]
    %v360 = vld [vmem:[#allocation6 + $0x240] sm:$0xff]
    %v361 = vld [vmem:[#allocation6 + $0x248] sm:$0xff]
    %v362 = vld [vmem:[#allocation6 + $0x250] sm:$0xff]
    %v363 = vld [vmem:[#allocation6 + $0x258] sm:$0xff]
    %v364 = vld [vmem:[#allocation6 + $0x260] sm:$0xff]
    %v365 = vld [vmem:[#allocation6 + $0x268] sm:$0xff]
    %v366 = vld [vmem:[#allocation6 + $0x270] sm:$0xff]
    %v367 = vld [vmem:[#allocation6 + $0x278] sm:$0xff]
    %v368 = vld [vmem:[#allocation6 + $0x280] sm:$0xff]
    %v369 = vld [vmem:[#allocation6 + $0x288] sm:$0xff]
    %v370 = vld [vmem:[#allocation6 + $0x290] sm:$0xff]
    %v371 = vld [vmem:[#allocation6 + $0x298] sm:$0xff]
    %v372 = vld [vmem:[#allocation6 + $0x2a0] sm:$0xff]
    %v373 = vld [vmem:[#allocation6 + $0x2a8] sm:$0xff]
    %v374 = vld [vmem:[#allocation6 + $0x2b0] sm:$0xff]
    %v375 = vld [vmem:[#allocation6 + $0x2b8] sm:$0xff]
    %v376 = vld [vmem:[#allocation6 + $0x2c0] sm:$0xff]
    %v377 = vld [vmem:[#allocation6 + $0x2c8] sm:$0xff]
    %v378 = vld [vmem:[#allocation6 + $0x2d0] sm:$0xff]
    %v379 = vld [vmem:[#allocation6 + $0x2d8] sm:$0xff]
    %v380 = vld [vmem:[#allocation6 + $0x2e0] sm:$0xff]
    %v381 = vld [vmem:[#allocation6 + $0x2e8] sm:$0xff]
    %v382 = vld [vmem:[#allocation6 + $0x2f0] sm:$0xff]
    %v383 = vld [vmem:[#allocation6 + $0x2f8] sm:$0xff]
    %v384 = vld [vmem:[#allocation6 + $0x300] sm:$0xff]
    %v385 = vld [vmem:[#allocation6 + $0x308] sm:$0xff]
    %v386 = vld [vmem:[#allocation6 + $0x310] sm:$0xff]
    %v387 = vld [vmem:[#allocation6 + $0x318] sm:$0xff]
    %v388 = vld [vmem:[#allocation6 + $0x320] sm:$0xff]
    %v389 = vld [vmem:[#allocation6 + $0x328] sm:$0xff]
    %v390 = vld [vmem:[#allocation6 + $0x330] sm:$0xff]
    %v391 = vld [vmem:[#allocation6 + $0x338] sm:$0xff]
    %v392 = vld [vmem:[#allocation6 + $0x340] sm:$0xff]
    %v393 = vld [vmem:[#allocation6 + $0x348] sm:$0xff]
    %v394 = vld [vmem:[#allocation6 + $0x350] sm:$0xff]
    %v395 = vld [vmem:[#allocation6 + $0x358] sm:$0xff]
    %v396 = vld [vmem:[#allocation6 + $0x360] sm:$0xff]
    %v397 = vld [vmem:[#allocation6 + $0x368] sm:$0xff]
    %v398 = vld [vmem:[#allocation6 + $0x370] sm:$0xff]
    %v399 = vld [vmem:[#allocation6 + $0x378] sm:$0xff]
    %v400 = vld [vmem:[#allocation6 + $0x380] sm:$0xff]
    %v401 = vld [vmem:[#allocation6 + $0x388] sm:$0xff]
    %v402 = vld [vmem:[#allocation6 + $0x390] sm:$0xff]
    %v403 = vld [vmem:[#allocation6 + $0x398] sm:$0xff]
    %v404 = vld [vmem:[#allocation6 + $0x3a0] sm:$0xff]
    %v405 = vld [vmem:[#allocation6 + $0x3a8] sm:$0xff]
    %v406 = vld [vmem:[#allocation6 + $0x3b0] sm:$0xff]
    %v407 = vld [vmem:[#allocation6 + $0x3b8] sm:$0xff]
    %v408 = vld [vmem:[#allocation6 + $0x3c0] sm:$0xff]
    %v409 = vld [vmem:[#allocation6 + $0x3c8] sm:$0xff]
    %v410 = vld [vmem:[#allocation6 + $0x3d0] sm:$0xff]
    %v411 = vld [vmem:[#allocation6 + $0x3d8] sm:$0xff]
    %v412 = vld [vmem:[#allocation6 + $0x3e0] sm:$0xff]
    %v413 = vld [vmem:[#allocation6 + $0x3e8] sm:$0xff]
    %v414 = vld [vmem:[#allocation6 + $0x3f0] sm:$0xff]
    %v415 = vld [vmem:[#allocation6 + $0x3f8] sm:$0xff]
    %v416 = vld [vmem:[#allocation6 + $0x400] sm:$0xff]
    %v417 = vld [vmem:[#allocation6 + $0x408] sm:$0xff]
    %v418 = vld [vmem:[#allocation6 + $0x410] sm:$0xff]
    %v419 = vld [vmem:[#allocation6 + $0x418] sm:$0xff]
    %v420 = vld [vmem:[#allocation6 + $0x420] sm:$0xff]
    %v421 = vld [vmem:[#allocation6 + $0x428] sm:$0xff]
    %v422 = vld [vmem:[#allocation6 + $0x430] sm:$0xff]
    %v423 = vld [vmem:[#allocation6 + $0x438] sm:$0xff]
    %v424 = vld [vmem:[#allocation6 + $0x440] sm:$0xff]
    %v425 = vld [vmem:[#allocation6 + $0x448] sm:$0xff]
    %v426 = vld [vmem:[#allocation6 + $0x450] sm:$0xff]
    %v427 = vld [vmem:[#allocation6 + $0x458] sm:$0xff]
    %v428 = vld [vmem:[#allocation6 + $0x460] sm:$0xff]
    %v429 = vld [vmem:[#allocation6 + $0x468] sm:$0xff]
    %v430 = vld [vmem:[#allocation6 + $0x470] sm:$0xff]
    %v431 = vld [vmem:[#allocation6 + $0x478] sm:$0xff]
    %v432 = vld [vmem:[#allocation6 + $0x480] sm:$0xff]
    %v433 = vld [vmem:[#allocation6 + $0x488] sm:$0xff]
    %v434 = vld [vmem:[#allocation6 + $0x490] sm:$0xff]
    %v435 = vld [vmem:[#allocation6 + $0x498] sm:$0xff]
    %v436 = vld [vmem:[#allocation6 + $0x4a0] sm:$0xff]
    %v437 = vld [vmem:[#allocation6 + $0x4a8] sm:$0xff]
    %v438 = vld [vmem:[#allocation6 + $0x4b0] sm:$0xff]
    %v439 = vld [vmem:[#allocation6 + $0x4b8] sm:$0xff]
    %v440 = vld [vmem:[#allocation6 + $0x4c0] sm:$0xff]
    %v441 = vld [vmem:[#allocation6 + $0x4c8] sm:$0xff]
    %v442 = vld [vmem:[#allocation6 + $0x4d0] sm:$0xff]
    %v443 = vld [vmem:[#allocation6 + $0x4d8] sm:$0xff]
    %v444 = vld [vmem:[#allocation6 + $0x4e0] sm:$0xff]
    %v445 = vld [vmem:[#allocation6 + $0x4e8] sm:$0xff]
    %v446 = vld [vmem:[#allocation6 + $0x4f0] sm:$0xff]
    %v447 = vld [vmem:[#allocation6 + $0x4f8] sm:$0xff]
    %v448 = vld [vmem:[#allocation6 + $0x500] sm:$0xff]
    %v449 = vld [vmem:[#allocation6 + $0x508] sm:$0xff]
    %v450 = vld [vmem:[#allocation6 + $0x510] sm:$0xff]
    %v451 = vld [vmem:[#allocation6 + $0x518] sm:$0xff]
    %v452 = vld [vmem:[#allocation6 + $0x520] sm:$0xff]
    %v453 = vld [vmem:[#allocation6 + $0x528] sm:$0xff]
    %v454 = vld [vmem:[#allocation6 + $0x530] sm:$0xff]
    %v455 = vld [vmem:[#allocation6 + $0x538] sm:$0xff]
    %v456 = vld [vmem:[#allocation6 + $0x540] sm:$0xff]
    %v457 = vld [vmem:[#allocation6 + $0x548] sm:$0xff]
    %v458 = vld [vmem:[#allocation6 + $0x550] sm:$0xff]
    %v459 = vld [vmem:[#allocation6 + $0x558] sm:$0xff]
    %v460 = vld [vmem:[#allocation6 + $0x560] sm:$0xff]
    %v461 = vld [vmem:[#allocation6 + $0x568] sm:$0xff]
    %v462 = vld [vmem:[#allocation6 + $0x570] sm:$0xff]
    %v463 = vld [vmem:[#allocation6 + $0x578] sm:$0xff]
    %v464 = vld [vmem:[#allocation6 + $0x580] sm:$0xff]
    %v465 = vld [vmem:[#allocation6 + $0x588] sm:$0xff]
    %v466 = vld [vmem:[#allocation6 + $0x590] sm:$0xff]
    %v467 = vld [vmem:[#allocation6 + $0x598] sm:$0xff]
    %v468 = vld [vmem:[#allocation6 + $0x5a0] sm:$0xff]
    %v469 = vld [vmem:[#allocation6 + $0x5a8] sm:$0xff]
    %v470 = vld [vmem:[#allocation6 + $0x5b0] sm:$0xff]
    %v471 = vld [vmem:[#allocation6 + $0x5b8] sm:$0xff]
    %v472 = vld [vmem:[#allocation6 + $0x5c0] sm:$0xff]
    %v473 = vld [vmem:[#allocation6 + $0x5c8] sm:$0xff]
    %v474 = vld [vmem:[#allocation6 + $0x5d0] sm:$0xff]
    %v475 = vld [vmem:[#allocation6 + $0x5d8] sm:$0xff]
    %v476 = vld [vmem:[#allocation6 + $0x5e0] sm:$0xff]
    %v477 = vld [vmem:[#allocation6 + $0x5e8] sm:$0xff]
    %v478 = vld [vmem:[#allocation6 + $0x5f0] sm:$0xff]
    %v479 = vld [vmem:[#allocation6 + $0x5f8] sm:$0xff]
    %v480 = vld [vmem:[#allocation6 + $0x600] sm:$0xff]
    %v481 = vld [vmem:[#allocation6 + $0x608] sm:$0xff]
    %v482 = vld [vmem:[#allocation6 + $0x610] sm:$0xff]
    %v483 = vld [vmem:[#allocation6 + $0x618] sm:$0xff]
    %v484 = vld [vmem:[#allocation6 + $0x620] sm:$0xff]
    %v485 = vld [vmem:[#allocation6 + $0x628] sm:$0xff]
    %v486 = vld [vmem:[#allocation6 + $0x630] sm:$0xff]
    %v487 = vld [vmem:[#allocation6 + $0x638] sm:$0xff]
    %v488 = vld [vmem:[#allocation6 + $0x640] sm:$0xff]
    %v489 = vld [vmem:[#allocation6 + $0x648] sm:$0xff]
    %v490 = vld [vmem:[#allocation6 + $0x650] sm:$0xff]
    %v491 = vld [vmem:[#allocation6 + $0x658] sm:$0xff]
    %v492 = vld [vmem:[#allocation6 + $0x660] sm:$0xff]
    %v493 = vld [vmem:[#allocation6 + $0x668] sm:$0xff]
    %v494 = vld [vmem:[#allocation6 + $0x670] sm:$0xff]
    %v495 = vld [vmem:[#allocation6 + $0x678] sm:$0xff]
    %v496 = vld [vmem:[#allocation6 + $0x680] sm:$0xff]
    %v497 = vld [vmem:[#allocation6 + $0x688] sm:$0xff]
    %v498 = vld [vmem:[#allocation6 + $0x690] sm:$0xff]
    %v499 = vld [vmem:[#allocation6 + $0x698] sm:$0xff]
    %v500 = vld [vmem:[#allocation6 + $0x6a0] sm:$0xff]
    %v501 = vld [vmem:[#allocation6 + $0x6a8] sm:$0xff]
    %v502 = vld [vmem:[#allocation6 + $0x6b0] sm:$0xff]
    %v503 = vld [vmem:[#allocation6 + $0x6b8] sm:$0xff]
    %v504 = vld [vmem:[#allocation6 + $0x6c0] sm:$0xff]
    %v505 = vld [vmem:[#allocation6 + $0x6c8] sm:$0xff]
    %v506 = vld [vmem:[#allocation6 + $0x6d0] sm:$0xff]
    %v507 = vld [vmem:[#allocation6 + $0x6d8] sm:$0xff]
    %v508 = vld [vmem:[#allocation6 + $0x6e0] sm:$0xff]
    %v509 = vld [vmem:[#allocation6 + $0x6e8] sm:$0xff]
    %v510 = vld [vmem:[#allocation6 + $0x6f0] sm:$0xff]
    %v511 = vld [vmem:[#allocation6 + $0x6f8] sm:$0xff]
    %v512 = vld [vmem:[#allocation6 + $0x700] sm:$0xff]
    %v513 = vld [vmem:[#allocation6 + $0x708] sm:$0xff]
    %v514 = vld [vmem:[#allocation6 + $0x710] sm:$0xff]
    %v515 = vld [vmem:[#allocation6 + $0x718] sm:$0xff]
    %v516 = vld [vmem:[#allocation6 + $0x720] sm:$0xff]
    %v517 = vld [vmem:[#allocation6 + $0x728] sm:$0xff]
    %v518 = vld [vmem:[#allocation6 + $0x730] sm:$0xff]
    %v519 = vld [vmem:[#allocation6 + $0x738] sm:$0xff]
    %v520 = vld [vmem:[#allocation6 + $0x740] sm:$0xff]
    %v521 = vld [vmem:[#allocation6 + $0x748] sm:$0xff]
    %v522 = vld [vmem:[#allocation6 + $0x750] sm:$0xff]
    %v523 = vld [vmem:[#allocation6 + $0x758] sm:$0xff]
    %v524 = vld [vmem:[#allocation6 + $0x760] sm:$0xff]
    %v525 = vld [vmem:[#allocation6 + $0x768] sm:$0xff]
    %v526 = vld [vmem:[#allocation6 + $0x770] sm:$0xff]
    %v527 = vld [vmem:[#allocation6 + $0x778] sm:$0xff]
    %v528 = vld [vmem:[#allocation6 + $0x780] sm:$0xff]
    %v529 = vld [vmem:[#allocation6 + $0x788] sm:$0xff]
    %v530 = vld [vmem:[#allocation6 + $0x790] sm:$0xff]
    %v531 = vld [vmem:[#allocation6 + $0x798] sm:$0xff]
    %v532 = vld [vmem:[#allocation6 + $0x7a0] sm:$0xff]
    %v533 = vld [vmem:[#allocation6 + $0x7a8] sm:$0xff]
    %v534 = vld [vmem:[#allocation6 + $0x7b0] sm:$0xff]
    %v535 = vld [vmem:[#allocation6 + $0x7b8] sm:$0xff]
    %v536 = vld [vmem:[#allocation6 + $0x7c0] sm:$0xff]
    %v537 = vld [vmem:[#allocation6 + $0x7c8] sm:$0xff]
    %v538 = vld [vmem:[#allocation6 + $0x7d0] sm:$0xff]
    %v539 = vld [vmem:[#allocation6 + $0x7d8] sm:$0xff]
    %v540 = vld [vmem:[#allocation6 + $0x7e0] sm:$0xff]
    %v541 = vld [vmem:[#allocation6 + $0x7e8] sm:$0xff]
    %v542 = vld [vmem:[#allocation6 + $0x7f0] sm:$0xff]
    %v543 = vld [vmem:[#allocation6 + $0x7f8] sm:$0xff]
    %v544 = vld [vmem:[#allocation6 + $0x800] sm:$0xff]
    %v545 = vld [vmem:[#allocation6 + $0x808] sm:$0xff]
    %v546 = vld [vmem:[#allocation6 + $0x810] sm:$0xff]
    %v547 = vld [vmem:[#allocation6 + $0x818] sm:$0xff]
    %v548 = vld [vmem:[#allocation6 + $0x820] sm:$0xff]
    %v549 = vld [vmem:[#allocation6 + $0x828] sm:$0xff]
    %v550 = vld [vmem:[#allocation6 + $0x830] sm:$0xff]
    %v551 = vld [vmem:[#allocation6 + $0x838] sm:$0xff]
    %v552 = vld [vmem:[#allocation6 + $0x840] sm:$0xff]
    %v553 = vld [vmem:[#allocation6 + $0x848] sm:$0xff]
    %v554 = vld [vmem:[#allocation6 + $0x850] sm:$0xff]
    %v555 = vld [vmem:[#allocation6 + $0x858] sm:$0xff]
    %v556 = vld [vmem:[#allocation6 + $0x860] sm:$0xff]
    %v557 = vld [vmem:[#allocation6 + $0x868] sm:$0xff]
    %v558 = vld [vmem:[#allocation6 + $0x870] sm:$0xff]
    %v559 = vld [vmem:[#allocation6 + $0x878] sm:$0xff]
    %v560 = vld [vmem:[#allocation6 + $0x880] sm:$0xff]
    %v561 = vld [vmem:[#allocation6 + $0x888] sm:$0xff]
    %v562 = vld [vmem:[#allocation6 + $0x890] sm:$0xff]
    %v563 = vld [vmem:[#allocation6 + $0x898] sm:$0xff]
    %v564 = vld [vmem:[#allocation6 + $0x8a0] sm:$0xff]
    %v565 = vld [vmem:[#allocation6 + $0x8a8] sm:$0xff]
    %v566 = vld [vmem:[#allocation6 + $0x8b0] sm:$0xff]
    %v567 = vld [vmem:[#allocation6 + $0x8b8] sm:$0xff]
    %v568 = vld [vmem:[#allocation6 + $0x8c0] sm:$0xff]
    %v569 = vld [vmem:[#allocation6 + $0x8c8] sm:$0xff]
    %v570 = vld [vmem:[#allocation6 + $0x8d0] sm:$0xff]
    %v571 = vld [vmem:[#allocation6 + $0x8d8] sm:$0xff]
    %v572 = vld [vmem:[#allocation6 + $0x8e0] sm:$0xff]
    %v573 = vld [vmem:[#allocation6 + $0x8e8] sm:$0xff]
    %v574 = vld [vmem:[#allocation6 + $0x8f0] sm:$0xff]
    %v575 = vld [vmem:[#allocation6 + $0x8f8] sm:$0xff]
    %v576 = vpack.c.bf16 %v225, %v224
    %v577 = vpack.c.bf16 %v227, %v226
    %v578 = vpack.c.bf16 %v229, %v228
    %v579 = vpack.c.bf16 %v231, %v230
    %v580 = vpack.c.bf16 %v233, %v232
    %v581 = vpack.c.bf16 %v235, %v234
    %v582 = vpack.c.bf16 %v237, %v236
    %v583 = vpack.c.bf16 %v239, %v238
    %v584 = vpack.c.bf16 %v241, %v240
    %v585 = vpack.c.bf16 %v243, %v242
    %v586 = vpack.c.bf16 %v245, %v244
    %v587 = vpack.c.bf16 %v247, %v246
    %v588 = vpack.c.bf16 %v249, %v248
    %v589 = vpack.c.bf16 %v251, %v250
    %v590 = vpack.c.bf16 %v253, %v252
    %v591 = vpack.c.bf16 %v255, %v254
    %v592 = vpack.c.bf16 %v257, %v256
    %v593 = vpack.c.bf16 %v259, %v258
    %v594 = vpack.c.bf16 %v261, %v260
    %v595 = vpack.c.bf16 %v263, %v262
    %v596 = vpack.c.bf16 %v265, %v264
    %v597 = vpack.c.bf16 %v267, %v266
    %v598 = vpack.c.bf16 %v269, %v268
    %v599 = vpack.c.bf16 %v271, %v270
    %v600 = vpack.c.bf16 %v273, %v272
    %v601 = vpack.c.bf16 %v275, %v274
    %v602 = vpack.c.bf16 %v277, %v276
    %v603 = vpack.c.bf16 %v279, %v278
    %v604 = vpack.c.bf16 %v281, %v280
    %v605 = vpack.c.bf16 %v283, %v282
    %v606 = vpack.c.bf16 %v285, %v284
    %v607 = vpack.c.bf16 %v287, %v286
    %v896 = vunpack.c.l.b16 %v288
    %v897 = vunpack.c.h.b16 %v288
    %v898 = vunpack.c.l.b16 %v289
    %v899 = vunpack.c.h.b16 %v289
    %v900 = vunpack.c.l.b16 %v290
    %v901 = vunpack.c.h.b16 %v290
    %v902 = vunpack.c.l.b16 %v291
    %v903 = vunpack.c.h.b16 %v291
    %v904 = vunpack.c.l.b16 %v292
    %v905 = vunpack.c.h.b16 %v292
    %v906 = vunpack.c.l.b16 %v293
    %v907 = vunpack.c.h.b16 %v293
    %v908 = vunpack.c.l.b16 %v294
    %v909 = vunpack.c.h.b16 %v294
    %v910 = vunpack.c.l.b16 %v295
    %v911 = vunpack.c.h.b16 %v295
    %v912 = vunpack.c.l.b16 %v296
    %v913 = vunpack.c.h.b16 %v296
    %v914 = vunpack.c.l.b16 %v297
    %v915 = vunpack.c.h.b16 %v297
    %v916 = vunpack.c.l.b16 %v298
    %v917 = vunpack.c.h.b16 %v298
    %v918 = vunpack.c.l.b16 %v299
    %v919 = vunpack.c.h.b16 %v299
    %v920 = vunpack.c.l.b16 %v300
    %v921 = vunpack.c.h.b16 %v300
    %v922 = vunpack.c.l.b16 %v301
    %v923 = vunpack.c.h.b16 %v301
    %v924 = vunpack.c.l.b16 %v302
    %v925 = vunpack.c.h.b16 %v302
    %v926 = vunpack.c.l.b16 %v303
    %v927 = vunpack.c.h.b16 %v303
    %v928 = vunpack.c.l.b16 %v304
    %v929 = vunpack.c.h.b16 %v304
    %v930 = vunpack.c.l.b16 %v305
    %v931 = vunpack.c.h.b16 %v305
    %v932 = vunpack.c.l.b16 %v306
    %v933 = vunpack.c.h.b16 %v306
    %v934 = vunpack.c.l.b16 %v307
    %v935 = vunpack.c.h.b16 %v307
    %v936 = vunpack.c.l.b16 %v308
    %v937 = vunpack.c.h.b16 %v308
    %v938 = vunpack.c.l.b16 %v309
    %v939 = vunpack.c.h.b16 %v309
    %v940 = vunpack.c.l.b16 %v310
    %v941 = vunpack.c.h.b16 %v310
    %v942 = vunpack.c.l.b16 %v311
    %v943 = vunpack.c.h.b16 %v311
    %v944 = vunpack.c.l.b16 %v312
    %v945 = vunpack.c.h.b16 %v312
    %v946 = vunpack.c.l.b16 %v313
    %v947 = vunpack.c.h.b16 %v313
    %v948 = vunpack.c.l.b16 %v314
    %v949 = vunpack.c.h.b16 %v314
    %v950 = vunpack.c.l.b16 %v315
    %v951 = vunpack.c.h.b16 %v315
    %v952 = vunpack.c.l.b16 %v316
    %v953 = vunpack.c.h.b16 %v316
    %v954 = vunpack.c.l.b16 %v317
    %v955 = vunpack.c.h.b16 %v317
    %v956 = vunpack.c.l.b16 %v318
    %v957 = vunpack.c.h.b16 %v318
    %v958 = vunpack.c.l.b16 %v319
    %v959 = vunpack.c.h.b16 %v319
    %v960 = vunpack.c.l.b16 %v320
    %v961 = vunpack.c.h.b16 %v320
    %v962 = vunpack.c.l.b16 %v321
    %v963 = vunpack.c.h.b16 %v321
    %v964 = vunpack.c.l.b16 %v322
    %v965 = vunpack.c.h.b16 %v322
    %v966 = vunpack.c.l.b16 %v323
    %v967 = vunpack.c.h.b16 %v323
    %v968 = vunpack.c.l.b16 %v324
    %v969 = vunpack.c.h.b16 %v324
    %v970 = vunpack.c.l.b16 %v325
    %v971 = vunpack.c.h.b16 %v325
    %v972 = vunpack.c.l.b16 %v326
    %v973 = vunpack.c.h.b16 %v326
    %v974 = vunpack.c.l.b16 %v327
    %v975 = vunpack.c.h.b16 %v327
    %v976 = vunpack.c.l.b16 %v328
    %v977 = vunpack.c.h.b16 %v328
    %v978 = vunpack.c.l.b16 %v329
    %v979 = vunpack.c.h.b16 %v329
    %v980 = vunpack.c.l.b16 %v330
    %v981 = vunpack.c.h.b16 %v330
    %v982 = vunpack.c.l.b16 %v331
    %v983 = vunpack.c.h.b16 %v331
    %v984 = vunpack.c.l.b16 %v332
    %v985 = vunpack.c.h.b16 %v332
    %v986 = vunpack.c.l.b16 %v333
    %v987 = vunpack.c.h.b16 %v333
    %v988 = vunpack.c.l.b16 %v334
    %v989 = vunpack.c.h.b16 %v334
    %v990 = vunpack.c.l.b16 %v335
    %v991 = vunpack.c.h.b16 %v335
    %v992 = vunpack.c.l.b16 %v336
    %v993 = vunpack.c.h.b16 %v336
    %v994 = vunpack.c.l.b16 %v337
    %v995 = vunpack.c.h.b16 %v337
    %v996 = vunpack.c.l.b16 %v338
    %v997 = vunpack.c.h.b16 %v338
    %v998 = vunpack.c.l.b16 %v339
    %v999 = vunpack.c.h.b16 %v339
    %v1000 = vunpack.c.l.b16 %v340
    %v1001 = vunpack.c.h.b16 %v340
    %v1002 = vunpack.c.l.b16 %v341
    %v1003 = vunpack.c.h.b16 %v341
    %v1004 = vunpack.c.l.b16 %v342
    %v1005 = vunpack.c.h.b16 %v342
    %v1006 = vunpack.c.l.b16 %v343
    %v1007 = vunpack.c.h.b16 %v343
    %v1008 = vunpack.c.l.b16 %v344
    %v1009 = vunpack.c.h.b16 %v344
    %v1010 = vunpack.c.l.b16 %v345
    %v1011 = vunpack.c.h.b16 %v345
    %v1012 = vunpack.c.l.b16 %v346
    %v1013 = vunpack.c.h.b16 %v346
    %v1014 = vunpack.c.l.b16 %v347
    %v1015 = vunpack.c.h.b16 %v347
    %v1016 = vunpack.c.l.b16 %v348
    %v1017 = vunpack.c.h.b16 %v348
    %v1018 = vunpack.c.l.b16 %v349
    %v1019 = vunpack.c.h.b16 %v349
    %v1020 = vunpack.c.l.b16 %v350
    %v1021 = vunpack.c.h.b16 %v350
    %v1022 = vunpack.c.l.b16 %v351
    %v1023 = vunpack.c.h.b16 %v351
    %v1024 = vunpack.c.l.b16 %v352
    %v1025 = vunpack.c.h.b16 %v352
    %v1026 = vunpack.c.l.b16 %v353
    %v1027 = vunpack.c.h.b16 %v353
    %v1028 = vunpack.c.l.b16 %v354
    %v1029 = vunpack.c.h.b16 %v354
    %v1030 = vunpack.c.l.b16 %v355
    %v1031 = vunpack.c.h.b16 %v355
    %v1032 = vunpack.c.l.b16 %v356
    %v1033 = vunpack.c.h.b16 %v356
    %v1034 = vunpack.c.l.b16 %v357
    %v1035 = vunpack.c.h.b16 %v357
    %v1036 = vunpack.c.l.b16 %v358
    %v1037 = vunpack.c.h.b16 %v358
    %v1038 = vunpack.c.l.b16 %v359
    %v1039 = vunpack.c.h.b16 %v359
    %v1040 = vunpack.c.l.b16 %v360
    %v1041 = vunpack.c.h.b16 %v360
    %v1042 = vunpack.c.l.b16 %v361
    %v1043 = vunpack.c.h.b16 %v361
    %v1044 = vunpack.c.l.b16 %v362
    %v1045 = vunpack.c.h.b16 %v362
    %v1046 = vunpack.c.l.b16 %v363
    %v1047 = vunpack.c.h.b16 %v363
    %v1048 = vunpack.c.l.b16 %v364
    %v1049 = vunpack.c.h.b16 %v364
    %v1050 = vunpack.c.l.b16 %v365
    %v1051 = vunpack.c.h.b16 %v365
    %v1052 = vunpack.c.l.b16 %v366
    %v1053 = vunpack.c.h.b16 %v366
    %v1054 = vunpack.c.l.b16 %v367
    %v1055 = vunpack.c.h.b16 %v367
    %v1056 = vunpack.c.l.b16 %v368
    %v1057 = vunpack.c.h.b16 %v368
    %v1058 = vunpack.c.l.b16 %v369
    %v1059 = vunpack.c.h.b16 %v369
    %v1060 = vunpack.c.l.b16 %v370
    %v1061 = vunpack.c.h.b16 %v370
    %v1062 = vunpack.c.l.b16 %v371
    %v1063 = vunpack.c.h.b16 %v371
    %v1064 = vunpack.c.l.b16 %v372
    %v1065 = vunpack.c.h.b16 %v372
    %v1066 = vunpack.c.l.b16 %v373
    %v1067 = vunpack.c.h.b16 %v373
    %v1068 = vunpack.c.l.b16 %v374
    %v1069 = vunpack.c.h.b16 %v374
    %v1070 = vunpack.c.l.b16 %v375
    %v1071 = vunpack.c.h.b16 %v375
    %v1072 = vunpack.c.l.b16 %v376
    %v1073 = vunpack.c.h.b16 %v376
    %v1074 = vunpack.c.l.b16 %v377
    %v1075 = vunpack.c.h.b16 %v377
    %v1076 = vunpack.c.l.b16 %v378
    %v1077 = vunpack.c.h.b16 %v378
    %v1078 = vunpack.c.l.b16 %v379
    %v1079 = vunpack.c.h.b16 %v379
    %v1080 = vunpack.c.l.b16 %v380
    %v1081 = vunpack.c.h.b16 %v380
    %v1082 = vunpack.c.l.b16 %v381
    %v1083 = vunpack.c.h.b16 %v381
    %v1084 = vunpack.c.l.b16 %v382
    %v1085 = vunpack.c.h.b16 %v382
    %v1086 = vunpack.c.l.b16 %v383
    %v1087 = vunpack.c.h.b16 %v383
    %v1088 = vunpack.c.l.b16 %v384
    %v1089 = vunpack.c.h.b16 %v384
    %v1090 = vunpack.c.l.b16 %v385
    %v1091 = vunpack.c.h.b16 %v385
    %v1092 = vunpack.c.l.b16 %v386
    %v1093 = vunpack.c.h.b16 %v386
    %v1094 = vunpack.c.l.b16 %v387
    %v1095 = vunpack.c.h.b16 %v387
    %v1096 = vunpack.c.l.b16 %v388
    %v1097 = vunpack.c.h.b16 %v388
    %v1098 = vunpack.c.l.b16 %v389
    %v1099 = vunpack.c.h.b16 %v389
    %v1100 = vunpack.c.l.b16 %v390
    %v1101 = vunpack.c.h.b16 %v390
    %v1102 = vunpack.c.l.b16 %v391
    %v1103 = vunpack.c.h.b16 %v391
    %v1104 = vunpack.c.l.b16 %v392
    %v1105 = vunpack.c.h.b16 %v392
    %v1106 = vunpack.c.l.b16 %v393
    %v1107 = vunpack.c.h.b16 %v393
    %v1108 = vunpack.c.l.b16 %v394
    %v1109 = vunpack.c.h.b16 %v394
    %v1110 = vunpack.c.l.b16 %v395
    %v1111 = vunpack.c.h.b16 %v395
    %v1112 = vunpack.c.l.b16 %v396
    %v1113 = vunpack.c.h.b16 %v396
    %v1114 = vunpack.c.l.b16 %v397
    %v1115 = vunpack.c.h.b16 %v397
    %v1116 = vunpack.c.l.b16 %v398
    %v1117 = vunpack.c.h.b16 %v398
    %v1118 = vunpack.c.l.b16 %v399
    %v1119 = vunpack.c.h.b16 %v399
    %v1120 = vunpack.c.l.b16 %v400
    %v1121 = vunpack.c.h.b16 %v400
    %v1122 = vunpack.c.l.b16 %v401
    %v1123 = vunpack.c.h.b16 %v401
    %v1124 = vunpack.c.l.b16 %v402
    %v1125 = vunpack.c.h.b16 %v402
    %v1126 = vunpack.c.l.b16 %v403
    %v1127 = vunpack.c.h.b16 %v403
    %v1128 = vunpack.c.l.b16 %v404
    %v1129 = vunpack.c.h.b16 %v404
    %v1130 = vunpack.c.l.b16 %v405
    %v1131 = vunpack.c.h.b16 %v405
    %v1132 = vunpack.c.l.b16 %v406
    %v1133 = vunpack.c.h.b16 %v406
    %v1134 = vunpack.c.l.b16 %v407
    %v1135 = vunpack.c.h.b16 %v407
    %v1136 = vunpack.c.l.b16 %v408
    %v1137 = vunpack.c.h.b16 %v408
    %v1138 = vunpack.c.l.b16 %v409
    %v1139 = vunpack.c.h.b16 %v409
    %v1140 = vunpack.c.l.b16 %v410
    %v1141 = vunpack.c.h.b16 %v410
    %v1142 = vunpack.c.l.b16 %v411
    %v1143 = vunpack.c.h.b16 %v411
    %v1144 = vunpack.c.l.b16 %v412
    %v1145 = vunpack.c.h.b16 %v412
    %v1146 = vunpack.c.l.b16 %v413
    %v1147 = vunpack.c.h.b16 %v413
    %v1148 = vunpack.c.l.b16 %v414
    %v1149 = vunpack.c.h.b16 %v414
    %v1150 = vunpack.c.l.b16 %v415
    %v1151 = vunpack.c.h.b16 %v415
    %v1152 = vunpack.c.l.b16 %v416
    %v1153 = vunpack.c.h.b16 %v416
    %v1154 = vunpack.c.l.b16 %v417
    %v1155 = vunpack.c.h.b16 %v417
    %v1156 = vunpack.c.l.b16 %v418
    %v1157 = vunpack.c.h.b16 %v418
    %v1158 = vunpack.c.l.b16 %v419
    %v1159 = vunpack.c.h.b16 %v419
    %v1160 = vunpack.c.l.b16 %v420
    %v1161 = vunpack.c.h.b16 %v420
    %v1162 = vunpack.c.l.b16 %v421
    %v1163 = vunpack.c.h.b16 %v421
    %v1164 = vunpack.c.l.b16 %v422
    %v1165 = vunpack.c.h.b16 %v422
    %v1166 = vunpack.c.l.b16 %v423
    %v1167 = vunpack.c.h.b16 %v423
    %v1168 = vunpack.c.l.b16 %v424
    %v1169 = vunpack.c.h.b16 %v424
    %v1170 = vunpack.c.l.b16 %v425
    %v1171 = vunpack.c.h.b16 %v425
    %v1172 = vunpack.c.l.b16 %v426
    %v1173 = vunpack.c.h.b16 %v426
    %v1174 = vunpack.c.l.b16 %v427
    %v1175 = vunpack.c.h.b16 %v427
    %v1176 = vunpack.c.l.b16 %v428
    %v1177 = vunpack.c.h.b16 %v428
    %v1178 = vunpack.c.l.b16 %v429
    %v1179 = vunpack.c.h.b16 %v429
    %v1180 = vunpack.c.l.b16 %v430
    %v1181 = vunpack.c.h.b16 %v430
    %v1182 = vunpack.c.l.b16 %v431
    %v1183 = vunpack.c.h.b16 %v431
    %v1184 = vunpack.c.l.b16 %v432
    %v1185 = vunpack.c.h.b16 %v432
    %v1186 = vunpack.c.l.b16 %v433
    %v1187 = vunpack.c.h.b16 %v433
    %v1188 = vunpack.c.l.b16 %v434
    %v1189 = vunpack.c.h.b16 %v434
    %v1190 = vunpack.c.l.b16 %v435
    %v1191 = vunpack.c.h.b16 %v435
    %v1192 = vunpack.c.l.b16 %v436
    %v1193 = vunpack.c.h.b16 %v436
    %v1194 = vunpack.c.l.b16 %v437
    %v1195 = vunpack.c.h.b16 %v437
    %v1196 = vunpack.c.l.b16 %v438
    %v1197 = vunpack.c.h.b16 %v438
    %v1198 = vunpack.c.l.b16 %v439
    %v1199 = vunpack.c.h.b16 %v439
    %v1200 = vunpack.c.l.b16 %v440
    %v1201 = vunpack.c.h.b16 %v440
    %v1202 = vunpack.c.l.b16 %v441
    %v1203 = vunpack.c.h.b16 %v441
    %v1204 = vunpack.c.l.b16 %v442
    %v1205 = vunpack.c.h.b16 %v442
    %v1206 = vunpack.c.l.b16 %v443
    %v1207 = vunpack.c.h.b16 %v443
    %v1208 = vunpack.c.l.b16 %v444
    %v1209 = vunpack.c.h.b16 %v444
    %v1210 = vunpack.c.l.b16 %v445
    %v1211 = vunpack.c.h.b16 %v445
    %v1212 = vunpack.c.l.b16 %v446
    %v1213 = vunpack.c.h.b16 %v446
    %v1214 = vunpack.c.l.b16 %v447
    %v1215 = vunpack.c.h.b16 %v447
    %v1216 = vunpack.c.l.b16 %v448
    %v1217 = vunpack.c.h.b16 %v448
    %v1218 = vunpack.c.l.b16 %v449
    %v1219 = vunpack.c.h.b16 %v449
    %v1220 = vunpack.c.l.b16 %v450
    %v1221 = vunpack.c.h.b16 %v450
    %v1222 = vunpack.c.l.b16 %v451
    %v1223 = vunpack.c.h.b16 %v451
    %v1224 = vunpack.c.l.b16 %v452
    %v1225 = vunpack.c.h.b16 %v452
    %v1226 = vunpack.c.l.b16 %v453
    %v1227 = vunpack.c.h.b16 %v453
    %v1228 = vunpack.c.l.b16 %v454
    %v1229 = vunpack.c.h.b16 %v454
    %v1230 = vunpack.c.l.b16 %v455
    %v1231 = vunpack.c.h.b16 %v455
    %v1232 = vunpack.c.l.b16 %v456
    %v1233 = vunpack.c.h.b16 %v456
    %v1234 = vunpack.c.l.b16 %v457
    %v1235 = vunpack.c.h.b16 %v457
    %v1236 = vunpack.c.l.b16 %v458
    %v1237 = vunpack.c.h.b16 %v458
    %v1238 = vunpack.c.l.b16 %v459
    %v1239 = vunpack.c.h.b16 %v459
    %v1240 = vunpack.c.l.b16 %v460
    %v1241 = vunpack.c.h.b16 %v460
    %v1242 = vunpack.c.l.b16 %v461
    %v1243 = vunpack.c.h.b16 %v461
    %v1244 = vunpack.c.l.b16 %v462
    %v1245 = vunpack.c.h.b16 %v462
    %v1246 = vunpack.c.l.b16 %v463
    %v1247 = vunpack.c.h.b16 %v463
    %v1248 = vunpack.c.l.b16 %v464
    %v1249 = vunpack.c.h.b16 %v464
    %v1250 = vunpack.c.l.b16 %v465
    %v1251 = vunpack.c.h.b16 %v465
    %v1252 = vunpack.c.l.b16 %v466
    %v1253 = vunpack.c.h.b16 %v466
    %v1254 = vunpack.c.l.b16 %v467
    %v1255 = vunpack.c.h.b16 %v467
    %v1256 = vunpack.c.l.b16 %v468
    %v1257 = vunpack.c.h.b16 %v468
    %v1258 = vunpack.c.l.b16 %v469
    %v1259 = vunpack.c.h.b16 %v469
    %v1260 = vunpack.c.l.b16 %v470
    %v1261 = vunpack.c.h.b16 %v470
    %v1262 = vunpack.c.l.b16 %v471
    %v1263 = vunpack.c.h.b16 %v471
    %v1264 = vunpack.c.l.b16 %v472
    %v1265 = vunpack.c.h.b16 %v472
    %v1266 = vunpack.c.l.b16 %v473
    %v1267 = vunpack.c.h.b16 %v473
    %v1268 = vunpack.c.l.b16 %v474
    %v1269 = vunpack.c.h.b16 %v474
    %v1270 = vunpack.c.l.b16 %v475
    %v1271 = vunpack.c.h.b16 %v475
    %v1272 = vunpack.c.l.b16 %v476
    %v1273 = vunpack.c.h.b16 %v476
    %v1274 = vunpack.c.l.b16 %v477
    %v1275 = vunpack.c.h.b16 %v477
    %v1276 = vunpack.c.l.b16 %v478
    %v1277 = vunpack.c.h.b16 %v478
    %v1278 = vunpack.c.l.b16 %v479
    %v1279 = vunpack.c.h.b16 %v479
    %v1280 = vunpack.c.l.b16 %v480
    %v1281 = vunpack.c.h.b16 %v480
    %v1282 = vunpack.c.l.b16 %v481
    %v1283 = vunpack.c.h.b16 %v481
    %v1284 = vunpack.c.l.b16 %v482
    %v1285 = vunpack.c.h.b16 %v482
    %v1286 = vunpack.c.l.b16 %v483
    %v1287 = vunpack.c.h.b16 %v483
    %v1288 = vunpack.c.l.b16 %v484
    %v1289 = vunpack.c.h.b16 %v484
    %v1290 = vunpack.c.l.b16 %v485
    %v1291 = vunpack.c.h.b16 %v485
    %v1292 = vunpack.c.l.b16 %v486
    %v1293 = vunpack.c.h.b16 %v486
    %v1294 = vunpack.c.l.b16 %v487
    %v1295 = vunpack.c.h.b16 %v487
    %v1296 = vunpack.c.l.b16 %v488
    %v1297 = vunpack.c.h.b16 %v488
    %v1298 = vunpack.c.l.b16 %v489
    %v1299 = vunpack.c.h.b16 %v489
    %v1300 = vunpack.c.l.b16 %v490
    %v1301 = vunpack.c.h.b16 %v490
    %v1302 = vunpack.c.l.b16 %v491
    %v1303 = vunpack.c.h.b16 %v491
    %v1304 = vunpack.c.l.b16 %v492
    %v1305 = vunpack.c.h.b16 %v492
    %v1306 = vunpack.c.l.b16 %v493
    %v1307 = vunpack.c.h.b16 %v493
    %v1308 = vunpack.c.l.b16 %v494
    %v1309 = vunpack.c.h.b16 %v494
    %v1310 = vunpack.c.l.b16 %v495
    %v1311 = vunpack.c.h.b16 %v495
    %v1312 = vunpack.c.l.b16 %v496
    %v1313 = vunpack.c.h.b16 %v496
    %v1314 = vunpack.c.l.b16 %v497
    %v1315 = vunpack.c.h.b16 %v497
    %v1316 = vunpack.c.l.b16 %v498
    %v1317 = vunpack.c.h.b16 %v498
    %v1318 = vunpack.c.l.b16 %v499
    %v1319 = vunpack.c.h.b16 %v499
    %v1320 = vunpack.c.l.b16 %v500
    %v1321 = vunpack.c.h.b16 %v500
    %v1322 = vunpack.c.l.b16 %v501
    %v1323 = vunpack.c.h.b16 %v501
    %v1324 = vunpack.c.l.b16 %v502
    %v1325 = vunpack.c.h.b16 %v502
    %v1326 = vunpack.c.l.b16 %v503
    %v1327 = vunpack.c.h.b16 %v503
    %v1328 = vunpack.c.l.b16 %v504
    %v1329 = vunpack.c.h.b16 %v504
    %v1330 = vunpack.c.l.b16 %v505
    %v1331 = vunpack.c.h.b16 %v505
    %v1332 = vunpack.c.l.b16 %v506
    %v1333 = vunpack.c.h.b16 %v506
    %v1334 = vunpack.c.l.b16 %v507
    %v1335 = vunpack.c.h.b16 %v507
    %v1336 = vunpack.c.l.b16 %v508
    %v1337 = vunpack.c.h.b16 %v508
    %v1338 = vunpack.c.l.b16 %v509
    %v1339 = vunpack.c.h.b16 %v509
    %v1340 = vunpack.c.l.b16 %v510
    %v1341 = vunpack.c.h.b16 %v510
    %v1342 = vunpack.c.l.b16 %v511
    %v1343 = vunpack.c.h.b16 %v511
    %v1344 = vunpack.c.l.b16 %v512
    %v1345 = vunpack.c.h.b16 %v512
    %v1346 = vunpack.c.l.b16 %v513
    %v1347 = vunpack.c.h.b16 %v513
    %v1348 = vunpack.c.l.b16 %v514
    %v1349 = vunpack.c.h.b16 %v514
    %v1350 = vunpack.c.l.b16 %v515
    %v1351 = vunpack.c.h.b16 %v515
    %v1352 = vunpack.c.l.b16 %v516
    %v1353 = vunpack.c.h.b16 %v516
    %v1354 = vunpack.c.l.b16 %v517
    %v1355 = vunpack.c.h.b16 %v517
    %v1356 = vunpack.c.l.b16 %v518
    %v1357 = vunpack.c.h.b16 %v518
    %v1358 = vunpack.c.l.b16 %v519
    %v1359 = vunpack.c.h.b16 %v519
    %v1360 = vunpack.c.l.b16 %v520
    %v1361 = vunpack.c.h.b16 %v520
    %v1362 = vunpack.c.l.b16 %v521
    %v1363 = vunpack.c.h.b16 %v521
    %v1364 = vunpack.c.l.b16 %v522
    %v1365 = vunpack.c.h.b16 %v522
    %v1366 = vunpack.c.l.b16 %v523
    %v1367 = vunpack.c.h.b16 %v523
    %v1368 = vunpack.c.l.b16 %v524
    %v1369 = vunpack.c.h.b16 %v524
    %v1370 = vunpack.c.l.b16 %v525
    %v1371 = vunpack.c.h.b16 %v525
    %v1372 = vunpack.c.l.b16 %v526
    %v1373 = vunpack.c.h.b16 %v526
    %v1374 = vunpack.c.l.b16 %v527
    %v1375 = vunpack.c.h.b16 %v527
    %v1376 = vunpack.c.l.b16 %v528
    %v1377 = vunpack.c.h.b16 %v528
    %v1378 = vunpack.c.l.b16 %v529
    %v1379 = vunpack.c.h.b16 %v529
    %v1380 = vunpack.c.l.b16 %v530
    %v1381 = vunpack.c.h.b16 %v530
    %v1382 = vunpack.c.l.b16 %v531
    %v1383 = vunpack.c.h.b16 %v531
    %v1384 = vunpack.c.l.b16 %v532
    %v1385 = vunpack.c.h.b16 %v532
    %v1386 = vunpack.c.l.b16 %v533
    %v1387 = vunpack.c.h.b16 %v533
    %v1388 = vunpack.c.l.b16 %v534
    %v1389 = vunpack.c.h.b16 %v534
    %v1390 = vunpack.c.l.b16 %v535
    %v1391 = vunpack.c.h.b16 %v535
    %v1392 = vunpack.c.l.b16 %v536
    %v1393 = vunpack.c.h.b16 %v536
    %v1394 = vunpack.c.l.b16 %v537
    %v1395 = vunpack.c.h.b16 %v537
    %v1396 = vunpack.c.l.b16 %v538
    %v1397 = vunpack.c.h.b16 %v538
    %v1398 = vunpack.c.l.b16 %v539
    %v1399 = vunpack.c.h.b16 %v539
    %v1400 = vunpack.c.l.b16 %v540
    %v1401 = vunpack.c.h.b16 %v540
    %v1402 = vunpack.c.l.b16 %v541
    %v1403 = vunpack.c.h.b16 %v541
    %v1404 = vunpack.c.l.b16 %v542
    %v1405 = vunpack.c.h.b16 %v542
    %v1406 = vunpack.c.l.b16 %v543
    %v1407 = vunpack.c.h.b16 %v543
    %v1408 = vunpack.c.l.b16 %v544
    %v1409 = vunpack.c.h.b16 %v544
    %v1410 = vunpack.c.l.b16 %v545
    %v1411 = vunpack.c.h.b16 %v545
    %v1412 = vunpack.c.l.b16 %v546
    %v1413 = vunpack.c.h.b16 %v546
    %v1414 = vunpack.c.l.b16 %v547
    %v1415 = vunpack.c.h.b16 %v547
    %v1416 = vunpack.c.l.b16 %v548
    %v1417 = vunpack.c.h.b16 %v548
    %v1418 = vunpack.c.l.b16 %v549
    %v1419 = vunpack.c.h.b16 %v549
    %v1420 = vunpack.c.l.b16 %v550
    %v1421 = vunpack.c.h.b16 %v550
    %v1422 = vunpack.c.l.b16 %v551
    %v1423 = vunpack.c.h.b16 %v551
    %v1424 = vunpack.c.l.b16 %v552
    %v1425 = vunpack.c.h.b16 %v552
    %v1426 = vunpack.c.l.b16 %v553
    %v1427 = vunpack.c.h.b16 %v553
    %v1428 = vunpack.c.l.b16 %v554
    %v1429 = vunpack.c.h.b16 %v554
    %v1430 = vunpack.c.l.b16 %v555
    %v1431 = vunpack.c.h.b16 %v555
    %v1432 = vunpack.c.l.b16 %v556
    %v1433 = vunpack.c.h.b16 %v556
    %v1434 = vunpack.c.l.b16 %v557
    %v1435 = vunpack.c.h.b16 %v557
    %v1436 = vunpack.c.l.b16 %v558
    %v1437 = vunpack.c.h.b16 %v558
    %v1438 = vunpack.c.l.b16 %v559
    %v1439 = vunpack.c.h.b16 %v559
    %v1440 = vunpack.c.l.b16 %v560
    %v1441 = vunpack.c.h.b16 %v560
    %v1442 = vunpack.c.l.b16 %v561
    %v1443 = vunpack.c.h.b16 %v561
    %v1444 = vunpack.c.l.b16 %v562
    %v1445 = vunpack.c.h.b16 %v562
    %v1446 = vunpack.c.l.b16 %v563
    %v1447 = vunpack.c.h.b16 %v563
    %v1448 = vunpack.c.l.b16 %v564
    %v1449 = vunpack.c.h.b16 %v564
    %v1450 = vunpack.c.l.b16 %v565
    %v1451 = vunpack.c.h.b16 %v565
    %v1452 = vunpack.c.l.b16 %v566
    %v1453 = vunpack.c.h.b16 %v566
    %v1454 = vunpack.c.l.b16 %v567
    %v1455 = vunpack.c.h.b16 %v567
    %v1456 = vunpack.c.l.b16 %v568
    %v1457 = vunpack.c.h.b16 %v568
    %v1458 = vunpack.c.l.b16 %v569
    %v1459 = vunpack.c.h.b16 %v569
    %v1460 = vunpack.c.l.b16 %v570
    %v1461 = vunpack.c.h.b16 %v570
    %v1462 = vunpack.c.l.b16 %v571
    %v1463 = vunpack.c.h.b16 %v571
    %v1464 = vunpack.c.l.b16 %v572
    %v1465 = vunpack.c.h.b16 %v572
    %v1466 = vunpack.c.l.b16 %v573
    %v1467 = vunpack.c.h.b16 %v573
    %v1468 = vunpack.c.l.b16 %v574
    %v1469 = vunpack.c.h.b16 %v574
    %v1470 = vunpack.c.l.b16 %v575
    %v1471 = vunpack.c.h.b16 %v575
    %v1472 = vpack.c.b16 %v900, %v896
    %v1473 = vpack.c.b16 %v901, %v897
    %v1474 = vpack.c.b16 %v902, %v898
    %v1475 = vpack.c.b16 %v903, %v899
    %v1476 = vpack.c.b16 %v908, %v904
    %v1477 = vpack.c.b16 %v909, %v905
    %v1478 = vpack.c.b16 %v910, %v906
    %v1479 = vpack.c.b16 %v911, %v907
    %v1480 = vpack.c.b16 %v916, %v912
    %v1481 = vpack.c.b16 %v917, %v913
    %v1482 = vpack.c.b16 %v918, %v914
    %v1483 = vpack.c.b16 %v919, %v915
    %v1484 = vpack.c.b16 %v924, %v920
    %v1485 = vpack.c.b16 %v925, %v921
    %v1486 = vpack.c.b16 %v926, %v922
    %v1487 = vpack.c.b16 %v927, %v923
    %v1488 = vpack.c.b16 %v932, %v928
    %v1489 = vpack.c.b16 %v933, %v929
    %v1490 = vpack.c.b16 %v934, %v930
    %v1491 = vpack.c.b16 %v935, %v931
    %v1492 = vpack.c.b16 %v940, %v936
    %v1493 = vpack.c.b16 %v941, %v937
    %v1494 = vpack.c.b16 %v942, %v938
    %v1495 = vpack.c.b16 %v943, %v939
    %v1496 = vpack.c.b16 %v948, %v944
    %v1497 = vpack.c.b16 %v949, %v945
    %v1498 = vpack.c.b16 %v950, %v946
    %v1499 = vpack.c.b16 %v951, %v947
    %v1500 = vpack.c.b16 %v956, %v952
    %v1501 = vpack.c.b16 %v957, %v953
    %v1502 = vpack.c.b16 %v958, %v954
    %v1503 = vpack.c.b16 %v959, %v955
    %v1504 = vpack.c.b16 %v964, %v960
    %v1505 = vpack.c.b16 %v965, %v961
    %v1506 = vpack.c.b16 %v966, %v962
    %v1507 = vpack.c.b16 %v967, %v963
    %v1508 = vpack.c.b16 %v972, %v968
    %v1509 = vpack.c.b16 %v973, %v969
    %v1510 = vpack.c.b16 %v974, %v970
    %v1511 = vpack.c.b16 %v975, %v971
    %v1512 = vpack.c.b16 %v980, %v976
    %v1513 = vpack.c.b16 %v981, %v977
    %v1514 = vpack.c.b16 %v982, %v978
    %v1515 = vpack.c.b16 %v983, %v979
    %v1516 = vpack.c.b16 %v988, %v984
    %v1517 = vpack.c.b16 %v989, %v985
    %v1518 = vpack.c.b16 %v990, %v986
    %v1519 = vpack.c.b16 %v991, %v987
    %v1520 = vpack.c.b16 %v996, %v992
    %v1521 = vpack.c.b16 %v997, %v993
    %v1522 = vpack.c.b16 %v998, %v994
    %v1523 = vpack.c.b16 %v999, %v995
    %v1524 = vpack.c.b16 %v1004, %v1000
    %v1525 = vpack.c.b16 %v1005, %v1001
    %v1526 = vpack.c.b16 %v1006, %v1002
    %v1527 = vpack.c.b16 %v1007, %v1003
    %v1528 = vpack.c.b16 %v1012, %v1008
    %v1529 = vpack.c.b16 %v1013, %v1009
    %v1530 = vpack.c.b16 %v1014, %v1010
    %v1531 = vpack.c.b16 %v1015, %v1011
    %v1532 = vpack.c.b16 %v1020, %v1016
    %v1533 = vpack.c.b16 %v1021, %v1017
    %v1534 = vpack.c.b16 %v1022, %v1018
    %v1535 = vpack.c.b16 %v1023, %v1019
    %v1536 = vpack.c.b16 %v1028, %v1024
    %v1537 = vpack.c.b16 %v1029, %v1025
    %v1538 = vpack.c.b16 %v1030, %v1026
    %v1539 = vpack.c.b16 %v1031, %v1027
    %v1540 = vpack.c.b16 %v1036, %v1032
    %v1541 = vpack.c.b16 %v1037, %v1033
    %v1542 = vpack.c.b16 %v1038, %v1034
    %v1543 = vpack.c.b16 %v1039, %v1035
    %v1544 = vpack.c.b16 %v1044, %v1040
    %v1545 = vpack.c.b16 %v1045, %v1041
    %v1546 = vpack.c.b16 %v1046, %v1042
    %v1547 = vpack.c.b16 %v1047, %v1043
    %v1548 = vpack.c.b16 %v1052, %v1048
    %v1549 = vpack.c.b16 %v1053, %v1049
    %v1550 = vpack.c.b16 %v1054, %v1050
    %v1551 = vpack.c.b16 %v1055, %v1051
    %v1552 = vpack.c.b16 %v1060, %v1056
    %v1553 = vpack.c.b16 %v1061, %v1057
    %v1554 = vpack.c.b16 %v1062, %v1058
    %v1555 = vpack.c.b16 %v1063, %v1059
    %v1556 = vpack.c.b16 %v1068, %v1064
    %v1557 = vpack.c.b16 %v1069, %v1065
    %v1558 = vpack.c.b16 %v1070, %v1066
    %v1559 = vpack.c.b16 %v1071, %v1067
    %v1560 = vpack.c.b16 %v1076, %v1072
    %v1561 = vpack.c.b16 %v1077, %v1073
    %v1562 = vpack.c.b16 %v1078, %v1074
    %v1563 = vpack.c.b16 %v1079, %v1075
    %v1564 = vpack.c.b16 %v1084, %v1080
    %v1565 = vpack.c.b16 %v1085, %v1081
    %v1566 = vpack.c.b16 %v1086, %v1082
    %v1567 = vpack.c.b16 %v1087, %v1083
    %v1568 = vpack.c.b16 %v1092, %v1088
    %v1569 = vpack.c.b16 %v1093, %v1089
    %v1570 = vpack.c.b16 %v1094, %v1090
    %v1571 = vpack.c.b16 %v1095, %v1091
    %v1572 = vpack.c.b16 %v1100, %v1096
    %v1573 = vpack.c.b16 %v1101, %v1097
    %v1574 = vpack.c.b16 %v1102, %v1098
    %v1575 = vpack.c.b16 %v1103, %v1099
    %v1576 = vpack.c.b16 %v1108, %v1104
    %v1577 = vpack.c.b16 %v1109, %v1105
    %v1578 = vpack.c.b16 %v1110, %v1106
    %v1579 = vpack.c.b16 %v1111, %v1107
    %v1580 = vpack.c.b16 %v1116, %v1112
    %v1581 = vpack.c.b16 %v1117, %v1113
    %v1582 = vpack.c.b16 %v1118, %v1114
    %v1583 = vpack.c.b16 %v1119, %v1115
    %v1584 = vpack.c.b16 %v1124, %v1120
    %v1585 = vpack.c.b16 %v1125, %v1121
    %v1586 = vpack.c.b16 %v1126, %v1122
    %v1587 = vpack.c.b16 %v1127, %v1123
    %v1588 = vpack.c.b16 %v1132, %v1128
    %v1589 = vpack.c.b16 %v1133, %v1129
    %v1590 = vpack.c.b16 %v1134, %v1130
    %v1591 = vpack.c.b16 %v1135, %v1131
    %v1592 = vpack.c.b16 %v1140, %v1136
    %v1593 = vpack.c.b16 %v1141, %v1137
    %v1594 = vpack.c.b16 %v1142, %v1138
    %v1595 = vpack.c.b16 %v1143, %v1139
    %v1596 = vpack.c.b16 %v1148, %v1144
    %v1597 = vpack.c.b16 %v1149, %v1145
    %v1598 = vpack.c.b16 %v1150, %v1146
    %v1599 = vpack.c.b16 %v1151, %v1147
    %v1600 = vpack.c.b16 %v1156, %v1152
    %v1601 = vpack.c.b16 %v1157, %v1153
    %v1602 = vpack.c.b16 %v1158, %v1154
    %v1603 = vpack.c.b16 %v1159, %v1155
    %v1604 = vpack.c.b16 %v1164, %v1160
    %v1605 = vpack.c.b16 %v1165, %v1161
    %v1606 = vpack.c.b16 %v1166, %v1162
    %v1607 = vpack.c.b16 %v1167, %v1163
    %v1608 = vpack.c.b16 %v1172, %v1168
    %v1609 = vpack.c.b16 %v1173, %v1169
    %v1610 = vpack.c.b16 %v1174, %v1170
    %v1611 = vpack.c.b16 %v1175, %v1171
    %v1612 = vpack.c.b16 %v1180, %v1176
    %v1613 = vpack.c.b16 %v1181, %v1177
    %v1614 = vpack.c.b16 %v1182, %v1178
    %v1615 = vpack.c.b16 %v1183, %v1179
    %v1616 = vpack.c.b16 %v1188, %v1184
    %v1617 = vpack.c.b16 %v1189, %v1185
    %v1618 = vpack.c.b16 %v1190, %v1186
    %v1619 = vpack.c.b16 %v1191, %v1187
    %v1620 = vpack.c.b16 %v1196, %v1192
    %v1621 = vpack.c.b16 %v1197, %v1193
    %v1622 = vpack.c.b16 %v1198, %v1194
    %v1623 = vpack.c.b16 %v1199, %v1195
    %v1624 = vpack.c.b16 %v1204, %v1200
    %v1625 = vpack.c.b16 %v1205, %v1201
    %v1626 = vpack.c.b16 %v1206, %v1202
    %v1627 = vpack.c.b16 %v1207, %v1203
    %v1628 = vpack.c.b16 %v1212, %v1208
    %v1629 = vpack.c.b16 %v1213, %v1209
    %v1630 = vpack.c.b16 %v1214, %v1210
    %v1631 = vpack.c.b16 %v1215, %v1211
    %v1632 = vpack.c.b16 %v1220, %v1216
    %v1633 = vpack.c.b16 %v1221, %v1217
    %v1634 = vpack.c.b16 %v1222, %v1218
    %v1635 = vpack.c.b16 %v1223, %v1219
    %v1636 = vpack.c.b16 %v1228, %v1224
    %v1637 = vpack.c.b16 %v1229, %v1225
    %v1638 = vpack.c.b16 %v1230, %v1226
    %v1639 = vpack.c.b16 %v1231, %v1227
    %v1640 = vpack.c.b16 %v1236, %v1232
    %v1641 = vpack.c.b16 %v1237, %v1233
    %v1642 = vpack.c.b16 %v1238, %v1234
    %v1643 = vpack.c.b16 %v1239, %v1235
    %v1644 = vpack.c.b16 %v1244, %v1240
    %v1645 = vpack.c.b16 %v1245, %v1241
    %v1646 = vpack.c.b16 %v1246, %v1242
    %v1647 = vpack.c.b16 %v1247, %v1243
    %v1648 = vpack.c.b16 %v1252, %v1248
    %v1649 = vpack.c.b16 %v1253, %v1249
    %v1650 = vpack.c.b16 %v1254, %v1250
    %v1651 = vpack.c.b16 %v1255, %v1251
    %v1652 = vpack.c.b16 %v1260, %v1256
    %v1653 = vpack.c.b16 %v1261, %v1257
    %v1654 = vpack.c.b16 %v1262, %v1258
    %v1655 = vpack.c.b16 %v1263, %v1259
    %v1656 = vpack.c.b16 %v1268, %v1264
    %v1657 = vpack.c.b16 %v1269, %v1265
    %v1658 = vpack.c.b16 %v1270, %v1266
    %v1659 = vpack.c.b16 %v1271, %v1267
    %v1660 = vpack.c.b16 %v1276, %v1272
    %v1661 = vpack.c.b16 %v1277, %v1273
    %v1662 = vpack.c.b16 %v1278, %v1274
    %v1663 = vpack.c.b16 %v1279, %v1275
    %v1664 = vpack.c.b16 %v1284, %v1280
    %v1665 = vpack.c.b16 %v1285, %v1281
    %v1666 = vpack.c.b16 %v1286, %v1282
    %v1667 = vpack.c.b16 %v1287, %v1283
    %v1668 = vpack.c.b16 %v1292, %v1288
    %v1669 = vpack.c.b16 %v1293, %v1289
    %v1670 = vpack.c.b16 %v1294, %v1290
    %v1671 = vpack.c.b16 %v1295, %v1291
    %v1672 = vpack.c.b16 %v1300, %v1296
    %v1673 = vpack.c.b16 %v1301, %v1297
    %v1674 = vpack.c.b16 %v1302, %v1298
    %v1675 = vpack.c.b16 %v1303, %v1299
    %v1676 = vpack.c.b16 %v1308, %v1304
    %v1677 = vpack.c.b16 %v1309, %v1305
    %v1678 = vpack.c.b16 %v1310, %v1306
    %v1679 = vpack.c.b16 %v1311, %v1307
    %v1680 = vpack.c.b16 %v1316, %v1312
    %v1681 = vpack.c.b16 %v1317, %v1313
    %v1682 = vpack.c.b16 %v1318, %v1314
    %v1683 = vpack.c.b16 %v1319, %v1315
    %v1684 = vpack.c.b16 %v1324, %v1320
    %v1685 = vpack.c.b16 %v1325, %v1321
    %v1686 = vpack.c.b16 %v1326, %v1322
    %v1687 = vpack.c.b16 %v1327, %v1323
    %v1688 = vpack.c.b16 %v1332, %v1328
    %v1689 = vpack.c.b16 %v1333, %v1329
    %v1690 = vpack.c.b16 %v1334, %v1330
    %v1691 = vpack.c.b16 %v1335, %v1331
    %v1692 = vpack.c.b16 %v1340, %v1336
    %v1693 = vpack.c.b16 %v1341, %v1337
    %v1694 = vpack.c.b16 %v1342, %v1338
    %v1695 = vpack.c.b16 %v1343, %v1339
    %v1696 = vpack.c.b16 %v1348, %v1344
    %v1697 = vpack.c.b16 %v1349, %v1345
    %v1698 = vpack.c.b16 %v1350, %v1346
    %v1699 = vpack.c.b16 %v1351, %v1347
    %v1700 = vpack.c.b16 %v1356, %v1352
    %v1701 = vpack.c.b16 %v1357, %v1353
    %v1702 = vpack.c.b16 %v1358, %v1354
    %v1703 = vpack.c.b16 %v1359, %v1355
    %v1704 = vpack.c.b16 %v1364, %v1360
    %v1705 = vpack.c.b16 %v1365, %v1361
    %v1706 = vpack.c.b16 %v1366, %v1362
    %v1707 = vpack.c.b16 %v1367, %v1363
    %v1708 = vpack.c.b16 %v1372, %v1368
    %v1709 = vpack.c.b16 %v1373, %v1369
    %v1710 = vpack.c.b16 %v1374, %v1370
    %v1711 = vpack.c.b16 %v1375, %v1371
    %v1712 = vpack.c.b16 %v1380, %v1376
    %v1713 = vpack.c.b16 %v1381, %v1377
    %v1714 = vpack.c.b16 %v1382, %v1378
    %v1715 = vpack.c.b16 %v1383, %v1379
    %v1716 = vpack.c.b16 %v1388, %v1384
    %v1717 = vpack.c.b16 %v1389, %v1385
    %v1718 = vpack.c.b16 %v1390, %v1386
    %v1719 = vpack.c.b16 %v1391, %v1387
    %v1720 = vpack.c.b16 %v1396, %v1392
    %v1721 = vpack.c.b16 %v1397, %v1393
    %v1722 = vpack.c.b16 %v1398, %v1394
    %v1723 = vpack.c.b16 %v1399, %v1395
    %v1724 = vpack.c.b16 %v1404, %v1400
    %v1725 = vpack.c.b16 %v1405, %v1401
    %v1726 = vpack.c.b16 %v1406, %v1402
    %v1727 = vpack.c.b16 %v1407, %v1403
    %v1728 = vpack.c.b16 %v1412, %v1408
    %v1729 = vpack.c.b16 %v1413, %v1409
    %v1730 = vpack.c.b16 %v1414, %v1410
    %v1731 = vpack.c.b16 %v1415, %v1411
    %v1732 = vpack.c.b16 %v1420, %v1416
    %v1733 = vpack.c.b16 %v1421, %v1417
    %v1734 = vpack.c.b16 %v1422, %v1418
    %v1735 = vpack.c.b16 %v1423, %v1419
    %v1736 = vpack.c.b16 %v1428, %v1424
    %v1737 = vpack.c.b16 %v1429, %v1425
    %v1738 = vpack.c.b16 %v1430, %v1426
    %v1739 = vpack.c.b16 %v1431, %v1427
    %v1740 = vpack.c.b16 %v1436, %v1432
    %v1741 = vpack.c.b16 %v1437, %v1433
    %v1742 = vpack.c.b16 %v1438, %v1434
    %v1743 = vpack.c.b16 %v1439, %v1435
    %v1744 = vpack.c.b16 %v1444, %v1440
    %v1745 = vpack.c.b16 %v1445, %v1441
    %v1746 = vpack.c.b16 %v1446, %v1442
    %v1747 = vpack.c.b16 %v1447, %v1443
    %v1748 = vpack.c.b16 %v1452, %v1448
    %v1749 = vpack.c.b16 %v1453, %v1449
    %v1750 = vpack.c.b16 %v1454, %v1450
    %v1751 = vpack.c.b16 %v1455, %v1451
    %v1752 = vpack.c.b16 %v1460, %v1456
    %v1753 = vpack.c.b16 %v1461, %v1457
    %v1754 = vpack.c.b16 %v1462, %v1458
    %v1755 = vpack.c.b16 %v1463, %v1459
    %v1756 = vpack.c.b16 %v1468, %v1464
    %v1757 = vpack.c.b16 %v1469, %v1465
    %v1758 = vpack.c.b16 %v1470, %v1466
    %v1759 = vpack.c.b16 %v1471, %v1467
    %2048 = vmatpush.bf16.msra.mxu0 %v583
    %2049 = vmatpush.bf16.msra.mxu0 %v582
    %2050 = vmatpush.bf16.msra.mxu0 %v581
    %2051 = vmatpush.bf16.msra.mxu0 %v580
    %2052 = vmatpush.bf16.msra.mxu0 %v579
    %2053 = vmatpush.bf16.msra.mxu0 %v578
    %2054 = vmatpush.bf16.msra.mxu0 %v577
    %2055 = vmatpush.bf16.msra.mxu0 %v576
    %2056 = vmatmul.bf16.gmra.mxu0 %v1472
    %v2057 = vpop.f32.mrf.mxu0
    %v2058 = vadd.f32 0.0, %v2057
    %v2059 = vpop.f32.mrf.mxu0
    %v2060 = vadd.f32 0.0, %v2059
    %2061 = vmatmul.bf16.gmra.mxu0 %v1476
    %v2062 = vpop.f32.mrf.mxu0
    %v2063 = vadd.f32 0.0, %v2062
    %v2064 = vpop.f32.mrf.mxu0
    %v2065 = vadd.f32 0.0, %v2064
    %2066 = vmatmul.bf16.gmra.mxu0 %v1480
    %v2067 = vpop.f32.mrf.mxu0
    %v2068 = vadd.f32 0.0, %v2067
    %v2069 = vpop.f32.mrf.mxu0
    %v2070 = vadd.f32 0.0, %v2069
    %2071 = vmatmul.bf16.gmra.mxu0 %v1484
    %v2072 = vpop.f32.mrf.mxu0
    %v2073 = vadd.f32 0.0, %v2072
    %v2074 = vpop.f32.mrf.mxu0
    %v2075 = vadd.f32 0.0, %v2074
    %2076 = vmatmul.bf16.gmra.mxu0 %v1488
    %v2077 = vpop.f32.mrf.mxu0
    %v2078 = vadd.f32 0.0, %v2077
    %v2079 = vpop.f32.mrf.mxu0
    %v2080 = vadd.f32 0.0, %v2079
    %2081 = vmatmul.bf16.gmra.mxu0 %v1492
    %v2082 = vpop.f32.mrf.mxu0
    %v2083 = vadd.f32 0.0, %v2082
    %v2084 = vpop.f32.mrf.mxu0
    %v2085 = vadd.f32 0.0, %v2084
    %2086 = vmatmul.bf16.gmra.mxu0 %v1496
    %v2087 = vpop.f32.mrf.mxu0
    %v2088 = vadd.f32 0.0, %v2087
    %v2089 = vpop.f32.mrf.mxu0
    %v2090 = vadd.f32 0.0, %v2089
    %2091 = vmatmul.bf16.gmra.mxu0 %v1500
    %v2092 = vpop.f32.mrf.mxu0
    %v2093 = vadd.f32 0.0, %v2092
    %v2094 = vpop.f32.mrf.mxu0
    %v2095 = vadd.f32 0.0, %v2094
    %2096 = vmatmul.bf16.gmra.mxu0 %v1504
    %v2097 = vpop.f32.mrf.mxu0
    %v2098 = vadd.f32 0.0, %v2097
    %v2099 = vpop.f32.mrf.mxu0
    %v2100 = vadd.f32 0.0, %v2099
    %2101 = vmatmul.bf16.gmra.mxu0 %v1508
    %v2102 = vpop.f32.mrf.mxu0
    %v2103 = vadd.f32 0.0, %v2102
    %v2104 = vpop.f32.mrf.mxu0
    %v2105 = vadd.f32 0.0, %v2104
    %2106 = vmatmul.bf16.gmra.mxu0 %v1512
    %v2107 = vpop.f32.mrf.mxu0
    %v2108 = vadd.f32 0.0, %v2107
    %v2109 = vpop.f32.mrf.mxu0
    %v2110 = vadd.f32 0.0, %v2109
    %2111 = vmatmul.bf16.gmra.mxu0 %v1516
    %v2112 = vpop.f32.mrf.mxu0
    %v2113 = vadd.f32 0.0, %v2112
    %v2114 = vpop.f32.mrf.mxu0
    %v2115 = vadd.f32 0.0, %v2114
    %2116 = vmatmul.bf16.gmra.mxu0 %v1520
    %v2117 = vpop.f32.mrf.mxu0
    %v2118 = vadd.f32 0.0, %v2117
    %v2119 = vpop.f32.mrf.mxu0
    %v2120 = vadd.f32 0.0, %v2119
    %2121 = vmatmul.bf16.gmra.mxu0 %v1524
    %v2122 = vpop.f32.mrf.mxu0
    %v2123 = vadd.f32 0.0, %v2122
    %v2124 = vpop.f32.mrf.mxu0
    %v2125 = vadd.f32 0.0, %v2124
    %2126 = vmatmul.bf16.gmra.mxu0 %v1528
    %v2127 = vpop.f32.mrf.mxu0
    %v2128 = vadd.f32 0.0, %v2127
    %v2129 = vpop.f32.mrf.mxu0
    %v2130 = vadd.f32 0.0, %v2129
    %2131 = vmatmul.bf16.gmra.mxu0 %v1532
    %v2132 = vpop.f32.mrf.mxu0
    %v2133 = vadd.f32 0.0, %v2132
    %v2134 = vpop.f32.mrf.mxu0
    %v2135 = vadd.f32 0.0, %v2134
    %2136 = vmatmul.bf16.gmra.mxu0 %v1536
    %v2137 = vpop.f32.mrf.mxu0
    %v2138 = vadd.f32 0.0, %v2137
    %v2139 = vpop.f32.mrf.mxu0
    %v2140 = vadd.f32 0.0, %v2139
    %2141 = vmatmul.bf16.gmra.mxu0 %v1540
    %v2142 = vpop.f32.mrf.mxu0
    %v2143 = vadd.f32 0.0, %v2142
    %v2144 = vpop.f32.mrf.mxu0
    %v2145 = vadd.f32 0.0, %v2144
    %2146 = vmatmul.bf16.gmra.mxu0 %v1544
    %v2147 = vpop.f32.mrf.mxu0
    %v2148 = vadd.f32 0.0, %v2147
    %v2149 = vpop.f32.mrf.mxu0
    %v2150 = vadd.f32 0.0, %v2149
    %2151 = vmatmul.bf16.gmra.mxu0 %v1548
    %v2152 = vpop.f32.mrf.mxu0
    %v2153 = vadd.f32 0.0, %v2152
    %v2154 = vpop.f32.mrf.mxu0
    %v2155 = vadd.f32 0.0, %v2154
    %2156 = vmatmul.bf16.gmra.mxu0 %v1552
    %v2157 = vpop.f32.mrf.mxu0
    %v2158 = vadd.f32 0.0, %v2157
    %v2159 = vpop.f32.mrf.mxu0
    %v2160 = vadd.f32 0.0, %v2159
    %2161 = vmatmul.bf16.gmra.mxu0 %v1556
    %v2162 = vpop.f32.mrf.mxu0
    %v2163 = vadd.f32 0.0, %v2162
    %v2164 = vpop.f32.mrf.mxu0
    %v2165 = vadd.f32 0.0, %v2164
    %2166 = vmatmul.bf16.gmra.mxu0 %v1560
    %v2167 = vpop.f32.mrf.mxu0
    %v2168 = vadd.f32 0.0, %v2167
    %v2169 = vpop.f32.mrf.mxu0
    %v2170 = vadd.f32 0.0, %v2169
    %2171 = vmatmul.bf16.gmra.mxu0 %v1564
    %v2172 = vpop.f32.mrf.mxu0
    %v2173 = vadd.f32 0.0, %v2172
    %v2174 = vpop.f32.mrf.mxu0
    %v2175 = vadd.f32 0.0, %v2174
    %2176 = vmatmul.bf16.gmra.mxu0 %v1568
    %v2177 = vpop.f32.mrf.mxu0
    %v2178 = vadd.f32 0.0, %v2177
    %v2179 = vpop.f32.mrf.mxu0
    %v2180 = vadd.f32 0.0, %v2179
    %2181 = vmatmul.bf16.gmra.mxu0 %v1572
    %v2182 = vpop.f32.mrf.mxu0
    %v2183 = vadd.f32 0.0, %v2182
    %v2184 = vpop.f32.mrf.mxu0
    %v2185 = vadd.f32 0.0, %v2184
    %2186 = vmatmul.bf16.gmra.mxu0 %v1576
    %v2187 = vpop.f32.mrf.mxu0
    %v2188 = vadd.f32 0.0, %v2187
    %v2189 = vpop.f32.mrf.mxu0
    %v2190 = vadd.f32 0.0, %v2189
    %2191 = vmatmul.bf16.gmra.mxu0 %v1580
    %v2192 = vpop.f32.mrf.mxu0
    %v2193 = vadd.f32 0.0, %v2192
    %v2194 = vpop.f32.mrf.mxu0
    %v2195 = vadd.f32 0.0, %v2194
    %2196 = vmatmul.bf16.gmra.mxu0 %v1584
    %v2197 = vpop.f32.mrf.mxu0
    %v2198 = vadd.f32 0.0, %v2197
    %v2199 = vpop.f32.mrf.mxu0
    %v2200 = vadd.f32 0.0, %v2199
    %2201 = vmatmul.bf16.gmra.mxu0 %v1588
    %v2202 = vpop.f32.mrf.mxu0
    %v2203 = vadd.f32 0.0, %v2202
    %v2204 = vpop.f32.mrf.mxu0
    %v2205 = vadd.f32 0.0, %v2204
    %2206 = vmatmul.bf16.gmra.mxu0 %v1592
    %v2207 = vpop.f32.mrf.mxu0
    %v2208 = vadd.f32 0.0, %v2207
    %v2209 = vpop.f32.mrf.mxu0
    %v2210 = vadd.f32 0.0, %v2209
    %2211 = vmatmul.bf16.gmra.mxu0 %v1596
    %v2212 = vpop.f32.mrf.mxu0
    %v2213 = vadd.f32 0.0, %v2212
    %v2214 = vpop.f32.mrf.mxu0
    %v2215 = vadd.f32 0.0, %v2214
    %2216 = vmatmul.bf16.gmra.mxu0 %v1600
    %v2217 = vpop.f32.mrf.mxu0
    %v2218 = vadd.f32 0.0, %v2217
    %v2219 = vpop.f32.mrf.mxu0
    %v2220 = vadd.f32 0.0, %v2219
    %2221 = vmatmul.bf16.gmra.mxu0 %v1604
    %v2222 = vpop.f32.mrf.mxu0
    %v2223 = vadd.f32 0.0, %v2222
    %v2224 = vpop.f32.mrf.mxu0
    %v2225 = vadd.f32 0.0, %v2224
    %2226 = vmatmul.bf16.gmra.mxu0 %v1608
    %v2227 = vpop.f32.mrf.mxu0
    %v2228 = vadd.f32 0.0, %v2227
    %v2229 = vpop.f32.mrf.mxu0
    %v2230 = vadd.f32 0.0, %v2229
    %2231 = vmatmul.bf16.gmra.mxu0 %v1612
    %v2232 = vpop.f32.mrf.mxu0
    %v2233 = vadd.f32 0.0, %v2232
    %v2234 = vpop.f32.mrf.mxu0
    %v2235 = vadd.f32 0.0, %v2234
    %2236 = vmatmul.bf16.gmra.mxu0 %v1616
    %v2237 = vpop.f32.mrf.mxu0
    %v2238 = vadd.f32 0.0, %v2237
    %v2239 = vpop.f32.mrf.mxu0
    %v2240 = vadd.f32 0.0, %v2239
    %2241 = vmatmul.bf16.gmra.mxu0 %v1620
    %v2242 = vpop.f32.mrf.mxu0
    %v2243 = vadd.f32 0.0, %v2242
    %v2244 = vpop.f32.mrf.mxu0
    %v2245 = vadd.f32 0.0, %v2244
    %2246 = vmatmul.bf16.gmra.mxu0 %v1624
    %v2247 = vpop.f32.mrf.mxu0
    %v2248 = vadd.f32 0.0, %v2247
    %v2249 = vpop.f32.mrf.mxu0
    %v2250 = vadd.f32 0.0, %v2249
    %2251 = vmatmul.bf16.gmra.mxu0 %v1628
    %v2252 = vpop.f32.mrf.mxu0
    %v2253 = vadd.f32 0.0, %v2252
    %v2254 = vpop.f32.mrf.mxu0
    %v2255 = vadd.f32 0.0, %v2254
    %2256 = vmatmul.bf16.gmra.mxu0 %v1632
    %v2257 = vpop.f32.mrf.mxu0
    %v2258 = vadd.f32 0.0, %v2257
    %v2259 = vpop.f32.mrf.mxu0
    %v2260 = vadd.f32 0.0, %v2259
    %2261 = vmatmul.bf16.gmra.mxu0 %v1636
    %v2262 = vpop.f32.mrf.mxu0
    %v2263 = vadd.f32 0.0, %v2262
    %v2264 = vpop.f32.mrf.mxu0
    %v2265 = vadd.f32 0.0, %v2264
    %2266 = vmatmul.bf16.gmra.mxu0 %v1640
    %v2267 = vpop.f32.mrf.mxu0
    %v2268 = vadd.f32 0.0, %v2267
    %v2269 = vpop.f32.mrf.mxu0
    %v2270 = vadd.f32 0.0, %v2269
    %2271 = vmatmul.bf16.gmra.mxu0 %v1644
    %v2272 = vpop.f32.mrf.mxu0
    %v2273 = vadd.f32 0.0, %v2272
    %v2274 = vpop.f32.mrf.mxu0
    %v2275 = vadd.f32 0.0, %v2274
    %2276 = vmatmul.bf16.gmra.mxu0 %v1648
    %v2277 = vpop.f32.mrf.mxu0
    %v2278 = vadd.f32 0.0, %v2277
    %v2279 = vpop.f32.mrf.mxu0
    %v2280 = vadd.f32 0.0, %v2279
    %2281 = vmatmul.bf16.gmra.mxu0 %v1652
    %v2282 = vpop.f32.mrf.mxu0
    %v2283 = vadd.f32 0.0, %v2282
    %v2284 = vpop.f32.mrf.mxu0
    %v2285 = vadd.f32 0.0, %v2284
    %2286 = vmatmul.bf16.gmra.mxu0 %v1656
    %v2287 = vpop.f32.mrf.mxu0
    %v2288 = vadd.f32 0.0, %v2287
    %v2289 = vpop.f32.mrf.mxu0
    %v2290 = vadd.f32 0.0, %v2289
    %2291 = vmatmul.bf16.gmra.mxu0 %v1660
    %v2292 = vpop.f32.mrf.mxu0
    %v2293 = vadd.f32 0.0, %v2292
    %v2294 = vpop.f32.mrf.mxu0
    %v2295 = vadd.f32 0.0, %v2294
    %2296 = vmatmul.bf16.gmra.mxu0 %v1664
    %v2297 = vpop.f32.mrf.mxu0
    %v2298 = vadd.f32 0.0, %v2297
    %v2299 = vpop.f32.mrf.mxu0
    %v2300 = vadd.f32 0.0, %v2299
    %2301 = vmatmul.bf16.gmra.mxu0 %v1668
    %v2302 = vpop.f32.mrf.mxu0
    %v2303 = vadd.f32 0.0, %v2302
    %v2304 = vpop.f32.mrf.mxu0
    %v2305 = vadd.f32 0.0, %v2304
    %2306 = vmatmul.bf16.gmra.mxu0 %v1672
    %v2307 = vpop.f32.mrf.mxu0
    %v2308 = vadd.f32 0.0, %v2307
    %v2309 = vpop.f32.mrf.mxu0
    %v2310 = vadd.f32 0.0, %v2309
    %2311 = vmatmul.bf16.gmra.mxu0 %v1676
    %v2312 = vpop.f32.mrf.mxu0
    %v2313 = vadd.f32 0.0, %v2312
    %v2314 = vpop.f32.mrf.mxu0
    %v2315 = vadd.f32 0.0, %v2314
    %2316 = vmatmul.bf16.gmra.mxu0 %v1680
    %v2317 = vpop.f32.mrf.mxu0
    %v2318 = vadd.f32 0.0, %v2317
    %v2319 = vpop.f32.mrf.mxu0
    %v2320 = vadd.f32 0.0, %v2319
    %2321 = vmatmul.bf16.gmra.mxu0 %v1684
    %v2322 = vpop.f32.mrf.mxu0
    %v2323 = vadd.f32 0.0, %v2322
    %v2324 = vpop.f32.mrf.mxu0
    %v2325 = vadd.f32 0.0, %v2324
    %2326 = vmatmul.bf16.gmra.mxu0 %v1688
    %v2327 = vpop.f32.mrf.mxu0
    %v2328 = vadd.f32 0.0, %v2327
    %v2329 = vpop.f32.mrf.mxu0
    %v2330 = vadd.f32 0.0, %v2329
    %2331 = vmatmul.bf16.gmra.mxu0 %v1692
    %v2332 = vpop.f32.mrf.mxu0
    %v2333 = vadd.f32 0.0, %v2332
    %v2334 = vpop.f32.mrf.mxu0
    %v2335 = vadd.f32 0.0, %v2334
    %2336 = vmatmul.bf16.gmra.mxu0 %v1696
    %v2337 = vpop.f32.mrf.mxu0
    %v2338 = vadd.f32 0.0, %v2337
    %v2339 = vpop.f32.mrf.mxu0
    %v2340 = vadd.f32 0.0, %v2339
    %2341 = vmatmul.bf16.gmra.mxu0 %v1700
    %v2342 = vpop.f32.mrf.mxu0
    %v2343 = vadd.f32 0.0, %v2342
    %v2344 = vpop.f32.mrf.mxu0
    %v2345 = vadd.f32 0.0, %v2344
    %2346 = vmatmul.bf16.gmra.mxu0 %v1704
    %v2347 = vpop.f32.mrf.mxu0
    %v2348 = vadd.f32 0.0, %v2347
    %v2349 = vpop.f32.mrf.mxu0
    %v2350 = vadd.f32 0.0, %v2349
    %2351 = vmatmul.bf16.gmra.mxu0 %v1708
    %v2352 = vpop.f32.mrf.mxu0
    %v2353 = vadd.f32 0.0, %v2352
    %v2354 = vpop.f32.mrf.mxu0
    %v2355 = vadd.f32 0.0, %v2354
    %2356 = vmatmul.bf16.gmra.mxu0 %v1712
    %v2357 = vpop.f32.mrf.mxu0
    %v2358 = vadd.f32 0.0, %v2357
    %v2359 = vpop.f32.mrf.mxu0
    %v2360 = vadd.f32 0.0, %v2359
    %2361 = vmatmul.bf16.gmra.mxu0 %v1716
    %v2362 = vpop.f32.mrf.mxu0
    %v2363 = vadd.f32 0.0, %v2362
    %v2364 = vpop.f32.mrf.mxu0
    %v2365 = vadd.f32 0.0, %v2364
    %2366 = vmatmul.bf16.gmra.mxu0 %v1720
    %v2367 = vpop.f32.mrf.mxu0
    %v2368 = vadd.f32 0.0, %v2367
    %v2369 = vpop.f32.mrf.mxu0
    %v2370 = vadd.f32 0.0, %v2369
    %2371 = vmatmul.bf16.gmra.mxu0 %v1724
    %v2372 = vpop.f32.mrf.mxu0
    %v2373 = vadd.f32 0.0, %v2372
    %v2374 = vpop.f32.mrf.mxu0
    %v2375 = vadd.f32 0.0, %v2374
    %2376 = vmatmul.bf16.gmra.mxu0 %v1728
    %v2377 = vpop.f32.mrf.mxu0
    %v2378 = vadd.f32 0.0, %v2377
    %v2379 = vpop.f32.mrf.mxu0
    %v2380 = vadd.f32 0.0, %v2379
    %2381 = vmatmul.bf16.gmra.mxu0 %v1732
    %v2382 = vpop.f32.mrf.mxu0
    %v2383 = vadd.f32 0.0, %v2382
    %v2384 = vpop.f32.mrf.mxu0
    %v2385 = vadd.f32 0.0, %v2384
    %2386 = vmatmul.bf16.gmra.mxu0 %v1736
    %v2387 = vpop.f32.mrf.mxu0
    %v2388 = vadd.f32 0.0, %v2387
    %v2389 = vpop.f32.mrf.mxu0
    %v2390 = vadd.f32 0.0, %v2389
    %2391 = vmatmul.bf16.gmra.mxu0 %v1740
    %v2392 = vpop.f32.mrf.mxu0
    %v2393 = vadd.f32 0.0, %v2392
    %v2394 = vpop.f32.mrf.mxu0
    %v2395 = vadd.f32 0.0, %v2394
    %2396 = vmatmul.bf16.gmra.mxu0 %v1744
    %v2397 = vpop.f32.mrf.mxu0
    %v2398 = vadd.f32 0.0, %v2397
    %v2399 = vpop.f32.mrf.mxu0
    %v2400 = vadd.f32 0.0, %v2399
    %2401 = vmatmul.bf16.gmra.mxu0 %v1748
    %v2402 = vpop.f32.mrf.mxu0
    %v2403 = vadd.f32 0.0, %v2402
    %v2404 = vpop.f32.mrf.mxu0
    %v2405 = vadd.f32 0.0, %v2404
    %2406 = vmatmul.bf16.gmra.mxu0 %v1752
    %v2407 = vpop.f32.mrf.mxu0
    %v2408 = vadd.f32 0.0, %v2407
    %v2409 = vpop.f32.mrf.mxu0
    %v2410 = vadd.f32 0.0, %v2409
    %2411 = vmatmul.bf16.gmra.mxu0 %v1756
    %v2412 = vpop.f32.mrf.mxu0
    %v2413 = vadd.f32 0.0, %v2412
    %v2414 = vpop.f32.mrf.mxu0
    %v2415 = vadd.f32 0.0, %v2414
    %2416 = vdwg.mxu0
    %2417 = vmatpush.bf16.msra.mxu0 %v591
    %2418 = vmatpush.bf16.msra.mxu0 %v590
    %2419 = vmatpush.bf16.msra.mxu0 %v589
    %2420 = vmatpush.bf16.msra.mxu0 %v588
    %2421 = vmatpush.bf16.msra.mxu0 %v587
    %2422 = vmatpush.bf16.msra.mxu0 %v586
    %2423 = vmatpush.bf16.msra.mxu0 %v585
    %2424 = vmatpush.bf16.msra.mxu0 %v584
    %2425 = vmatmul.bf16.gmra.mxu0 %v1473
    %v2426 = vpop.f32.mrf.mxu0
    %v2427 = vadd.f32 %v2058, %v2426
    %v2428 = vpop.f32.mrf.mxu0
    %v2429 = vadd.f32 %v2060, %v2428
    %2430 = vmatmul.bf16.gmra.mxu0 %v1477
    %v2431 = vpop.f32.mrf.mxu0
    %v2432 = vadd.f32 %v2063, %v2431
    %v2433 = vpop.f32.mrf.mxu0
    %v2434 = vadd.f32 %v2065, %v2433
    %2435 = vmatmul.bf16.gmra.mxu0 %v1481
    %v2436 = vpop.f32.mrf.mxu0
    %v2437 = vadd.f32 %v2068, %v2436
    %v2438 = vpop.f32.mrf.mxu0
    %v2439 = vadd.f32 %v2070, %v2438
    %2440 = vmatmul.bf16.gmra.mxu0 %v1485
    %v2441 = vpop.f32.mrf.mxu0
    %v2442 = vadd.f32 %v2073, %v2441
    %v2443 = vpop.f32.mrf.mxu0
    %v2444 = vadd.f32 %v2075, %v2443
    %2445 = vmatmul.bf16.gmra.mxu0 %v1489
    %v2446 = vpop.f32.mrf.mxu0
    %v2447 = vadd.f32 %v2078, %v2446
    %v2448 = vpop.f32.mrf.mxu0
    %v2449 = vadd.f32 %v2080, %v2448
    %2450 = vmatmul.bf16.gmra.mxu0 %v1493
    %v2451 = vpop.f32.mrf.mxu0
    %v2452 = vadd.f32 %v2083, %v2451
    %v2453 = vpop.f32.mrf.mxu0
    %v2454 = vadd.f32 %v2085, %v2453
    %2455 = vmatmul.bf16.gmra.mxu0 %v1497
    %v2456 = vpop.f32.mrf.mxu0
    %v2457 = vadd.f32 %v2088, %v2456
    %v2458 = vpop.f32.mrf.mxu0
    %v2459 = vadd.f32 %v2090, %v2458
    %2460 = vmatmul.bf16.gmra.mxu0 %v1501
    %v2461 = vpop.f32.mrf.mxu0
    %v2462 = vadd.f32 %v2093, %v2461
    %v2463 = vpop.f32.mrf.mxu0
    %v2464 = vadd.f32 %v2095, %v2463
    %2465 = vmatmul.bf16.gmra.mxu0 %v1505
    %v2466 = vpop.f32.mrf.mxu0
    %v2467 = vadd.f32 %v2098, %v2466
    %v2468 = vpop.f32.mrf.mxu0
    %v2469 = vadd.f32 %v2100, %v2468
    %2470 = vmatmul.bf16.gmra.mxu0 %v1509
    %v2471 = vpop.f32.mrf.mxu0
    %v2472 = vadd.f32 %v2103, %v2471
    %v2473 = vpop.f32.mrf.mxu0
    %v2474 = vadd.f32 %v2105, %v2473
    %2475 = vmatmul.bf16.gmra.mxu0 %v1513
    %v2476 = vpop.f32.mrf.mxu0
    %v2477 = vadd.f32 %v2108, %v2476
    %v2478 = vpop.f32.mrf.mxu0
    %v2479 = vadd.f32 %v2110, %v2478
    %2480 = vmatmul.bf16.gmra.mxu0 %v1517
    %v2481 = vpop.f32.mrf.mxu0
    %v2482 = vadd.f32 %v2113, %v2481
    %v2483 = vpop.f32.mrf.mxu0
    %v2484 = vadd.f32 %v2115, %v2483
    %2485 = vmatmul.bf16.gmra.mxu0 %v1521
    %v2486 = vpop.f32.mrf.mxu0
    %v2487 = vadd.f32 %v2118, %v2486
    %v2488 = vpop.f32.mrf.mxu0
    %v2489 = vadd.f32 %v2120, %v2488
    %2490 = vmatmul.bf16.gmra.mxu0 %v1525
    %v2491 = vpop.f32.mrf.mxu0
    %v2492 = vadd.f32 %v2123, %v2491
    %v2493 = vpop.f32.mrf.mxu0
    %v2494 = vadd.f32 %v2125, %v2493
    %2495 = vmatmul.bf16.gmra.mxu0 %v1529
    %v2496 = vpop.f32.mrf.mxu0
    %v2497 = vadd.f32 %v2128, %v2496
    %v2498 = vpop.f32.mrf.mxu0
    %v2499 = vadd.f32 %v2130, %v2498
    %2500 = vmatmul.bf16.gmra.mxu0 %v1533
    %v2501 = vpop.f32.mrf.mxu0
    %v2502 = vadd.f32 %v2133, %v2501
    %v2503 = vpop.f32.mrf.mxu0
    %v2504 = vadd.f32 %v2135, %v2503
    %2505 = vmatmul.bf16.gmra.mxu0 %v1537
    %v2506 = vpop.f32.mrf.mxu0
    %v2507 = vadd.f32 %v2138, %v2506
    %v2508 = vpop.f32.mrf.mxu0
    %v2509 = vadd.f32 %v2140, %v2508
    %2510 = vmatmul.bf16.gmra.mxu0 %v1541
    %v2511 = vpop.f32.mrf.mxu0
    %v2512 = vadd.f32 %v2143, %v2511
    %v2513 = vpop.f32.mrf.mxu0
    %v2514 = vadd.f32 %v2145, %v2513
    %2515 = vmatmul.bf16.gmra.mxu0 %v1545
    %v2516 = vpop.f32.mrf.mxu0
    %v2517 = vadd.f32 %v2148, %v2516
    %v2518 = vpop.f32.mrf.mxu0
    %v2519 = vadd.f32 %v2150, %v2518
    %2520 = vmatmul.bf16.gmra.mxu0 %v1549
    %v2521 = vpop.f32.mrf.mxu0
    %v2522 = vadd.f32 %v2153, %v2521
    %v2523 = vpop.f32.mrf.mxu0
    %v2524 = vadd.f32 %v2155, %v2523
    %2525 = vmatmul.bf16.gmra.mxu0 %v1553
    %v2526 = vpop.f32.mrf.mxu0
    %v2527 = vadd.f32 %v2158, %v2526
    %v2528 = vpop.f32.mrf.mxu0
    %v2529 = vadd.f32 %v2160, %v2528
    %2530 = vmatmul.bf16.gmra.mxu0 %v1557
    %v2531 = vpop.f32.mrf.mxu0
    %v2532 = vadd.f32 %v2163, %v2531
    %v2533 = vpop.f32.mrf.mxu0
    %v2534 = vadd.f32 %v2165, %v2533
    %2535 = vmatmul.bf16.gmra.mxu0 %v1561
    %v2536 = vpop.f32.mrf.mxu0
    %v2537 = vadd.f32 %v2168, %v2536
    %v2538 = vpop.f32.mrf.mxu0
    %v2539 = vadd.f32 %v2170, %v2538
    %2540 = vmatmul.bf16.gmra.mxu0 %v1565
    %v2541 = vpop.f32.mrf.mxu0
    %v2542 = vadd.f32 %v2173, %v2541
    %v2543 = vpop.f32.mrf.mxu0
    %v2544 = vadd.f32 %v2175, %v2543
    %2545 = vmatmul.bf16.gmra.mxu0 %v1569
    %v2546 = vpop.f32.mrf.mxu0
    %v2547 = vadd.f32 %v2178, %v2546
    %v2548 = vpop.f32.mrf.mxu0
    %v2549 = vadd.f32 %v2180, %v2548
    %2550 = vmatmul.bf16.gmra.mxu0 %v1573
    %v2551 = vpop.f32.mrf.mxu0
    %v2552 = vadd.f32 %v2183, %v2551
    %v2553 = vpop.f32.mrf.mxu0
    %v2554 = vadd.f32 %v2185, %v2553
    %2555 = vmatmul.bf16.gmra.mxu0 %v1577
    %v2556 = vpop.f32.mrf.mxu0
    %v2557 = vadd.f32 %v2188, %v2556
    %v2558 = vpop.f32.mrf.mxu0
    %v2559 = vadd.f32 %v2190, %v2558
    %2560 = vmatmul.bf16.gmra.mxu0 %v1581
    %v2561 = vpop.f32.mrf.mxu0
    %v2562 = vadd.f32 %v2193, %v2561
    %v2563 = vpop.f32.mrf.mxu0
    %v2564 = vadd.f32 %v2195, %v2563
    %2565 = vmatmul.bf16.gmra.mxu0 %v1585
    %v2566 = vpop.f32.mrf.mxu0
    %v2567 = vadd.f32 %v2198, %v2566
    %v2568 = vpop.f32.mrf.mxu0
    %v2569 = vadd.f32 %v2200, %v2568
    %2570 = vmatmul.bf16.gmra.mxu0 %v1589
    %v2571 = vpop.f32.mrf.mxu0
    %v2572 = vadd.f32 %v2203, %v2571
    %v2573 = vpop.f32.mrf.mxu0
    %v2574 = vadd.f32 %v2205, %v2573
    %2575 = vmatmul.bf16.gmra.mxu0 %v1593
    %v2576 = vpop.f32.mrf.mxu0
    %v2577 = vadd.f32 %v2208, %v2576
    %v2578 = vpop.f32.mrf.mxu0
    %v2579 = vadd.f32 %v2210, %v2578
    %2580 = vmatmul.bf16.gmra.mxu0 %v1597
    %v2581 = vpop.f32.mrf.mxu0
    %v2582 = vadd.f32 %v2213, %v2581
    %v2583 = vpop.f32.mrf.mxu0
    %v2584 = vadd.f32 %v2215, %v2583
    %2585 = vmatmul.bf16.gmra.mxu0 %v1601
    %v2586 = vpop.f32.mrf.mxu0
    %v2587 = vadd.f32 %v2218, %v2586
    %v2588 = vpop.f32.mrf.mxu0
    %v2589 = vadd.f32 %v2220, %v2588
    %2590 = vmatmul.bf16.gmra.mxu0 %v1605
    %v2591 = vpop.f32.mrf.mxu0
    %v2592 = vadd.f32 %v2223, %v2591
    %v2593 = vpop.f32.mrf.mxu0
    %v2594 = vadd.f32 %v2225, %v2593
    %2595 = vmatmul.bf16.gmra.mxu0 %v1609
    %v2596 = vpop.f32.mrf.mxu0
    %v2597 = vadd.f32 %v2228, %v2596
    %v2598 = vpop.f32.mrf.mxu0
    %v2599 = vadd.f32 %v2230, %v2598
    %2600 = vmatmul.bf16.gmra.mxu0 %v1613
    %v2601 = vpop.f32.mrf.mxu0
    %v2602 = vadd.f32 %v2233, %v2601
    %v2603 = vpop.f32.mrf.mxu0
    %v2604 = vadd.f32 %v2235, %v2603
    %2605 = vmatmul.bf16.gmra.mxu0 %v1617
    %v2606 = vpop.f32.mrf.mxu0
    %v2607 = vadd.f32 %v2238, %v2606
    %v2608 = vpop.f32.mrf.mxu0
    %v2609 = vadd.f32 %v2240, %v2608
    %2610 = vmatmul.bf16.gmra.mxu0 %v1621
    %v2611 = vpop.f32.mrf.mxu0
    %v2612 = vadd.f32 %v2243, %v2611
    %v2613 = vpop.f32.mrf.mxu0
    %v2614 = vadd.f32 %v2245, %v2613
    %2615 = vmatmul.bf16.gmra.mxu0 %v1625
    %v2616 = vpop.f32.mrf.mxu0
    %v2617 = vadd.f32 %v2248, %v2616
    %v2618 = vpop.f32.mrf.mxu0
    %v2619 = vadd.f32 %v2250, %v2618
    %2620 = vmatmul.bf16.gmra.mxu0 %v1629
    %v2621 = vpop.f32.mrf.mxu0
    %v2622 = vadd.f32 %v2253, %v2621
    %v2623 = vpop.f32.mrf.mxu0
    %v2624 = vadd.f32 %v2255, %v2623
    %2625 = vmatmul.bf16.gmra.mxu0 %v1633
    %v2626 = vpop.f32.mrf.mxu0
    %v2627 = vadd.f32 %v2258, %v2626
    %v2628 = vpop.f32.mrf.mxu0
    %v2629 = vadd.f32 %v2260, %v2628
    %2630 = vmatmul.bf16.gmra.mxu0 %v1637
    %v2631 = vpop.f32.mrf.mxu0
    %v2632 = vadd.f32 %v2263, %v2631
    %v2633 = vpop.f32.mrf.mxu0
    %v2634 = vadd.f32 %v2265, %v2633
    %2635 = vmatmul.bf16.gmra.mxu0 %v1641
    %v2636 = vpop.f32.mrf.mxu0
    %v2637 = vadd.f32 %v2268, %v2636
    %v2638 = vpop.f32.mrf.mxu0
    %v2639 = vadd.f32 %v2270, %v2638
    %2640 = vmatmul.bf16.gmra.mxu0 %v1645
    %v2641 = vpop.f32.mrf.mxu0
    %v2642 = vadd.f32 %v2273, %v2641
    %v2643 = vpop.f32.mrf.mxu0
    %v2644 = vadd.f32 %v2275, %v2643
    %2645 = vmatmul.bf16.gmra.mxu0 %v1649
    %v2646 = vpop.f32.mrf.mxu0
    %v2647 = vadd.f32 %v2278, %v2646
    %v2648 = vpop.f32.mrf.mxu0
    %v2649 = vadd.f32 %v2280, %v2648
    %2650 = vmatmul.bf16.gmra.mxu0 %v1653
    %v2651 = vpop.f32.mrf.mxu0
    %v2652 = vadd.f32 %v2283, %v2651
    %v2653 = vpop.f32.mrf.mxu0
    %v2654 = vadd.f32 %v2285, %v2653
    %2655 = vmatmul.bf16.gmra.mxu0 %v1657
    %v2656 = vpop.f32.mrf.mxu0
    %v2657 = vadd.f32 %v2288, %v2656
    %v2658 = vpop.f32.mrf.mxu0
    %v2659 = vadd.f32 %v2290, %v2658
    %2660 = vmatmul.bf16.gmra.mxu0 %v1661
    %v2661 = vpop.f32.mrf.mxu0
    %v2662 = vadd.f32 %v2293, %v2661
    %v2663 = vpop.f32.mrf.mxu0
    %v2664 = vadd.f32 %v2295, %v2663
    %2665 = vmatmul.bf16.gmra.mxu0 %v1665
    %v2666 = vpop.f32.mrf.mxu0
    %v2667 = vadd.f32 %v2298, %v2666
    %v2668 = vpop.f32.mrf.mxu0
    %v2669 = vadd.f32 %v2300, %v2668
    %2670 = vmatmul.bf16.gmra.mxu0 %v1669
    %v2671 = vpop.f32.mrf.mxu0
    %v2672 = vadd.f32 %v2303, %v2671
    %v2673 = vpop.f32.mrf.mxu0
    %v2674 = vadd.f32 %v2305, %v2673
    %2675 = vmatmul.bf16.gmra.mxu0 %v1673
    %v2676 = vpop.f32.mrf.mxu0
    %v2677 = vadd.f32 %v2308, %v2676
    %v2678 = vpop.f32.mrf.mxu0
    %v2679 = vadd.f32 %v2310, %v2678
    %2680 = vmatmul.bf16.gmra.mxu0 %v1677
    %v2681 = vpop.f32.mrf.mxu0
    %v2682 = vadd.f32 %v2313, %v2681
    %v2683 = vpop.f32.mrf.mxu0
    %v2684 = vadd.f32 %v2315, %v2683
    %2685 = vmatmul.bf16.gmra.mxu0 %v1681
    %v2686 = vpop.f32.mrf.mxu0
    %v2687 = vadd.f32 %v2318, %v2686
    %v2688 = vpop.f32.mrf.mxu0
    %v2689 = vadd.f32 %v2320, %v2688
    %2690 = vmatmul.bf16.gmra.mxu0 %v1685
    %v2691 = vpop.f32.mrf.mxu0
    %v2692 = vadd.f32 %v2323, %v2691
    %v2693 = vpop.f32.mrf.mxu0
    %v2694 = vadd.f32 %v2325, %v2693
    %2695 = vmatmul.bf16.gmra.mxu0 %v1689
    %v2696 = vpop.f32.mrf.mxu0
    %v2697 = vadd.f32 %v2328, %v2696
    %v2698 = vpop.f32.mrf.mxu0
    %v2699 = vadd.f32 %v2330, %v2698
    %2700 = vmatmul.bf16.gmra.mxu0 %v1693
    %v2701 = vpop.f32.mrf.mxu0
    %v2702 = vadd.f32 %v2333, %v2701
    %v2703 = vpop.f32.mrf.mxu0
    %v2704 = vadd.f32 %v2335, %v2703
    %2705 = vmatmul.bf16.gmra.mxu0 %v1697
    %v2706 = vpop.f32.mrf.mxu0
    %v2707 = vadd.f32 %v2338, %v2706
    %v2708 = vpop.f32.mrf.mxu0
    %v2709 = vadd.f32 %v2340, %v2708
    %2710 = vmatmul.bf16.gmra.mxu0 %v1701
    %v2711 = vpop.f32.mrf.mxu0
    %v2712 = vadd.f32 %v2343, %v2711
    %v2713 = vpop.f32.mrf.mxu0
    %v2714 = vadd.f32 %v2345, %v2713
    %2715 = vmatmul.bf16.gmra.mxu0 %v1705
    %v2716 = vpop.f32.mrf.mxu0
    %v2717 = vadd.f32 %v2348, %v2716
    %v2718 = vpop.f32.mrf.mxu0
    %v2719 = vadd.f32 %v2350, %v2718
    %2720 = vmatmul.bf16.gmra.mxu0 %v1709
    %v2721 = vpop.f32.mrf.mxu0
    %v2722 = vadd.f32 %v2353, %v2721
    %v2723 = vpop.f32.mrf.mxu0
    %v2724 = vadd.f32 %v2355, %v2723
    %2725 = vmatmul.bf16.gmra.mxu0 %v1713
    %v2726 = vpop.f32.mrf.mxu0
    %v2727 = vadd.f32 %v2358, %v2726
    %v2728 = vpop.f32.mrf.mxu0
    %v2729 = vadd.f32 %v2360, %v2728
    %2730 = vmatmul.bf16.gmra.mxu0 %v1717
    %v2731 = vpop.f32.mrf.mxu0
    %v2732 = vadd.f32 %v2363, %v2731
    %v2733 = vpop.f32.mrf.mxu0
    %v2734 = vadd.f32 %v2365, %v2733
    %2735 = vmatmul.bf16.gmra.mxu0 %v1721
    %v2736 = vpop.f32.mrf.mxu0
    %v2737 = vadd.f32 %v2368, %v2736
    %v2738 = vpop.f32.mrf.mxu0
    %v2739 = vadd.f32 %v2370, %v2738
    %2740 = vmatmul.bf16.gmra.mxu0 %v1725
    %v2741 = vpop.f32.mrf.mxu0
    %v2742 = vadd.f32 %v2373, %v2741
    %v2743 = vpop.f32.mrf.mxu0
    %v2744 = vadd.f32 %v2375, %v2743
    %2745 = vmatmul.bf16.gmra.mxu0 %v1729
    %v2746 = vpop.f32.mrf.mxu0
    %v2747 = vadd.f32 %v2378, %v2746
    %v2748 = vpop.f32.mrf.mxu0
    %v2749 = vadd.f32 %v2380, %v2748
    %2750 = vmatmul.bf16.gmra.mxu0 %v1733
    %v2751 = vpop.f32.mrf.mxu0
    %v2752 = vadd.f32 %v2383, %v2751
    %v2753 = vpop.f32.mrf.mxu0
    %v2754 = vadd.f32 %v2385, %v2753
    %2755 = vmatmul.bf16.gmra.mxu0 %v1737
    %v2756 = vpop.f32.mrf.mxu0
    %v2757 = vadd.f32 %v2388, %v2756
    %v2758 = vpop.f32.mrf.mxu0
    %v2759 = vadd.f32 %v2390, %v2758
    %2760 = vmatmul.bf16.gmra.mxu0 %v1741
    %v2761 = vpop.f32.mrf.mxu0
    %v2762 = vadd.f32 %v2393, %v2761
    %v2763 = vpop.f32.mrf.mxu0
    %v2764 = vadd.f32 %v2395, %v2763
    %2765 = vmatmul.bf16.gmra.mxu0 %v1745
    %v2766 = vpop.f32.mrf.mxu0
    %v2767 = vadd.f32 %v2398, %v2766
    %v2768 = vpop.f32.mrf.mxu0
    %v2769 = vadd.f32 %v2400, %v2768
    %2770 = vmatmul.bf16.gmra.mxu0 %v1749
    %v2771 = vpop.f32.mrf.mxu0
    %v2772 = vadd.f32 %v2403, %v2771
    %v2773 = vpop.f32.mrf.mxu0
    %v2774 = vadd.f32 %v2405, %v2773
    %2775 = vmatmul.bf16.gmra.mxu0 %v1753
    %v2776 = vpop.f32.mrf.mxu0
    %v2777 = vadd.f32 %v2408, %v2776
    %v2778 = vpop.f32.mrf.mxu0
    %v2779 = vadd.f32 %v2410, %v2778
    %2780 = vmatmul.bf16.gmra.mxu0 %v1757
    %v2781 = vpop.f32.mrf.mxu0
    %v2782 = vadd.f32 %v2413, %v2781
    %v2783 = vpop.f32.mrf.mxu0
    %v2784 = vadd.f32 %v2415, %v2783
    %2785 = vdwg.mxu0
    %2786 = vmatpush.bf16.msra.mxu0 %v599
    %2787 = vmatpush.bf16.msra.mxu0 %v598
    %2788 = vmatpush.bf16.msra.mxu0 %v597
    %2789 = vmatpush.bf16.msra.mxu0 %v596
    %2790 = vmatpush.bf16.msra.mxu0 %v595
    %2791 = vmatpush.bf16.msra.mxu0 %v594
    %2792 = vmatpush.bf16.msra.mxu0 %v593
    %2793 = vmatpush.bf16.msra.mxu0 %v592
    %2794 = vmatmul.bf16.gmra.mxu0 %v1474
    %v2795 = vpop.f32.mrf.mxu0
    %v2796 = vadd.f32 %v2427, %v2795
    %v2797 = vpop.f32.mrf.mxu0
    %v2798 = vadd.f32 %v2429, %v2797
    %2799 = vmatmul.bf16.gmra.mxu0 %v1478
    %v2800 = vpop.f32.mrf.mxu0
    %v2801 = vadd.f32 %v2432, %v2800
    %v2802 = vpop.f32.mrf.mxu0
    %v2803 = vadd.f32 %v2434, %v2802
    %2804 = vmatmul.bf16.gmra.mxu0 %v1482
    %v2805 = vpop.f32.mrf.mxu0
    %v2806 = vadd.f32 %v2437, %v2805
    %v2807 = vpop.f32.mrf.mxu0
    %v2808 = vadd.f32 %v2439, %v2807
    %2809 = vmatmul.bf16.gmra.mxu0 %v1486
    %v2810 = vpop.f32.mrf.mxu0
    %v2811 = vadd.f32 %v2442, %v2810
    %v2812 = vpop.f32.mrf.mxu0
    %v2813 = vadd.f32 %v2444, %v2812
    %2814 = vmatmul.bf16.gmra.mxu0 %v1490
    %v2815 = vpop.f32.mrf.mxu0
    %v2816 = vadd.f32 %v2447, %v2815
    %v2817 = vpop.f32.mrf.mxu0
    %v2818 = vadd.f32 %v2449, %v2817
    %2819 = vmatmul.bf16.gmra.mxu0 %v1494
    %v2820 = vpop.f32.mrf.mxu0
    %v2821 = vadd.f32 %v2452, %v2820
    %v2822 = vpop.f32.mrf.mxu0
    %v2823 = vadd.f32 %v2454, %v2822
    %2824 = vmatmul.bf16.gmra.mxu0 %v1498
    %v2825 = vpop.f32.mrf.mxu0
    %v2826 = vadd.f32 %v2457, %v2825
    %v2827 = vpop.f32.mrf.mxu0
    %v2828 = vadd.f32 %v2459, %v2827
    %2829 = vmatmul.bf16.gmra.mxu0 %v1502
    %v2830 = vpop.f32.mrf.mxu0
    %v2831 = vadd.f32 %v2462, %v2830
    %v2832 = vpop.f32.mrf.mxu0
    %v2833 = vadd.f32 %v2464, %v2832
    %2834 = vmatmul.bf16.gmra.mxu0 %v1506
    %v2835 = vpop.f32.mrf.mxu0
    %v2836 = vadd.f32 %v2467, %v2835
    %v2837 = vpop.f32.mrf.mxu0
    %v2838 = vadd.f32 %v2469, %v2837
    %2839 = vmatmul.bf16.gmra.mxu0 %v1510
    %v2840 = vpop.f32.mrf.mxu0
    %v2841 = vadd.f32 %v2472, %v2840
    %v2842 = vpop.f32.mrf.mxu0
    %v2843 = vadd.f32 %v2474, %v2842
    %2844 = vmatmul.bf16.gmra.mxu0 %v1514
    %v2845 = vpop.f32.mrf.mxu0
    %v2846 = vadd.f32 %v2477, %v2845
    %v2847 = vpop.f32.mrf.mxu0
    %v2848 = vadd.f32 %v2479, %v2847
    %2849 = vmatmul.bf16.gmra.mxu0 %v1518
    %v2850 = vpop.f32.mrf.mxu0
    %v2851 = vadd.f32 %v2482, %v2850
    %v2852 = vpop.f32.mrf.mxu0
    %v2853 = vadd.f32 %v2484, %v2852
    %2854 = vmatmul.bf16.gmra.mxu0 %v1522
    %v2855 = vpop.f32.mrf.mxu0
    %v2856 = vadd.f32 %v2487, %v2855
    %v2857 = vpop.f32.mrf.mxu0
    %v2858 = vadd.f32 %v2489, %v2857
    %2859 = vmatmul.bf16.gmra.mxu0 %v1526
    %v2860 = vpop.f32.mrf.mxu0
    %v2861 = vadd.f32 %v2492, %v2860
    %v2862 = vpop.f32.mrf.mxu0
    %v2863 = vadd.f32 %v2494, %v2862
    %2864 = vmatmul.bf16.gmra.mxu0 %v1530
    %v2865 = vpop.f32.mrf.mxu0
    %v2866 = vadd.f32 %v2497, %v2865
    %v2867 = vpop.f32.mrf.mxu0
    %v2868 = vadd.f32 %v2499, %v2867
    %2869 = vmatmul.bf16.gmra.mxu0 %v1534
    %v2870 = vpop.f32.mrf.mxu0
    %v2871 = vadd.f32 %v2502, %v2870
    %v2872 = vpop.f32.mrf.mxu0
    %v2873 = vadd.f32 %v2504, %v2872
    %2874 = vmatmul.bf16.gmra.mxu0 %v1538
    %v2875 = vpop.f32.mrf.mxu0
    %v2876 = vadd.f32 %v2507, %v2875
    %v2877 = vpop.f32.mrf.mxu0
    %v2878 = vadd.f32 %v2509, %v2877
    %2879 = vmatmul.bf16.gmra.mxu0 %v1542
    %v2880 = vpop.f32.mrf.mxu0
    %v2881 = vadd.f32 %v2512, %v2880
    %v2882 = vpop.f32.mrf.mxu0
    %v2883 = vadd.f32 %v2514, %v2882
    %2884 = vmatmul.bf16.gmra.mxu0 %v1546
    %v2885 = vpop.f32.mrf.mxu0
    %v2886 = vadd.f32 %v2517, %v2885
    %v2887 = vpop.f32.mrf.mxu0
    %v2888 = vadd.f32 %v2519, %v2887
    %2889 = vmatmul.bf16.gmra.mxu0 %v1550
    %v2890 = vpop.f32.mrf.mxu0
    %v2891 = vadd.f32 %v2522, %v2890
    %v2892 = vpop.f32.mrf.mxu0
    %v2893 = vadd.f32 %v2524, %v2892
    %2894 = vmatmul.bf16.gmra.mxu0 %v1554
    %v2895 = vpop.f32.mrf.mxu0
    %v2896 = vadd.f32 %v2527, %v2895
    %v2897 = vpop.f32.mrf.mxu0
    %v2898 = vadd.f32 %v2529, %v2897
    %2899 = vmatmul.bf16.gmra.mxu0 %v1558
    %v2900 = vpop.f32.mrf.mxu0
    %v2901 = vadd.f32 %v2532, %v2900
    %v2902 = vpop.f32.mrf.mxu0
    %v2903 = vadd.f32 %v2534, %v2902
    %2904 = vmatmul.bf16.gmra.mxu0 %v1562
    %v2905 = vpop.f32.mrf.mxu0
    %v2906 = vadd.f32 %v2537, %v2905
    %v2907 = vpop.f32.mrf.mxu0
    %v2908 = vadd.f32 %v2539, %v2907
    %2909 = vmatmul.bf16.gmra.mxu0 %v1566
    %v2910 = vpop.f32.mrf.mxu0
    %v2911 = vadd.f32 %v2542, %v2910
    %v2912 = vpop.f32.mrf.mxu0
    %v2913 = vadd.f32 %v2544, %v2912
    %2914 = vmatmul.bf16.gmra.mxu0 %v1570
    %v2915 = vpop.f32.mrf.mxu0
    %v2916 = vadd.f32 %v2547, %v2915
    %v2917 = vpop.f32.mrf.mxu0
    %v2918 = vadd.f32 %v2549, %v2917
    %2919 = vmatmul.bf16.gmra.mxu0 %v1574
    %v2920 = vpop.f32.mrf.mxu0
    %v2921 = vadd.f32 %v2552, %v2920
    %v2922 = vpop.f32.mrf.mxu0
    %v2923 = vadd.f32 %v2554, %v2922
    %2924 = vmatmul.bf16.gmra.mxu0 %v1578
    %v2925 = vpop.f32.mrf.mxu0
    %v2926 = vadd.f32 %v2557, %v2925
    %v2927 = vpop.f32.mrf.mxu0
    %v2928 = vadd.f32 %v2559, %v2927
    %2929 = vmatmul.bf16.gmra.mxu0 %v1582
    %v2930 = vpop.f32.mrf.mxu0
    %v2931 = vadd.f32 %v2562, %v2930
    %v2932 = vpop.f32.mrf.mxu0
    %v2933 = vadd.f32 %v2564, %v2932
    %2934 = vmatmul.bf16.gmra.mxu0 %v1586
    %v2935 = vpop.f32.mrf.mxu0
    %v2936 = vadd.f32 %v2567, %v2935
    %v2937 = vpop.f32.mrf.mxu0
    %v2938 = vadd.f32 %v2569, %v2937
    %2939 = vmatmul.bf16.gmra.mxu0 %v1590
    %v2940 = vpop.f32.mrf.mxu0
    %v2941 = vadd.f32 %v2572, %v2940
    %v2942 = vpop.f32.mrf.mxu0
    %v2943 = vadd.f32 %v2574, %v2942
    %2944 = vmatmul.bf16.gmra.mxu0 %v1594
    %v2945 = vpop.f32.mrf.mxu0
    %v2946 = vadd.f32 %v2577, %v2945
    %v2947 = vpop.f32.mrf.mxu0
    %v2948 = vadd.f32 %v2579, %v2947
    %2949 = vmatmul.bf16.gmra.mxu0 %v1598
    %v2950 = vpop.f32.mrf.mxu0
    %v2951 = vadd.f32 %v2582, %v2950
    %v2952 = vpop.f32.mrf.mxu0
    %v2953 = vadd.f32 %v2584, %v2952
    %2954 = vmatmul.bf16.gmra.mxu0 %v1602
    %v2955 = vpop.f32.mrf.mxu0
    %v2956 = vadd.f32 %v2587, %v2955
    %v2957 = vpop.f32.mrf.mxu0
    %v2958 = vadd.f32 %v2589, %v2957
    %2959 = vmatmul.bf16.gmra.mxu0 %v1606
    %v2960 = vpop.f32.mrf.mxu0
    %v2961 = vadd.f32 %v2592, %v2960
    %v2962 = vpop.f32.mrf.mxu0
    %v2963 = vadd.f32 %v2594, %v2962
    %2964 = vmatmul.bf16.gmra.mxu0 %v1610
    %v2965 = vpop.f32.mrf.mxu0
    %v2966 = vadd.f32 %v2597, %v2965
    %v2967 = vpop.f32.mrf.mxu0
    %v2968 = vadd.f32 %v2599, %v2967
    %2969 = vmatmul.bf16.gmra.mxu0 %v1614
    %v2970 = vpop.f32.mrf.mxu0
    %v2971 = vadd.f32 %v2602, %v2970
    %v2972 = vpop.f32.mrf.mxu0
    %v2973 = vadd.f32 %v2604, %v2972
    %2974 = vmatmul.bf16.gmra.mxu0 %v1618
    %v2975 = vpop.f32.mrf.mxu0
    %v2976 = vadd.f32 %v2607, %v2975
    %v2977 = vpop.f32.mrf.mxu0
    %v2978 = vadd.f32 %v2609, %v2977
    %2979 = vmatmul.bf16.gmra.mxu0 %v1622
    %v2980 = vpop.f32.mrf.mxu0
    %v2981 = vadd.f32 %v2612, %v2980
    %v2982 = vpop.f32.mrf.mxu0
    %v2983 = vadd.f32 %v2614, %v2982
    %2984 = vmatmul.bf16.gmra.mxu0 %v1626
    %v2985 = vpop.f32.mrf.mxu0
    %v2986 = vadd.f32 %v2617, %v2985
    %v2987 = vpop.f32.mrf.mxu0
    %v2988 = vadd.f32 %v2619, %v2987
    %2989 = vmatmul.bf16.gmra.mxu0 %v1630
    %v2990 = vpop.f32.mrf.mxu0
    %v2991 = vadd.f32 %v2622, %v2990
    %v2992 = vpop.f32.mrf.mxu0
    %v2993 = vadd.f32 %v2624, %v2992
    %2994 = vmatmul.bf16.gmra.mxu0 %v1634
    %v2995 = vpop.f32.mrf.mxu0
    %v2996 = vadd.f32 %v2627, %v2995
    %v2997 = vpop.f32.mrf.mxu0
    %v2998 = vadd.f32 %v2629, %v2997
    %2999 = vmatmul.bf16.gmra.mxu0 %v1638
    %v3000 = vpop.f32.mrf.mxu0
    %v3001 = vadd.f32 %v2632, %v3000
    %v3002 = vpop.f32.mrf.mxu0
    %v3003 = vadd.f32 %v2634, %v3002
    %3004 = vmatmul.bf16.gmra.mxu0 %v1642
    %v3005 = vpop.f32.mrf.mxu0
    %v3006 = vadd.f32 %v2637, %v3005
    %v3007 = vpop.f32.mrf.mxu0
    %v3008 = vadd.f32 %v2639, %v3007
    %3009 = vmatmul.bf16.gmra.mxu0 %v1646
    %v3010 = vpop.f32.mrf.mxu0
    %v3011 = vadd.f32 %v2642, %v3010
    %v3012 = vpop.f32.mrf.mxu0
    %v3013 = vadd.f32 %v2644, %v3012
    %3014 = vmatmul.bf16.gmra.mxu0 %v1650
    %v3015 = vpop.f32.mrf.mxu0
    %v3016 = vadd.f32 %v2647, %v3015
    %v3017 = vpop.f32.mrf.mxu0
    %v3018 = vadd.f32 %v2649, %v3017
    %3019 = vmatmul.bf16.gmra.mxu0 %v1654
    %v3020 = vpop.f32.mrf.mxu0
    %v3021 = vadd.f32 %v2652, %v3020
    %v3022 = vpop.f32.mrf.mxu0
    %v3023 = vadd.f32 %v2654, %v3022
    %3024 = vmatmul.bf16.gmra.mxu0 %v1658
    %v3025 = vpop.f32.mrf.mxu0
    %v3026 = vadd.f32 %v2657, %v3025
    %v3027 = vpop.f32.mrf.mxu0
    %v3028 = vadd.f32 %v2659, %v3027
    %3029 = vmatmul.bf16.gmra.mxu0 %v1662
    %v3030 = vpop.f32.mrf.mxu0
    %v3031 = vadd.f32 %v2662, %v3030
    %v3032 = vpop.f32.mrf.mxu0
    %v3033 = vadd.f32 %v2664, %v3032
    %3034 = vmatmul.bf16.gmra.mxu0 %v1666
    %v3035 = vpop.f32.mrf.mxu0
    %v3036 = vadd.f32 %v2667, %v3035
    %v3037 = vpop.f32.mrf.mxu0
    %v3038 = vadd.f32 %v2669, %v3037
    %3039 = vmatmul.bf16.gmra.mxu0 %v1670
    %v3040 = vpop.f32.mrf.mxu0
    %v3041 = vadd.f32 %v2672, %v3040
    %v3042 = vpop.f32.mrf.mxu0
    %v3043 = vadd.f32 %v2674, %v3042
    %3044 = vmatmul.bf16.gmra.mxu0 %v1674
    %v3045 = vpop.f32.mrf.mxu0
    %v3046 = vadd.f32 %v2677, %v3045
    %v3047 = vpop.f32.mrf.mxu0
    %v3048 = vadd.f32 %v2679, %v3047
    %3049 = vmatmul.bf16.gmra.mxu0 %v1678
    %v3050 = vpop.f32.mrf.mxu0
    %v3051 = vadd.f32 %v2682, %v3050
    %v3052 = vpop.f32.mrf.mxu0
    %v3053 = vadd.f32 %v2684, %v3052
    %3054 = vmatmul.bf16.gmra.mxu0 %v1682
    %v3055 = vpop.f32.mrf.mxu0
    %v3056 = vadd.f32 %v2687, %v3055
    %v3057 = vpop.f32.mrf.mxu0
    %v3058 = vadd.f32 %v2689, %v3057
    %3059 = vmatmul.bf16.gmra.mxu0 %v1686
    %v3060 = vpop.f32.mrf.mxu0
    %v3061 = vadd.f32 %v2692, %v3060
    %v3062 = vpop.f32.mrf.mxu0
    %v3063 = vadd.f32 %v2694, %v3062
    %3064 = vmatmul.bf16.gmra.mxu0 %v1690
    %v3065 = vpop.f32.mrf.mxu0
    %v3066 = vadd.f32 %v2697, %v3065
    %v3067 = vpop.f32.mrf.mxu0
    %v3068 = vadd.f32 %v2699, %v3067
    %3069 = vmatmul.bf16.gmra.mxu0 %v1694
    %v3070 = vpop.f32.mrf.mxu0
    %v3071 = vadd.f32 %v2702, %v3070
    %v3072 = vpop.f32.mrf.mxu0
    %v3073 = vadd.f32 %v2704, %v3072
    %3074 = vmatmul.bf16.gmra.mxu0 %v1698
    %v3075 = vpop.f32.mrf.mxu0
    %v3076 = vadd.f32 %v2707, %v3075
    %v3077 = vpop.f32.mrf.mxu0
    %v3078 = vadd.f32 %v2709, %v3077
    %3079 = vmatmul.bf16.gmra.mxu0 %v1702
    %v3080 = vpop.f32.mrf.mxu0
    %v3081 = vadd.f32 %v2712, %v3080
    %v3082 = vpop.f32.mrf.mxu0
    %v3083 = vadd.f32 %v2714, %v3082
    %3084 = vmatmul.bf16.gmra.mxu0 %v1706
    %v3085 = vpop.f32.mrf.mxu0
    %v3086 = vadd.f32 %v2717, %v3085
    %v3087 = vpop.f32.mrf.mxu0
    %v3088 = vadd.f32 %v2719, %v3087
    %3089 = vmatmul.bf16.gmra.mxu0 %v1710
    %v3090 = vpop.f32.mrf.mxu0
    %v3091 = vadd.f32 %v2722, %v3090
    %v3092 = vpop.f32.mrf.mxu0
    %v3093 = vadd.f32 %v2724, %v3092
    %3094 = vmatmul.bf16.gmra.mxu0 %v1714
    %v3095 = vpop.f32.mrf.mxu0
    %v3096 = vadd.f32 %v2727, %v3095
    %v3097 = vpop.f32.mrf.mxu0
    %v3098 = vadd.f32 %v2729, %v3097
    %3099 = vmatmul.bf16.gmra.mxu0 %v1718
    %v3100 = vpop.f32.mrf.mxu0
    %v3101 = vadd.f32 %v2732, %v3100
    %v3102 = vpop.f32.mrf.mxu0
    %v3103 = vadd.f32 %v2734, %v3102
    %3104 = vmatmul.bf16.gmra.mxu0 %v1722
    %v3105 = vpop.f32.mrf.mxu0
    %v3106 = vadd.f32 %v2737, %v3105
    %v3107 = vpop.f32.mrf.mxu0
    %v3108 = vadd.f32 %v2739, %v3107
    %3109 = vmatmul.bf16.gmra.mxu0 %v1726
    %v3110 = vpop.f32.mrf.mxu0
    %v3111 = vadd.f32 %v2742, %v3110
    %v3112 = vpop.f32.mrf.mxu0
    %v3113 = vadd.f32 %v2744, %v3112
    %3114 = vmatmul.bf16.gmra.mxu0 %v1730
    %v3115 = vpop.f32.mrf.mxu0
    %v3116 = vadd.f32 %v2747, %v3115
    %v3117 = vpop.f32.mrf.mxu0
    %v3118 = vadd.f32 %v2749, %v3117
    %3119 = vmatmul.bf16.gmra.mxu0 %v1734
    %v3120 = vpop.f32.mrf.mxu0
    %v3121 = vadd.f32 %v2752, %v3120
    %v3122 = vpop.f32.mrf.mxu0
    %v3123 = vadd.f32 %v2754, %v3122
    %3124 = vmatmul.bf16.gmra.mxu0 %v1738
    %v3125 = vpop.f32.mrf.mxu0
    %v3126 = vadd.f32 %v2757, %v3125
    %v3127 = vpop.f32.mrf.mxu0
    %v3128 = vadd.f32 %v2759, %v3127
    %3129 = vmatmul.bf16.gmra.mxu0 %v1742
    %v3130 = vpop.f32.mrf.mxu0
    %v3131 = vadd.f32 %v2762, %v3130
    %v3132 = vpop.f32.mrf.mxu0
    %v3133 = vadd.f32 %v2764, %v3132
    %3134 = vmatmul.bf16.gmra.mxu0 %v1746
    %v3135 = vpop.f32.mrf.mxu0
    %v3136 = vadd.f32 %v2767, %v3135
    %v3137 = vpop.f32.mrf.mxu0
    %v3138 = vadd.f32 %v2769, %v3137
    %3139 = vmatmul.bf16.gmra.mxu0 %v1750
    %v3140 = vpop.f32.mrf.mxu0
    %v3141 = vadd.f32 %v2772, %v3140
    %v3142 = vpop.f32.mrf.mxu0
    %v3143 = vadd.f32 %v2774, %v3142
    %3144 = vmatmul.bf16.gmra.mxu0 %v1754
    %v3145 = vpop.f32.mrf.mxu0
    %v3146 = vadd.f32 %v2777, %v3145
    %v3147 = vpop.f32.mrf.mxu0
    %v3148 = vadd.f32 %v2779, %v3147
    %3149 = vmatmul.bf16.gmra.mxu0 %v1758
    %v3150 = vpop.f32.mrf.mxu0
    %v3151 = vadd.f32 %v2782, %v3150
    %v3152 = vpop.f32.mrf.mxu0
    %v3153 = vadd.f32 %v2784, %v3152
    %3154 = vdwg.mxu0
    %3155 = vmatpush.bf16.msra.mxu0 %v607
    %3156 = vmatpush.bf16.msra.mxu0 %v606
    %3157 = vmatpush.bf16.msra.mxu0 %v605
    %3158 = vmatpush.bf16.msra.mxu0 %v604
    %3159 = vmatpush.bf16.msra.mxu0 %v603
    %3160 = vmatpush.bf16.msra.mxu0 %v602
    %3161 = vmatpush.bf16.msra.mxu0 %v601
    %3162 = vmatpush.bf16.msra.mxu0 %v600
    %3163 = vmatmul.bf16.gmra.mxu0 %v1475
    %v3164 = vpop.f32.mrf.mxu0
    %v3165 = vadd.f32 %v2796, %v3164
    %v3166 = vpop.f32.mrf.mxu0
    %v3167 = vadd.f32 %v2798, %v3166
    %3168 = vmatmul.bf16.gmra.mxu0 %v1479
    %v3169 = vpop.f32.mrf.mxu0
    %v3170 = vadd.f32 %v2801, %v3169
    %v3171 = vpop.f32.mrf.mxu0
    %v3172 = vadd.f32 %v2803, %v3171
    %3173 = vmatmul.bf16.gmra.mxu0 %v1483
    %v3174 = vpop.f32.mrf.mxu0
    %v3175 = vadd.f32 %v2806, %v3174
    %v3176 = vpop.f32.mrf.mxu0
    %v3177 = vadd.f32 %v2808, %v3176
    %3178 = vmatmul.bf16.gmra.mxu0 %v1487
    %v3179 = vpop.f32.mrf.mxu0
    %v3180 = vadd.f32 %v2811, %v3179
    %v3181 = vpop.f32.mrf.mxu0
    %v3182 = vadd.f32 %v2813, %v3181
    %3183 = vmatmul.bf16.gmra.mxu0 %v1491
    %v3184 = vpop.f32.mrf.mxu0
    %v3185 = vadd.f32 %v2816, %v3184
    %v3186 = vpop.f32.mrf.mxu0
    %v3187 = vadd.f32 %v2818, %v3186
    %3188 = vmatmul.bf16.gmra.mxu0 %v1495
    %v3189 = vpop.f32.mrf.mxu0
    %v3190 = vadd.f32 %v2821, %v3189
    %v3191 = vpop.f32.mrf.mxu0
    %v3192 = vadd.f32 %v2823, %v3191
    %3193 = vmatmul.bf16.gmra.mxu0 %v1499
    %v3194 = vpop.f32.mrf.mxu0
    %v3195 = vadd.f32 %v2826, %v3194
    %v3196 = vpop.f32.mrf.mxu0
    %v3197 = vadd.f32 %v2828, %v3196
    %3198 = vmatmul.bf16.gmra.mxu0 %v1503
    %v3199 = vpop.f32.mrf.mxu0
    %v3200 = vadd.f32 %v2831, %v3199
    %v3201 = vpop.f32.mrf.mxu0
    %v3202 = vadd.f32 %v2833, %v3201
    %3203 = vmatmul.bf16.gmra.mxu0 %v1507
    %v3204 = vpop.f32.mrf.mxu0
    %v3205 = vadd.f32 %v2836, %v3204
    %v3206 = vpop.f32.mrf.mxu0
    %v3207 = vadd.f32 %v2838, %v3206
    %3208 = vmatmul.bf16.gmra.mxu0 %v1511
    %v3209 = vpop.f32.mrf.mxu0
    %v3210 = vadd.f32 %v2841, %v3209
    %v3211 = vpop.f32.mrf.mxu0
    %v3212 = vadd.f32 %v2843, %v3211
    %3213 = vmatmul.bf16.gmra.mxu0 %v1515
    %v3214 = vpop.f32.mrf.mxu0
    %v3215 = vadd.f32 %v2846, %v3214
    %v3216 = vpop.f32.mrf.mxu0
    %v3217 = vadd.f32 %v2848, %v3216
    %3218 = vmatmul.bf16.gmra.mxu0 %v1519
    %v3219 = vpop.f32.mrf.mxu0
    %v3220 = vadd.f32 %v2851, %v3219
    %v3221 = vpop.f32.mrf.mxu0
    %v3222 = vadd.f32 %v2853, %v3221
    %3223 = vmatmul.bf16.gmra.mxu0 %v1523
    %v3224 = vpop.f32.mrf.mxu0
    %v3225 = vadd.f32 %v2856, %v3224
    %v3226 = vpop.f32.mrf.mxu0
    %v3227 = vadd.f32 %v2858, %v3226
    %3228 = vmatmul.bf16.gmra.mxu0 %v1527
    %v3229 = vpop.f32.mrf.mxu0
    %v3230 = vadd.f32 %v2861, %v3229
    %v3231 = vpop.f32.mrf.mxu0
    %v3232 = vadd.f32 %v2863, %v3231
    %3233 = vmatmul.bf16.gmra.mxu0 %v1531
    %v3234 = vpop.f32.mrf.mxu0
    %v3235 = vadd.f32 %v2866, %v3234
    %v3236 = vpop.f32.mrf.mxu0
    %v3237 = vadd.f32 %v2868, %v3236
    %3238 = vmatmul.bf16.gmra.mxu0 %v1535
    %v3239 = vpop.f32.mrf.mxu0
    %v3240 = vadd.f32 %v2871, %v3239
    %v3241 = vpop.f32.mrf.mxu0
    %v3242 = vadd.f32 %v2873, %v3241
    %3243 = vmatmul.bf16.gmra.mxu0 %v1539
    %v3244 = vpop.f32.mrf.mxu0
    %v3245 = vadd.f32 %v2876, %v3244
    %v3246 = vpop.f32.mrf.mxu0
    %v3247 = vadd.f32 %v2878, %v3246
    %3248 = vmatmul.bf16.gmra.mxu0 %v1543
    %v3249 = vpop.f32.mrf.mxu0
    %v3250 = vadd.f32 %v2881, %v3249
    %v3251 = vpop.f32.mrf.mxu0
    %v3252 = vadd.f32 %v2883, %v3251
    %3253 = vmatmul.bf16.gmra.mxu0 %v1547
    %v3254 = vpop.f32.mrf.mxu0
    %v3255 = vadd.f32 %v2886, %v3254
    %v3256 = vpop.f32.mrf.mxu0
    %v3257 = vadd.f32 %v2888, %v3256
    %3258 = vmatmul.bf16.gmra.mxu0 %v1551
    %v3259 = vpop.f32.mrf.mxu0
    %v3260 = vadd.f32 %v2891, %v3259
    %v3261 = vpop.f32.mrf.mxu0
    %v3262 = vadd.f32 %v2893, %v3261
    %3263 = vmatmul.bf16.gmra.mxu0 %v1555
    %v3264 = vpop.f32.mrf.mxu0
    %v3265 = vadd.f32 %v2896, %v3264
    %v3266 = vpop.f32.mrf.mxu0
    %v3267 = vadd.f32 %v2898, %v3266
    %3268 = vmatmul.bf16.gmra.mxu0 %v1559
    %v3269 = vpop.f32.mrf.mxu0
    %v3270 = vadd.f32 %v2901, %v3269
    %v3271 = vpop.f32.mrf.mxu0
    %v3272 = vadd.f32 %v2903, %v3271
    %3273 = vmatmul.bf16.gmra.mxu0 %v1563
    %v3274 = vpop.f32.mrf.mxu0
    %v3275 = vadd.f32 %v2906, %v3274
    %v3276 = vpop.f32.mrf.mxu0
    %v3277 = vadd.f32 %v2908, %v3276
    %3278 = vmatmul.bf16.gmra.mxu0 %v1567
    %v3279 = vpop.f32.mrf.mxu0
    %v3280 = vadd.f32 %v2911, %v3279
    %v3281 = vpop.f32.mrf.mxu0
    %v3282 = vadd.f32 %v2913, %v3281
    %3283 = vmatmul.bf16.gmra.mxu0 %v1571
    %v3284 = vpop.f32.mrf.mxu0
    %v3285 = vadd.f32 %v2916, %v3284
    %v3286 = vpop.f32.mrf.mxu0
    %v3287 = vadd.f32 %v2918, %v3286
    %3288 = vmatmul.bf16.gmra.mxu0 %v1575
    %v3289 = vpop.f32.mrf.mxu0
    %v3290 = vadd.f32 %v2921, %v3289
    %v3291 = vpop.f32.mrf.mxu0
    %v3292 = vadd.f32 %v2923, %v3291
    %3293 = vmatmul.bf16.gmra.mxu0 %v1579
    %v3294 = vpop.f32.mrf.mxu0
    %v3295 = vadd.f32 %v2926, %v3294
    %v3296 = vpop.f32.mrf.mxu0
    %v3297 = vadd.f32 %v2928, %v3296
    %3298 = vmatmul.bf16.gmra.mxu0 %v1583
    %v3299 = vpop.f32.mrf.mxu0
    %v3300 = vadd.f32 %v2931, %v3299
    %v3301 = vpop.f32.mrf.mxu0
    %v3302 = vadd.f32 %v2933, %v3301
    %3303 = vmatmul.bf16.gmra.mxu0 %v1587
    %v3304 = vpop.f32.mrf.mxu0
    %v3305 = vadd.f32 %v2936, %v3304
    %v3306 = vpop.f32.mrf.mxu0
    %v3307 = vadd.f32 %v2938, %v3306
    %3308 = vmatmul.bf16.gmra.mxu0 %v1591
    %v3309 = vpop.f32.mrf.mxu0
    %v3310 = vadd.f32 %v2941, %v3309
    %v3311 = vpop.f32.mrf.mxu0
    %v3312 = vadd.f32 %v2943, %v3311
    %3313 = vmatmul.bf16.gmra.mxu0 %v1595
    %v3314 = vpop.f32.mrf.mxu0
    %v3315 = vadd.f32 %v2946, %v3314
    %v3316 = vpop.f32.mrf.mxu0
    %v3317 = vadd.f32 %v2948, %v3316
    %3318 = vmatmul.bf16.gmra.mxu0 %v1599
    %v3319 = vpop.f32.mrf.mxu0
    %v3320 = vadd.f32 %v2951, %v3319
    %v3321 = vpop.f32.mrf.mxu0
    %v3322 = vadd.f32 %v2953, %v3321
    %3323 = vmatmul.bf16.gmra.mxu0 %v1603
    %v3324 = vpop.f32.mrf.mxu0
    %v3325 = vadd.f32 %v2956, %v3324
    %v3326 = vpop.f32.mrf.mxu0
    %v3327 = vadd.f32 %v2958, %v3326
    %3328 = vmatmul.bf16.gmra.mxu0 %v1607
    %v3329 = vpop.f32.mrf.mxu0
    %v3330 = vadd.f32 %v2961, %v3329
    %v3331 = vpop.f32.mrf.mxu0
    %v3332 = vadd.f32 %v2963, %v3331
    %3333 = vmatmul.bf16.gmra.mxu0 %v1611
    %v3334 = vpop.f32.mrf.mxu0
    %v3335 = vadd.f32 %v2966, %v3334
    %v3336 = vpop.f32.mrf.mxu0
    %v3337 = vadd.f32 %v2968, %v3336
    %3338 = vmatmul.bf16.gmra.mxu0 %v1615
    %v3339 = vpop.f32.mrf.mxu0
    %v3340 = vadd.f32 %v2971, %v3339
    %v3341 = vpop.f32.mrf.mxu0
    %v3342 = vadd.f32 %v2973, %v3341
    %3343 = vmatmul.bf16.gmra.mxu0 %v1619
    %v3344 = vpop.f32.mrf.mxu0
    %v3345 = vadd.f32 %v2976, %v3344
    %v3346 = vpop.f32.mrf.mxu0
    %v3347 = vadd.f32 %v2978, %v3346
    %3348 = vmatmul.bf16.gmra.mxu0 %v1623
    %v3349 = vpop.f32.mrf.mxu0
    %v3350 = vadd.f32 %v2981, %v3349
    %v3351 = vpop.f32.mrf.mxu0
    %v3352 = vadd.f32 %v2983, %v3351
    %3353 = vmatmul.bf16.gmra.mxu0 %v1627
    %v3354 = vpop.f32.mrf.mxu0
    %v3355 = vadd.f32 %v2986, %v3354
    %v3356 = vpop.f32.mrf.mxu0
    %v3357 = vadd.f32 %v2988, %v3356
    %3358 = vmatmul.bf16.gmra.mxu0 %v1631
    %v3359 = vpop.f32.mrf.mxu0
    %v3360 = vadd.f32 %v2991, %v3359
    %v3361 = vpop.f32.mrf.mxu0
    %v3362 = vadd.f32 %v2993, %v3361
    %3363 = vmatmul.bf16.gmra.mxu0 %v1635
    %v3364 = vpop.f32.mrf.mxu0
    %v3365 = vadd.f32 %v2996, %v3364
    %v3366 = vpop.f32.mrf.mxu0
    %v3367 = vadd.f32 %v2998, %v3366
    %3368 = vmatmul.bf16.gmra.mxu0 %v1639
    %v3369 = vpop.f32.mrf.mxu0
    %v3370 = vadd.f32 %v3001, %v3369
    %v3371 = vpop.f32.mrf.mxu0
    %v3372 = vadd.f32 %v3003, %v3371
    %3373 = vmatmul.bf16.gmra.mxu0 %v1643
    %v3374 = vpop.f32.mrf.mxu0
    %v3375 = vadd.f32 %v3006, %v3374
    %v3376 = vpop.f32.mrf.mxu0
    %v3377 = vadd.f32 %v3008, %v3376
    %3378 = vmatmul.bf16.gmra.mxu0 %v1647
    %v3379 = vpop.f32.mrf.mxu0
    %v3380 = vadd.f32 %v3011, %v3379
    %v3381 = vpop.f32.mrf.mxu0
    %v3382 = vadd.f32 %v3013, %v3381
    %3383 = vmatmul.bf16.gmra.mxu0 %v1651
    %v3384 = vpop.f32.mrf.mxu0
    %v3385 = vadd.f32 %v3016, %v3384
    %v3386 = vpop.f32.mrf.mxu0
    %v3387 = vadd.f32 %v3018, %v3386
    %3388 = vmatmul.bf16.gmra.mxu0 %v1655
    %v3389 = vpop.f32.mrf.mxu0
    %v3390 = vadd.f32 %v3021, %v3389
    %v3391 = vpop.f32.mrf.mxu0
    %v3392 = vadd.f32 %v3023, %v3391
    %3393 = vmatmul.bf16.gmra.mxu0 %v1659
    %v3394 = vpop.f32.mrf.mxu0
    %v3395 = vadd.f32 %v3026, %v3394
    %v3396 = vpop.f32.mrf.mxu0
    %v3397 = vadd.f32 %v3028, %v3396
    %3398 = vmatmul.bf16.gmra.mxu0 %v1663
    %v3399 = vpop.f32.mrf.mxu0
    %v3400 = vadd.f32 %v3031, %v3399
    %v3401 = vpop.f32.mrf.mxu0
    %v3402 = vadd.f32 %v3033, %v3401
    %3403 = vmatmul.bf16.gmra.mxu0 %v1667
    %v3404 = vpop.f32.mrf.mxu0
    %v3405 = vadd.f32 %v3036, %v3404
    %v3406 = vpop.f32.mrf.mxu0
    %v3407 = vadd.f32 %v3038, %v3406
    %3408 = vmatmul.bf16.gmra.mxu0 %v1671
    %v3409 = vpop.f32.mrf.mxu0
    %v3410 = vadd.f32 %v3041, %v3409
    %v3411 = vpop.f32.mrf.mxu0
    %v3412 = vadd.f32 %v3043, %v3411
    %3413 = vmatmul.bf16.gmra.mxu0 %v1675
    %v3414 = vpop.f32.mrf.mxu0
    %v3415 = vadd.f32 %v3046, %v3414
    %v3416 = vpop.f32.mrf.mxu0
    %v3417 = vadd.f32 %v3048, %v3416
    %3418 = vmatmul.bf16.gmra.mxu0 %v1679
    %v3419 = vpop.f32.mrf.mxu0
    %v3420 = vadd.f32 %v3051, %v3419
    %v3421 = vpop.f32.mrf.mxu0
    %v3422 = vadd.f32 %v3053, %v3421
    %3423 = vmatmul.bf16.gmra.mxu0 %v1683
    %v3424 = vpop.f32.mrf.mxu0
    %v3425 = vadd.f32 %v3056, %v3424
    %v3426 = vpop.f32.mrf.mxu0
    %v3427 = vadd.f32 %v3058, %v3426
    %3428 = vmatmul.bf16.gmra.mxu0 %v1687
    %v3429 = vpop.f32.mrf.mxu0
    %v3430 = vadd.f32 %v3061, %v3429
    %v3431 = vpop.f32.mrf.mxu0
    %v3432 = vadd.f32 %v3063, %v3431
    %3433 = vmatmul.bf16.gmra.mxu0 %v1691
    %v3434 = vpop.f32.mrf.mxu0
    %v3435 = vadd.f32 %v3066, %v3434
    %v3436 = vpop.f32.mrf.mxu0
    %v3437 = vadd.f32 %v3068, %v3436
    %3438 = vmatmul.bf16.gmra.mxu0 %v1695
    %v3439 = vpop.f32.mrf.mxu0
    %v3440 = vadd.f32 %v3071, %v3439
    %v3441 = vpop.f32.mrf.mxu0
    %v3442 = vadd.f32 %v3073, %v3441
    %3443 = vmatmul.bf16.gmra.mxu0 %v1699
    %v3444 = vpop.f32.mrf.mxu0
    %v3445 = vadd.f32 %v3076, %v3444
    %v3446 = vpop.f32.mrf.mxu0
    %v3447 = vadd.f32 %v3078, %v3446
    %3448 = vmatmul.bf16.gmra.mxu0 %v1703
    %v3449 = vpop.f32.mrf.mxu0
    %v3450 = vadd.f32 %v3081, %v3449
    %v3451 = vpop.f32.mrf.mxu0
    %v3452 = vadd.f32 %v3083, %v3451
    %3453 = vmatmul.bf16.gmra.mxu0 %v1707
    %v3454 = vpop.f32.mrf.mxu0
    %v3455 = vadd.f32 %v3086, %v3454
    %v3456 = vpop.f32.mrf.mxu0
    %v3457 = vadd.f32 %v3088, %v3456
    %3458 = vmatmul.bf16.gmra.mxu0 %v1711
    %v3459 = vpop.f32.mrf.mxu0
    %v3460 = vadd.f32 %v3091, %v3459
    %v3461 = vpop.f32.mrf.mxu0
    %v3462 = vadd.f32 %v3093, %v3461
    %3463 = vmatmul.bf16.gmra.mxu0 %v1715
    %v3464 = vpop.f32.mrf.mxu0
    %v3465 = vadd.f32 %v3096, %v3464
    %v3466 = vpop.f32.mrf.mxu0
    %v3467 = vadd.f32 %v3098, %v3466
    %3468 = vmatmul.bf16.gmra.mxu0 %v1719
    %v3469 = vpop.f32.mrf.mxu0
    %v3470 = vadd.f32 %v3101, %v3469
    %v3471 = vpop.f32.mrf.mxu0
    %v3472 = vadd.f32 %v3103, %v3471
    %3473 = vmatmul.bf16.gmra.mxu0 %v1723
    %v3474 = vpop.f32.mrf.mxu0
    %v3475 = vadd.f32 %v3106, %v3474
    %v3476 = vpop.f32.mrf.mxu0
    %v3477 = vadd.f32 %v3108, %v3476
    %3478 = vmatmul.bf16.gmra.mxu0 %v1727
    %v3479 = vpop.f32.mrf.mxu0
    %v3480 = vadd.f32 %v3111, %v3479
    %v3481 = vpop.f32.mrf.mxu0
    %v3482 = vadd.f32 %v3113, %v3481
    %3483 = vmatmul.bf16.gmra.mxu0 %v1731
    %v3484 = vpop.f32.mrf.mxu0
    %v3485 = vadd.f32 %v3116, %v3484
    %v3486 = vpop.f32.mrf.mxu0
    %v3487 = vadd.f32 %v3118, %v3486
    %3488 = vmatmul.bf16.gmra.mxu0 %v1735
    %v3489 = vpop.f32.mrf.mxu0
    %v3490 = vadd.f32 %v3121, %v3489
    %v3491 = vpop.f32.mrf.mxu0
    %v3492 = vadd.f32 %v3123, %v3491
    %3493 = vmatmul.bf16.gmra.mxu0 %v1739
    %v3494 = vpop.f32.mrf.mxu0
    %v3495 = vadd.f32 %v3126, %v3494
    %v3496 = vpop.f32.mrf.mxu0
    %v3497 = vadd.f32 %v3128, %v3496
    %3498 = vmatmul.bf16.gmra.mxu0 %v1743
    %v3499 = vpop.f32.mrf.mxu0
    %v3500 = vadd.f32 %v3131, %v3499
    %v3501 = vpop.f32.mrf.mxu0
    %v3502 = vadd.f32 %v3133, %v3501
    %3503 = vmatmul.bf16.gmra.mxu0 %v1747
    %v3504 = vpop.f32.mrf.mxu0
    %v3505 = vadd.f32 %v3136, %v3504
    %v3506 = vpop.f32.mrf.mxu0
    %v3507 = vadd.f32 %v3138, %v3506
    %3508 = vmatmul.bf16.gmra.mxu0 %v1751
    %v3509 = vpop.f32.mrf.mxu0
    %v3510 = vadd.f32 %v3141, %v3509
    %v3511 = vpop.f32.mrf.mxu0
    %v3512 = vadd.f32 %v3143, %v3511
    %3513 = vmatmul.bf16.gmra.mxu0 %v1755
    %v3514 = vpop.f32.mrf.mxu0
    %v3515 = vadd.f32 %v3146, %v3514
    %v3516 = vpop.f32.mrf.mxu0
    %v3517 = vadd.f32 %v3148, %v3516
    %3518 = vmatmul.bf16.gmra.mxu0 %v1759
    %v3519 = vpop.f32.mrf.mxu0
    %v3520 = vadd.f32 %v3151, %v3519
    %v3521 = vpop.f32.mrf.mxu0
    %v3522 = vadd.f32 %v3153, %v3521
    %3523 = vdwg.mxu0
    %vm3524 = vcmask 23552
    %3525 = vst.msk [vmem:[#allocation2] sm:$0xff] %vm3524, %v3165
    %3526 = vst.msk [vmem:[#allocation2 + $0x8] sm:$0xff] %vm3524, %v3167
    %3527 = vst.msk [vmem:[#allocation2 + $0x10] sm:$0xff] %vm3524, %v3170
    %3528 = vst.msk [vmem:[#allocation2 + $0x18] sm:$0xff] %vm3524, %v3172
    %3529 = vst.msk [vmem:[#allocation2 + $0x20] sm:$0xff] %vm3524, %v3175
    %3530 = vst.msk [vmem:[#allocation2 + $0x28] sm:$0xff] %vm3524, %v3177
    %3531 = vst.msk [vmem:[#allocation2 + $0x30] sm:$0xff] %vm3524, %v3180
    %3532 = vst.msk [vmem:[#allocation2 + $0x38] sm:$0xff] %vm3524, %v3182
    %3533 = vst.msk [vmem:[#allocation2 + $0x40] sm:$0xff] %vm3524, %v3185
    %3534 = vst.msk [vmem:[#allocation2 + $0x48] sm:$0xff] %vm3524, %v3187
    %3535 = vst.msk [vmem:[#allocation2 + $0x50] sm:$0xff] %vm3524, %v3190
    %3536 = vst.msk [vmem:[#allocation2 + $0x58] sm:$0xff] %vm3524, %v3192
    %3537 = vst.msk [vmem:[#allocation2 + $0x60] sm:$0xff] %vm3524, %v3195
    %3538 = vst.msk [vmem:[#allocation2 + $0x68] sm:$0xff] %vm3524, %v3197
    %3539 = vst.msk [vmem:[#allocation2 + $0x70] sm:$0xff] %vm3524, %v3200
    %3540 = vst.msk [vmem:[#allocation2 + $0x78] sm:$0xff] %vm3524, %v3202
    %3557 = vrot.lane.b32.xlu0 %v3205, 3
    %v3558 = vpop.permute.xlu0 %3557
    %3559 = vrot.lane.b32.xlu0 %v3207, 3
    %v3560 = vpop.permute.xlu0 %3559
    %3561 = vrot.lane.b32.xlu0 %v3210, 3
    %v3562 = vpop.permute.xlu0 %3561
    %3563 = vrot.lane.b32.xlu0 %v3212, 3
    %v3564 = vpop.permute.xlu0 %3563
    %3565 = vrot.lane.b32.xlu0 %v3215, 3
    %v3566 = vpop.permute.xlu0 %3565
    %3567 = vrot.lane.b32.xlu0 %v3217, 3
    %v3568 = vpop.permute.xlu0 %3567
    %3569 = vrot.lane.b32.xlu0 %v3220, 3
    %v3570 = vpop.permute.xlu0 %3569
    %3571 = vrot.lane.b32.xlu0 %v3222, 3
    %v3572 = vpop.permute.xlu0 %3571
    %3573 = vrot.lane.b32.xlu0 %v3225, 3
    %v3574 = vpop.permute.xlu0 %3573
    %3575 = vrot.lane.b32.xlu0 %v3227, 3
    %v3576 = vpop.permute.xlu0 %3575
    %3577 = vrot.lane.b32.xlu0 %v3230, 3
    %v3578 = vpop.permute.xlu0 %3577
    %3579 = vrot.lane.b32.xlu0 %v3232, 3
    %v3580 = vpop.permute.xlu0 %3579
    %3581 = vrot.lane.b32.xlu0 %v3235, 3
    %v3582 = vpop.permute.xlu0 %3581
    %3583 = vrot.lane.b32.xlu0 %v3237, 3
    %v3584 = vpop.permute.xlu0 %3583
    %3585 = vrot.lane.b32.xlu0 %v3240, 3
    %v3586 = vpop.permute.xlu0 %3585
    %3587 = vrot.lane.b32.xlu0 %v3242, 3
    %v3588 = vpop.permute.xlu0 %3587
    %vm3605 = vcmask 48152
    %3606 = vst.msk [vmem:[#allocation2] sm:$0xff] %vm3605, %v3558
    %3607 = vst.msk [vmem:[#allocation2 + $0x8] sm:$0xff] %vm3605, %v3560
    %3608 = vst.msk [vmem:[#allocation2 + $0x10] sm:$0xff] %vm3605, %v3562
    %3609 = vst.msk [vmem:[#allocation2 + $0x18] sm:$0xff] %vm3605, %v3564
    %3610 = vst.msk [vmem:[#allocation2 + $0x20] sm:$0xff] %vm3605, %v3566
    %3611 = vst.msk [vmem:[#allocation2 + $0x28] sm:$0xff] %vm3605, %v3568
    %3612 = vst.msk [vmem:[#allocation2 + $0x30] sm:$0xff] %vm3605, %v3570
    %3613 = vst.msk [vmem:[#allocation2 + $0x38] sm:$0xff] %vm3605, %v3572
    %3614 = vst.msk [vmem:[#allocation2 + $0x40] sm:$0xff] %vm3605, %v3574
    %3615 = vst.msk [vmem:[#allocation2 + $0x48] sm:$0xff] %vm3605, %v3576
    %3616 = vst.msk [vmem:[#allocation2 + $0x50] sm:$0xff] %vm3605, %v3578
    %3617 = vst.msk [vmem:[#allocation2 + $0x58] sm:$0xff] %vm3605, %v3580
    %3618 = vst.msk [vmem:[#allocation2 + $0x60] sm:$0xff] %vm3605, %v3582
    %3619 = vst.msk [vmem:[#allocation2 + $0x68] sm:$0xff] %vm3605, %v3584
    %3620 = vst.msk [vmem:[#allocation2 + $0x70] sm:$0xff] %vm3605, %v3586
    %3621 = vst.msk [vmem:[#allocation2 + $0x78] sm:$0xff] %vm3605, %v3588
    %3638 = vrot.lane.b32.xlu0 %v3245, 6
    %v3639 = vpop.permute.xlu0 %3638
    %3640 = vrot.lane.b32.xlu0 %v3247, 6
    %v3641 = vpop.permute.xlu0 %3640
    %3642 = vrot.lane.b32.xlu0 %v3250, 6
    %v3643 = vpop.permute.xlu0 %3642
    %3644 = vrot.lane.b32.xlu0 %v3252, 6
    %v3645 = vpop.permute.xlu0 %3644
    %3646 = vrot.lane.b32.xlu0 %v3255, 6
    %v3647 = vpop.permute.xlu0 %3646
    %3648 = vrot.lane.b32.xlu0 %v3257, 6
    %v3649 = vpop.permute.xlu0 %3648
    %3650 = vrot.lane.b32.xlu0 %v3260, 6
    %v3651 = vpop.permute.xlu0 %3650
    %3652 = vrot.lane.b32.xlu0 %v3262, 6
    %v3653 = vpop.permute.xlu0 %3652
    %3654 = vrot.lane.b32.xlu0 %v3265, 6
    %v3655 = vpop.permute.xlu0 %3654
    %3656 = vrot.lane.b32.xlu0 %v3267, 6
    %v3657 = vpop.permute.xlu0 %3656
    %3658 = vrot.lane.b32.xlu0 %v3270, 6
    %v3659 = vpop.permute.xlu0 %3658
    %3660 = vrot.lane.b32.xlu0 %v3272, 6
    %v3661 = vpop.permute.xlu0 %3660
    %3662 = vrot.lane.b32.xlu0 %v3275, 6
    %v3663 = vpop.permute.xlu0 %3662
    %3664 = vrot.lane.b32.xlu0 %v3277, 6
    %v3665 = vpop.permute.xlu0 %3664
    %3666 = vrot.lane.b32.xlu0 %v3280, 6
    %v3667 = vpop.permute.xlu0 %3666
    %3668 = vrot.lane.b32.xlu0 %v3282, 6
    %v3669 = vpop.permute.xlu0 %3668
    %vm3686 = vcmask 72752
    %3687 = vst.msk [vmem:[#allocation2] sm:$0xff] %vm3686, %v3639
    %3688 = vst.msk [vmem:[#allocation2 + $0x8] sm:$0xff] %vm3686, %v3641
    %3689 = vst.msk [vmem:[#allocation2 + $0x10] sm:$0xff] %vm3686, %v3643
    %3690 = vst.msk [vmem:[#allocation2 + $0x18] sm:$0xff] %vm3686, %v3645
    %3691 = vst.msk [vmem:[#allocation2 + $0x20] sm:$0xff] %vm3686, %v3647
    %3692 = vst.msk [vmem:[#allocation2 + $0x28] sm:$0xff] %vm3686, %v3649
    %3693 = vst.msk [vmem:[#allocation2 + $0x30] sm:$0xff] %vm3686, %v3651
    %3694 = vst.msk [vmem:[#allocation2 + $0x38] sm:$0xff] %vm3686, %v3653
    %3695 = vst.msk [vmem:[#allocation2 + $0x40] sm:$0xff] %vm3686, %v3655
    %3696 = vst.msk [vmem:[#allocation2 + $0x48] sm:$0xff] %vm3686, %v3657
    %3697 = vst.msk [vmem:[#allocation2 + $0x50] sm:$0xff] %vm3686, %v3659
    %3698 = vst.msk [vmem:[#allocation2 + $0x58] sm:$0xff] %vm3686, %v3661
    %3699 = vst.msk [vmem:[#allocation2 + $0x60] sm:$0xff] %vm3686, %v3663
    %3700 = vst.msk [vmem:[#allocation2 + $0x68] sm:$0xff] %vm3686, %v3665
    %3701 = vst.msk [vmem:[#allocation2 + $0x70] sm:$0xff] %vm3686, %v3667
    %3702 = vst.msk [vmem:[#allocation2 + $0x78] sm:$0xff] %vm3686, %v3669
    %3719 = vrot.lane.b32.xlu0 %v3285, 9
    %v3720 = vpop.permute.xlu0 %3719
    %3721 = vrot.lane.b32.xlu0 %v3287, 9
    %v3722 = vpop.permute.xlu0 %3721
    %3723 = vrot.lane.b32.xlu0 %v3290, 9
    %v3724 = vpop.permute.xlu0 %3723
    %3725 = vrot.lane.b32.xlu0 %v3292, 9
    %v3726 = vpop.permute.xlu0 %3725
    %3727 = vrot.lane.b32.xlu0 %v3295, 9
    %v3728 = vpop.permute.xlu0 %3727
    %3729 = vrot.lane.b32.xlu0 %v3297, 9
    %v3730 = vpop.permute.xlu0 %3729
    %3731 = vrot.lane.b32.xlu0 %v3300, 9
    %v3732 = vpop.permute.xlu0 %3731
    %3733 = vrot.lane.b32.xlu0 %v3302, 9
    %v3734 = vpop.permute.xlu0 %3733
    %3735 = vrot.lane.b32.xlu0 %v3305, 9
    %v3736 = vpop.permute.xlu0 %3735
    %3737 = vrot.lane.b32.xlu0 %v3307, 9
    %v3738 = vpop.permute.xlu0 %3737
    %3739 = vrot.lane.b32.xlu0 %v3310, 9
    %v3740 = vpop.permute.xlu0 %3739
    %3741 = vrot.lane.b32.xlu0 %v3312, 9
    %v3742 = vpop.permute.xlu0 %3741
    %3743 = vrot.lane.b32.xlu0 %v3315, 9
    %v3744 = vpop.permute.xlu0 %3743
    %3745 = vrot.lane.b32.xlu0 %v3317, 9
    %v3746 = vpop.permute.xlu0 %3745
    %3747 = vrot.lane.b32.xlu0 %v3320, 9
    %v3748 = vpop.permute.xlu0 %3747
    %3749 = vrot.lane.b32.xlu0 %v3322, 9
    %v3750 = vpop.permute.xlu0 %3749
    %vm3767 = vcmask 97352
    %3768 = vst.msk [vmem:[#allocation2] sm:$0xff] %vm3767, %v3720
    %3769 = vst.msk [vmem:[#allocation2 + $0x8] sm:$0xff] %vm3767, %v3722
    %3770 = vst.msk [vmem:[#allocation2 + $0x10] sm:$0xff] %vm3767, %v3724
    %3771 = vst.msk [vmem:[#allocation2 + $0x18] sm:$0xff] %vm3767, %v3726
    %3772 = vst.msk [vmem:[#allocation2 + $0x20] sm:$0xff] %vm3767, %v3728
    %3773 = vst.msk [vmem:[#allocation2 + $0x28] sm:$0xff] %vm3767, %v3730
    %3774 = vst.msk [vmem:[#allocation2 + $0x30] sm:$0xff] %vm3767, %v3732
    %3775 = vst.msk [vmem:[#allocation2 + $0x38] sm:$0xff] %vm3767, %v3734
    %3776 = vst.msk [vmem:[#allocation2 + $0x40] sm:$0xff] %vm3767, %v3736
    %3777 = vst.msk [vmem:[#allocation2 + $0x48] sm:$0xff] %vm3767, %v3738
    %3778 = vst.msk [vmem:[#allocation2 + $0x50] sm:$0xff] %vm3767, %v3740
    %3779 = vst.msk [vmem:[#allocation2 + $0x58] sm:$0xff] %vm3767, %v3742
    %3780 = vst.msk [vmem:[#allocation2 + $0x60] sm:$0xff] %vm3767, %v3744
    %3781 = vst.msk [vmem:[#allocation2 + $0x68] sm:$0xff] %vm3767, %v3746
    %3782 = vst.msk [vmem:[#allocation2 + $0x70] sm:$0xff] %vm3767, %v3748
    %3783 = vst.msk [vmem:[#allocation2 + $0x78] sm:$0xff] %vm3767, %v3750
    %3800 = vrot.lane.b32.xlu0 %v3325, 12
    %v3801 = vpop.permute.xlu0 %3800
    %3802 = vrot.lane.b32.xlu0 %v3327, 12
    %v3803 = vpop.permute.xlu0 %3802
    %3804 = vrot.lane.b32.xlu0 %v3330, 12
    %v3805 = vpop.permute.xlu0 %3804
    %3806 = vrot.lane.b32.xlu0 %v3332, 12
    %v3807 = vpop.permute.xlu0 %3806
    %3808 = vrot.lane.b32.xlu0 %v3335, 12
    %v3809 = vpop.permute.xlu0 %3808
    %3810 = vrot.lane.b32.xlu0 %v3337, 12
    %v3811 = vpop.permute.xlu0 %3810
    %3812 = vrot.lane.b32.xlu0 %v3340, 12
    %v3813 = vpop.permute.xlu0 %3812
    %3814 = vrot.lane.b32.xlu0 %v3342, 12
    %v3815 = vpop.permute.xlu0 %3814
    %3816 = vrot.lane.b32.xlu0 %v3345, 12
    %v3817 = vpop.permute.xlu0 %3816
    %3818 = vrot.lane.b32.xlu0 %v3347, 12
    %v3819 = vpop.permute.xlu0 %3818
    %3820 = vrot.lane.b32.xlu0 %v3350, 12
    %v3821 = vpop.permute.xlu0 %3820
    %3822 = vrot.lane.b32.xlu0 %v3352, 12
    %v3823 = vpop.permute.xlu0 %3822
    %3824 = vrot.lane.b32.xlu0 %v3355, 12
    %v3825 = vpop.permute.xlu0 %3824
    %3826 = vrot.lane.b32.xlu0 %v3357, 12
    %v3827 = vpop.permute.xlu0 %3826
    %3828 = vrot.lane.b32.xlu0 %v3360, 12
    %v3829 = vpop.permute.xlu0 %3828
    %3830 = vrot.lane.b32.xlu0 %v3362, 12
    %v3831 = vpop.permute.xlu0 %3830
    %vm3848 = vcmask 121952
    %3849 = vst.msk [vmem:[#allocation2] sm:$0xff] %vm3848, %v3801
    %3850 = vst.msk [vmem:[#allocation2 + $0x8] sm:$0xff] %vm3848, %v3803
    %3851 = vst.msk [vmem:[#allocation2 + $0x10] sm:$0xff] %vm3848, %v3805
    %3852 = vst.msk [vmem:[#allocation2 + $0x18] sm:$0xff] %vm3848, %v3807
    %3853 = vst.msk [vmem:[#allocation2 + $0x20] sm:$0xff] %vm3848, %v3809
    %3854 = vst.msk [vmem:[#allocation2 + $0x28] sm:$0xff] %vm3848, %v3811
    %3855 = vst.msk [vmem:[#allocation2 + $0x30] sm:$0xff] %vm3848, %v3813
    %3856 = vst.msk [vmem:[#allocation2 + $0x38] sm:$0xff] %vm3848, %v3815
    %3857 = vst.msk [vmem:[#allocation2 + $0x40] sm:$0xff] %vm3848, %v3817
    %3858 = vst.msk [vmem:[#allocation2 + $0x48] sm:$0xff] %vm3848, %v3819
    %3859 = vst.msk [vmem:[#allocation2 + $0x50] sm:$0xff] %vm3848, %v3821
    %3860 = vst.msk [vmem:[#allocation2 + $0x58] sm:$0xff] %vm3848, %v3823
    %3861 = vst.msk [vmem:[#allocation2 + $0x60] sm:$0xff] %vm3848, %v3825
    %3862 = vst.msk [vmem:[#allocation2 + $0x68] sm:$0xff] %vm3848, %v3827
    %3863 = vst.msk [vmem:[#allocation2 + $0x70] sm:$0xff] %vm3848, %v3829
    %3864 = vst.msk [vmem:[#allocation2 + $0x78] sm:$0xff] %vm3848, %v3831
    %3881 = vrot.lane.b32.xlu0 %v3365, 15
    %v3882 = vpop.permute.xlu0 %3881
    %3883 = vrot.lane.b32.xlu0 %v3367, 15
    %v3884 = vpop.permute.xlu0 %3883
    %3885 = vrot.lane.b32.xlu0 %v3370, 15
    %v3886 = vpop.permute.xlu0 %3885
    %3887 = vrot.lane.b32.xlu0 %v3372, 15
    %v3888 = vpop.permute.xlu0 %3887
    %3889 = vrot.lane.b32.xlu0 %v3375, 15
    %v3890 = vpop.permute.xlu0 %3889
    %3891 = vrot.lane.b32.xlu0 %v3377, 15
    %v3892 = vpop.permute.xlu0 %3891
    %3893 = vrot.lane.b32.xlu0 %v3380, 15
    %v3894 = vpop.permute.xlu0 %3893
    %3895 = vrot.lane.b32.xlu0 %v3382, 15
    %v3896 = vpop.permute.xlu0 %3895
    %3897 = vrot.lane.b32.xlu0 %v3385, 15
    %v3898 = vpop.permute.xlu0 %3897
    %3899 = vrot.lane.b32.xlu0 %v3387, 15
    %v3900 = vpop.permute.xlu0 %3899
    %3901 = vrot.lane.b32.xlu0 %v3390, 15
    %v3902 = vpop.permute.xlu0 %3901
    %3903 = vrot.lane.b32.xlu0 %v3392, 15
    %v3904 = vpop.permute.xlu0 %3903
    %3905 = vrot.lane.b32.xlu0 %v3395, 15
    %v3906 = vpop.permute.xlu0 %3905
    %3907 = vrot.lane.b32.xlu0 %v3397, 15
    %v3908 = vpop.permute.xlu0 %3907
    %3909 = vrot.lane.b32.xlu0 %v3400, 15
    %v3910 = vpop.permute.xlu0 %3909
    %3911 = vrot.lane.b32.xlu0 %v3402, 15
    %v3912 = vpop.permute.xlu0 %3911
    %vm3929 = vcmask 146552
    %3930 = vst.msk [vmem:[#allocation2] sm:$0xff] %vm3929, %v3882
    %3931 = vst.msk [vmem:[#allocation2 + $0x8] sm:$0xff] %vm3929, %v3884
    %3932 = vst.msk [vmem:[#allocation2 + $0x10] sm:$0xff] %vm3929, %v3886
    %3933 = vst.msk [vmem:[#allocation2 + $0x18] sm:$0xff] %vm3929, %v3888
    %3934 = vst.msk [vmem:[#allocation2 + $0x20] sm:$0xff] %vm3929, %v3890
    %3935 = vst.msk [vmem:[#allocation2 + $0x28] sm:$0xff] %vm3929, %v3892
    %3936 = vst.msk [vmem:[#allocation2 + $0x30] sm:$0xff] %vm3929, %v3894
    %3937 = vst.msk [vmem:[#allocation2 + $0x38] sm:$0xff] %vm3929, %v3896
    %3938 = vst.msk [vmem:[#allocation2 + $0x40] sm:$0xff] %vm3929, %v3898
    %3939 = vst.msk [vmem:[#allocation2 + $0x48] sm:$0xff] %vm3929, %v3900
    %3940 = vst.msk [vmem:[#allocation2 + $0x50] sm:$0xff] %vm3929, %v3902
    %3941 = vst.msk [vmem:[#allocation2 + $0x58] sm:$0xff] %vm3929, %v3904
    %3942 = vst.msk [vmem:[#allocation2 + $0x60] sm:$0xff] %vm3929, %v3906
    %3943 = vst.msk [vmem:[#allocation2 + $0x68] sm:$0xff] %vm3929, %v3908
    %3944 = vst.msk [vmem:[#allocation2 + $0x70] sm:$0xff] %vm3929, %v3910
    %3945 = vst.msk [vmem:[#allocation2 + $0x78] sm:$0xff] %vm3929, %v3912
    %3962 = vrot.lane.b32.xlu0 %v3405, 18
    %v3963 = vpop.permute.xlu0 %3962
    %3964 = vrot.lane.b32.xlu0 %v3407, 18
    %v3965 = vpop.permute.xlu0 %3964
    %3966 = vrot.lane.b32.xlu0 %v3410, 18
    %v3967 = vpop.permute.xlu0 %3966
    %3968 = vrot.lane.b32.xlu0 %v3412, 18
    %v3969 = vpop.permute.xlu0 %3968
    %3970 = vrot.lane.b32.xlu0 %v3415, 18
    %v3971 = vpop.permute.xlu0 %3970
    %3972 = vrot.lane.b32.xlu0 %v3417, 18
    %v3973 = vpop.permute.xlu0 %3972
    %3974 = vrot.lane.b32.xlu0 %v3420, 18
    %v3975 = vpop.permute.xlu0 %3974
    %3976 = vrot.lane.b32.xlu0 %v3422, 18
    %v3977 = vpop.permute.xlu0 %3976
    %3978 = vrot.lane.b32.xlu0 %v3425, 18
    %v3979 = vpop.permute.xlu0 %3978
    %3980 = vrot.lane.b32.xlu0 %v3427, 18
    %v3981 = vpop.permute.xlu0 %3980
    %3982 = vrot.lane.b32.xlu0 %v3430, 18
    %v3983 = vpop.permute.xlu0 %3982
    %3984 = vrot.lane.b32.xlu0 %v3432, 18
    %v3985 = vpop.permute.xlu0 %3984
    %3986 = vrot.lane.b32.xlu0 %v3435, 18
    %v3987 = vpop.permute.xlu0 %3986
    %3988 = vrot.lane.b32.xlu0 %v3437, 18
    %v3989 = vpop.permute.xlu0 %3988
    %3990 = vrot.lane.b32.xlu0 %v3440, 18
    %v3991 = vpop.permute.xlu0 %3990
    %3992 = vrot.lane.b32.xlu0 %v3442, 18
    %v3993 = vpop.permute.xlu0 %3992
    %vm4010 = vcmask 171152
    %4011 = vst.msk [vmem:[#allocation2] sm:$0xff] %vm4010, %v3963
    %4012 = vst.msk [vmem:[#allocation2 + $0x8] sm:$0xff] %vm4010, %v3965
    %4013 = vst.msk [vmem:[#allocation2 + $0x10] sm:$0xff] %vm4010, %v3967
    %4014 = vst.msk [vmem:[#allocation2 + $0x18] sm:$0xff] %vm4010, %v3969
    %4015 = vst.msk [vmem:[#allocation2 + $0x20] sm:$0xff] %vm4010, %v3971
    %4016 = vst.msk [vmem:[#allocation2 + $0x28] sm:$0xff] %vm4010, %v3973
    %4017 = vst.msk [vmem:[#allocation2 + $0x30] sm:$0xff] %vm4010, %v3975
    %4018 = vst.msk [vmem:[#allocation2 + $0x38] sm:$0xff] %vm4010, %v3977
    %4019 = vst.msk [vmem:[#allocation2 + $0x40] sm:$0xff] %vm4010, %v3979
    %4020 = vst.msk [vmem:[#allocation2 + $0x48] sm:$0xff] %vm4010, %v3981
    %4021 = vst.msk [vmem:[#allocation2 + $0x50] sm:$0xff] %vm4010, %v3983
    %4022 = vst.msk [vmem:[#allocation2 + $0x58] sm:$0xff] %vm4010, %v3985
    %4023 = vst.msk [vmem:[#allocation2 + $0x60] sm:$0xff] %vm4010, %v3987
    %4024 = vst.msk [vmem:[#allocation2 + $0x68] sm:$0xff] %vm4010, %v3989
    %4025 = vst.msk [vmem:[#allocation2 + $0x70] sm:$0xff] %vm4010, %v3991
    %4026 = vst.msk [vmem:[#allocation2 + $0x78] sm:$0xff] %vm4010, %v3993
    %4043 = vrot.lane.b32.xlu0 %v3445, 21
    %v4044 = vpop.permute.xlu0 %4043
    %4045 = vrot.lane.b32.xlu0 %v3447, 21
    %v4046 = vpop.permute.xlu0 %4045
    %4047 = vrot.lane.b32.xlu0 %v3450, 21
    %v4048 = vpop.permute.xlu0 %4047
    %4049 = vrot.lane.b32.xlu0 %v3452, 21
    %v4050 = vpop.permute.xlu0 %4049
    %4051 = vrot.lane.b32.xlu0 %v3455, 21
    %v4052 = vpop.permute.xlu0 %4051
    %4053 = vrot.lane.b32.xlu0 %v3457, 21
    %v4054 = vpop.permute.xlu0 %4053
    %4055 = vrot.lane.b32.xlu0 %v3460, 21
    %v4056 = vpop.permute.xlu0 %4055
    %4057 = vrot.lane.b32.xlu0 %v3462, 21
    %v4058 = vpop.permute.xlu0 %4057
    %4059 = vrot.lane.b32.xlu0 %v3465, 21
    %v4060 = vpop.permute.xlu0 %4059
    %4061 = vrot.lane.b32.xlu0 %v3467, 21
    %v4062 = vpop.permute.xlu0 %4061
    %4063 = vrot.lane.b32.xlu0 %v3470, 21
    %v4064 = vpop.permute.xlu0 %4063
    %4065 = vrot.lane.b32.xlu0 %v3472, 21
    %v4066 = vpop.permute.xlu0 %4065
    %4067 = vrot.lane.b32.xlu0 %v3475, 21
    %v4068 = vpop.permute.xlu0 %4067
    %4069 = vrot.lane.b32.xlu0 %v3477, 21
    %v4070 = vpop.permute.xlu0 %4069
    %4071 = vrot.lane.b32.xlu0 %v3480, 21
    %v4072 = vpop.permute.xlu0 %4071
    %4073 = vrot.lane.b32.xlu0 %v3482, 21
    %v4074 = vpop.permute.xlu0 %4073
    %vm4091 = vcmask 195752
    %4092 = vst.msk [vmem:[#allocation2] sm:$0xff] %vm4091, %v4044
    %4093 = vst.msk [vmem:[#allocation2 + $0x8] sm:$0xff] %vm4091, %v4046
    %4094 = vst.msk [vmem:[#allocation2 + $0x10] sm:$0xff] %vm4091, %v4048
    %4095 = vst.msk [vmem:[#allocation2 + $0x18] sm:$0xff] %vm4091, %v4050
    %4096 = vst.msk [vmem:[#allocation2 + $0x20] sm:$0xff] %vm4091, %v4052
    %4097 = vst.msk [vmem:[#allocation2 + $0x28] sm:$0xff] %vm4091, %v4054
    %4098 = vst.msk [vmem:[#allocation2 + $0x30] sm:$0xff] %vm4091, %v4056
    %4099 = vst.msk [vmem:[#allocation2 + $0x38] sm:$0xff] %vm4091, %v4058
    %4100 = vst.msk [vmem:[#allocation2 + $0x40] sm:$0xff] %vm4091, %v4060
    %4101 = vst.msk [vmem:[#allocation2 + $0x48] sm:$0xff] %vm4091, %v4062
    %4102 = vst.msk [vmem:[#allocation2 + $0x50] sm:$0xff] %vm4091, %v4064
    %4103 = vst.msk [vmem:[#allocation2 + $0x58] sm:$0xff] %vm4091, %v4066
    %4104 = vst.msk [vmem:[#allocation2 + $0x60] sm:$0xff] %vm4091, %v4068
    %4105 = vst.msk [vmem:[#allocation2 + $0x68] sm:$0xff] %vm4091, %v4070
    %4106 = vst.msk [vmem:[#allocation2 + $0x70] sm:$0xff] %vm4091, %v4072
    %4107 = vst.msk [vmem:[#allocation2 + $0x78] sm:$0xff] %vm4091, %v4074
    %4124 = vrot.lane.b32.xlu0 %v3485, 24
    %v4125 = vpop.permute.xlu0 %4124
    %4126 = vrot.lane.b32.xlu0 %v3487, 24
    %v4127 = vpop.permute.xlu0 %4126
    %4128 = vrot.lane.b32.xlu0 %v3490, 24
    %v4129 = vpop.permute.xlu0 %4128
    %4130 = vrot.lane.b32.xlu0 %v3492, 24
    %v4131 = vpop.permute.xlu0 %4130
    %4132 = vrot.lane.b32.xlu0 %v3495, 24
    %v4133 = vpop.permute.xlu0 %4132
    %4134 = vrot.lane.b32.xlu0 %v3497, 24
    %v4135 = vpop.permute.xlu0 %4134
    %4136 = vrot.lane.b32.xlu0 %v3500, 24
    %v4137 = vpop.permute.xlu0 %4136
    %4138 = vrot.lane.b32.xlu0 %v3502, 24
    %v4139 = vpop.permute.xlu0 %4138
    %4140 = vrot.lane.b32.xlu0 %v3505, 24
    %v4141 = vpop.permute.xlu0 %4140
    %4142 = vrot.lane.b32.xlu0 %v3507, 24
    %v4143 = vpop.permute.xlu0 %4142
    %4144 = vrot.lane.b32.xlu0 %v3510, 24
    %v4145 = vpop.permute.xlu0 %4144
    %4146 = vrot.lane.b32.xlu0 %v3512, 24
    %v4147 = vpop.permute.xlu0 %4146
    %4148 = vrot.lane.b32.xlu0 %v3515, 24
    %v4149 = vpop.permute.xlu0 %4148
    %4150 = vrot.lane.b32.xlu0 %v3517, 24
    %v4151 = vpop.permute.xlu0 %4150
    %4152 = vrot.lane.b32.xlu0 %v3520, 24
    %v4153 = vpop.permute.xlu0 %4152
    %4154 = vrot.lane.b32.xlu0 %v3522, 24
    %v4155 = vpop.permute.xlu0 %4154
    %vm4172 = vcmask 220352
    %4173 = vst.msk [vmem:[#allocation2] sm:$0xff] %vm4172, %v4125
    %4174 = vst.msk [vmem:[#allocation2 + $0x8] sm:$0xff] %vm4172, %v4127
    %4175 = vst.msk [vmem:[#allocation2 + $0x10] sm:$0xff] %vm4172, %v4129
    %4176 = vst.msk [vmem:[#allocation2 + $0x18] sm:$0xff] %vm4172, %v4131
    %4177 = vst.msk [vmem:[#allocation2 + $0x20] sm:$0xff] %vm4172, %v4133
    %4178 = vst.msk [vmem:[#allocation2 + $0x28] sm:$0xff] %vm4172, %v4135
    %4179 = vst.msk [vmem:[#allocation2 + $0x30] sm:$0xff] %vm4172, %v4137
    %4180 = vst.msk [vmem:[#allocation2 + $0x38] sm:$0xff] %vm4172, %v4139
    %4181 = vst.msk [vmem:[#allocation2 + $0x40] sm:$0xff] %vm4172, %v4141
    %4182 = vst.msk [vmem:[#allocation2 + $0x48] sm:$0xff] %vm4172, %v4143
    %4183 = vst.msk [vmem:[#allocation2 + $0x50] sm:$0xff] %vm4172, %v4145
    %4184 = vst.msk [vmem:[#allocation2 + $0x58] sm:$0xff] %vm4172, %v4147
    %4185 = vst.msk [vmem:[#allocation2 + $0x60] sm:$0xff] %vm4172, %v4149
    %4186 = vst.msk [vmem:[#allocation2 + $0x68] sm:$0xff] %vm4172, %v4151
    %4187 = vst.msk [vmem:[#allocation2 + $0x70] sm:$0xff] %vm4172, %v4153
    %4188 = vst.msk [vmem:[#allocation2 + $0x78] sm:$0xff] %vm4172, %v4155
    %v4189 = vld [vmem:[#allocation2] sm:$0xff]
    %v4190 = vld [vmem:[#allocation2 + $0x8] sm:$0xff]
    %v4191 = vld [vmem:[#allocation2 + $0x10] sm:$0xff]
    %v4192 = vld [vmem:[#allocation2 + $0x18] sm:$0xff]
    %v4193 = vld [vmem:[#allocation2 + $0x20] sm:$0xff]
    %v4194 = vld [vmem:[#allocation2 + $0x28] sm:$0xff]
    %v4195 = vld [vmem:[#allocation2 + $0x30] sm:$0xff]
    %v4196 = vld [vmem:[#allocation2 + $0x38] sm:$0xff]
    %v4197 = vld [vmem:[#allocation2 + $0x40] sm:$0xff]
    %v4198 = vld [vmem:[#allocation2 + $0x48] sm:$0xff]
    %v4199 = vld [vmem:[#allocation2 + $0x50] sm:$0xff]
    %v4200 = vld [vmem:[#allocation2 + $0x58] sm:$0xff]
    %v4201 = vld [vmem:[#allocation2 + $0x60] sm:$0xff]
    %v4202 = vld [vmem:[#allocation2 + $0x68] sm:$0xff]
    %v4203 = vld [vmem:[#allocation2 + $0x70] sm:$0xff]
    %v4204 = vld [vmem:[#allocation2 + $0x78] sm:$0xff]
    %v4205 = vpack.c.bf16 %v4190, %v4189
    %v4206 = vpack.c.bf16 %v4192, %v4191
    %v4207 = vpack.c.bf16 %v4194, %v4193
    %v4208 = vpack.c.bf16 %v4196, %v4195
    %v4209 = vpack.c.bf16 %v4198, %v4197
    %v4210 = vpack.c.bf16 %v4200, %v4199
    %v4211 = vpack.c.bf16 %v4202, %v4201
    %v4212 = vpack.c.bf16 %v4204, %v4203
    %v4213 = vld [vmem:[#allocation8] sm:$0xf]
    %v4214 = vld [vmem:[#allocation8 + $0x4] sm:$0xf]
    %v4215 = vld [vmem:[#allocation8 + $0x8] sm:$0xf]
    %v4216 = vld [vmem:[#allocation8 + $0xc] sm:$0x3]
    %v4217 = vld [vmem:[#allocation10] sm:$0x1]
    %v4219 = vperm.slane %v4217, 0
    %v4225 = vunpack.c.l.b16 %v4213
    %v4226 = vunpack.c.l.b16 %v4214
    %v4227 = vunpack.c.l.b16 %v4215
    %v4228 = vunpack.c.l.b16 %v4216
    %v4229 = vpack.c.b16 %v4226, %v4225
    %v4230 = vpack.c.b16 %v4228, %v4227
    %vm4232 = vcmask 220160
    %v4234 = vsel %vm4232, %v4205, 0
    %v4237 = vsel %vm4232, %v4206, 0
    %v4240 = vsel %vm4232, %v4207, 0
    %v4243 = vsel %vm4232, %v4208, 0
    %v4246 = vsel %vm4232, %v4209, 0
    %v4249 = vsel %vm4232, %v4210, 0
    %v4252 = vsel %vm4232, %v4211, 0
    %v4255 = vsel %vm4232, %v4212, 0
    %vm4257 = vcmask 1044480
    %vm4258 = vcmask 1045504
    %v4259 = vsel %vm4257, 4294967295, 65535
    %v4260 = vsel %vm4258, %v4259, 0
    %v4262 = vand.u32 %v4230, %v4260
    %4264 = vmatpush.bf16.msra.mxu0 0
    %4265 = vmatpush.bf16.msra.mxu0 0
    %4266 = vmatpush.bf16.msra.mxu0 0
    %4267 = vmatpush.bf16.msra.mxu0 0
    %4268 = vmatpush.bf16.msra.mxu0 0
    %4269 = vmatpush.bf16.msra.mxu0 0
    %4270 = vmatpush.bf16.msra.mxu0 %v4262
    %4271 = vmatpush.bf16.msra.mxu0 %v4229
    %4272 = vmatmul.bf16.gmra.mxu0 %v4234
    %v4273 = vpop.f32.mrf.mxu0
    %v4274 = vadd.f32 %v4219, %v4273
    %v4275 = vpop.f32.mrf.mxu0
    %v4276 = vadd.f32 %v4219, %v4275
    %4277 = vmatmul.bf16.gmra.mxu0 %v4237
    %v4278 = vpop.f32.mrf.mxu0
    %v4279 = vadd.f32 %v4219, %v4278
    %v4280 = vpop.f32.mrf.mxu0
    %v4281 = vadd.f32 %v4219, %v4280
    %4282 = vmatmul.bf16.gmra.mxu0 %v4240
    %v4283 = vpop.f32.mrf.mxu0
    %v4284 = vadd.f32 %v4219, %v4283
    %v4285 = vpop.f32.mrf.mxu0
    %v4286 = vadd.f32 %v4219, %v4285
    %4287 = vmatmul.bf16.gmra.mxu0 %v4243
    %v4288 = vpop.f32.mrf.mxu0
    %v4289 = vadd.f32 %v4219, %v4288
    %v4290 = vpop.f32.mrf.mxu0
    %v4291 = vadd.f32 %v4219, %v4290
    %4292 = vmatmul.bf16.gmra.mxu0 %v4246
    %v4293 = vpop.f32.mrf.mxu0
    %v4294 = vadd.f32 %v4219, %v4293
    %v4295 = vpop.f32.mrf.mxu0
    %v4296 = vadd.f32 %v4219, %v4295
    %4297 = vmatmul.bf16.gmra.mxu0 %v4249
    %v4298 = vpop.f32.mrf.mxu0
    %v4299 = vadd.f32 %v4219, %v4298
    %v4300 = vpop.f32.mrf.mxu0
    %v4301 = vadd.f32 %v4219, %v4300
    %4302 = vmatmul.bf16.gmra.mxu0 %v4252
    %v4303 = vpop.f32.mrf.mxu0
    %v4304 = vadd.f32 %v4219, %v4303
    %v4305 = vpop.f32.mrf.mxu0
    %v4306 = vadd.f32 %v4219, %v4305
    %4307 = vmatmul.bf16.gmra.mxu0 %v4255
    %v4308 = vpop.f32.mrf.mxu0
    %v4309 = vadd.f32 %v4219, %v4308
    %v4310 = vpop.f32.mrf.mxu0
    %v4311 = vadd.f32 %v4219, %v4310
    %4312 = vdwg.mxu0
    %v4313 = vld [vmem:[#allocation11] sm:$0xf]
    %v4314 = vld [vmem:[#allocation11 + $0x4] sm:$0xf]
    %v4315 = vld [vmem:[#allocation11 + $0x8] sm:$0xf]
    %v4316 = vld [vmem:[#allocation11 + $0xc] sm:$0xf]
    %v4317 = vld [vmem:[#allocation11 + $0x10] sm:$0xf]
    %v4318 = vld [vmem:[#allocation11 + $0x14] sm:$0xf]
    %v4319 = vld [vmem:[#allocation11 + $0x18] sm:$0xf]
    %v4320 = vld [vmem:[#allocation11 + $0x1c] sm:$0xf]
    %v4321 = vld [vmem:[#allocation11 + $0x20] sm:$0xf]
    %v4322 = vld [vmem:[#allocation11 + $0x24] sm:$0xf]
    %v4323 = vld [vmem:[#allocation11 + $0x28] sm:$0xf]
    %v4324 = vld [vmem:[#allocation11 + $0x2c] sm:$0xf]
    %v4325 = vld [vmem:[#allocation11 + $0x30] sm:$0xf]
    %v4326 = vld [vmem:[#allocation11 + $0x34] sm:$0xf]
    %v4327 = vld [vmem:[#allocation11 + $0x38] sm:$0xf]
    %v4328 = vld [vmem:[#allocation11 + $0x3c] sm:$0xf]
    %v4329 = vld [vmem:[#allocation11 + $0x40] sm:$0xf]
    %v4330 = vld [vmem:[#allocation11 + $0x44] sm:$0xf]
    %v4331 = vld [vmem:[#allocation11 + $0x48] sm:$0xf]
    %v4332 = vld [vmem:[#allocation11 + $0x4c] sm:$0xf]
    %v4333 = vld [vmem:[#allocation11 + $0x50] sm:$0xf]
    %v4334 = vld [vmem:[#allocation11 + $0x54] sm:$0xf]
    %v4335 = vld [vmem:[#allocation11 + $0x58] sm:$0xf]
    %v4336 = vld [vmem:[#allocation11 + $0x5c] sm:$0xf]
    %v4337 = vld [vmem:[#allocation11 + $0x60] sm:$0xf]
    %v4338 = vld [vmem:[#allocation11 + $0x64] sm:$0xf]
    %v4339 = vld [vmem:[#allocation11 + $0x68] sm:$0xf]
    %v4340 = vld [vmem:[#allocation11 + $0x6c] sm:$0xf]
    %v4341 = vld [vmem:[#allocation11 + $0x70] sm:$0xf]
    %v4342 = vld [vmem:[#allocation11 + $0x74] sm:$0xf]
    %v4343 = vld [vmem:[#allocation11 + $0x78] sm:$0xf]
    %v4344 = vld [vmem:[#allocation11 + $0x7c] sm:$0xf]
    %v4345 = vld [vmem:[#allocation11 + $0x80] sm:$0xf]
    %v4346 = vld [vmem:[#allocation11 + $0x84] sm:$0xf]
    %v4347 = vld [vmem:[#allocation11 + $0x88] sm:$0xf]
    %v4348 = vld [vmem:[#allocation11 + $0x8c] sm:$0xf]
    %v4349 = vpack.c.bf16 %v4276, %v4274
    %v4350 = vpack.c.bf16 %v4281, %v4279
    %v4351 = vpack.c.bf16 %v4286, %v4284
    %v4352 = vpack.c.bf16 %v4291, %v4289
    %v4353 = vpack.c.bf16 %v4296, %v4294
    %v4354 = vpack.c.bf16 %v4301, %v4299
    %v4355 = vpack.c.bf16 %v4306, %v4304
    %v4356 = vpack.c.bf16 %v4311, %v4309
    %v4393 = vunpack.c.l.b16 %v4313
    %v4394 = vunpack.c.l.b16 %v4314
    %v4395 = vunpack.c.l.b16 %v4315
    %v4396 = vunpack.c.l.b16 %v4316
    %v4397 = vunpack.c.l.b16 %v4317
    %v4398 = vunpack.c.l.b16 %v4318
    %v4399 = vunpack.c.l.b16 %v4319
    %v4400 = vunpack.c.l.b16 %v4320
    %v4401 = vunpack.c.l.b16 %v4321
    %v4402 = vunpack.c.l.b16 %v4322
    %v4403 = vunpack.c.l.b16 %v4323
    %v4404 = vunpack.c.l.b16 %v4324
    %v4405 = vunpack.c.l.b16 %v4325
    %v4406 = vunpack.c.l.b16 %v4326
    %v4407 = vunpack.c.l.b16 %v4327
    %v4408 = vunpack.c.l.b16 %v4328
    %v4409 = vunpack.c.l.b16 %v4329
    %v4410 = vunpack.c.l.b16 %v4330
    %v4411 = vunpack.c.l.b16 %v4331
    %v4412 = vunpack.c.l.b16 %v4332
    %v4413 = vunpack.c.l.b16 %v4333
    %v4414 = vunpack.c.l.b16 %v4334
    %v4415 = vunpack.c.l.b16 %v4335
    %v4416 = vunpack.c.l.b16 %v4336
    %v4417 = vunpack.c.l.b16 %v4337
    %v4418 = vunpack.c.l.b16 %v4338
    %v4419 = vunpack.c.l.b16 %v4339
    %v4420 = vunpack.c.l.b16 %v4340
    %v4421 = vunpack.c.l.b16 %v4341
    %v4422 = vunpack.c.l.b16 %v4342
    %v4423 = vunpack.c.l.b16 %v4343
    %v4424 = vunpack.c.l.b16 %v4344
    %v4425 = vunpack.c.l.b16 %v4345
    %v4426 = vunpack.c.l.b16 %v4346
    %v4427 = vunpack.c.l.b16 %v4347
    %v4428 = vunpack.c.l.b16 %v4348
    %v4429 = vpack.c.b16 %v4394, %v4393
    %v4430 = vpack.c.b16 %v4396, %v4395
    %v4431 = vpack.c.b16 %v4398, %v4397
    %v4432 = vpack.c.b16 %v4400, %v4399
    %v4433 = vpack.c.b16 %v4402, %v4401
    %v4434 = vpack.c.b16 %v4404, %v4403
    %v4435 = vpack.c.b16 %v4406, %v4405
    %v4436 = vpack.c.b16 %v4408, %v4407
    %v4437 = vpack.c.b16 %v4410, %v4409
    %v4438 = vpack.c.b16 %v4412, %v4411
    %v4439 = vpack.c.b16 %v4414, %v4413
    %v4440 = vpack.c.b16 %v4416, %v4415
    %v4441 = vpack.c.b16 %v4418, %v4417
    %v4442 = vpack.c.b16 %v4420, %v4419
    %v4443 = vpack.c.b16 %v4422, %v4421
    %v4444 = vpack.c.b16 %v4424, %v4423
    %v4445 = vpack.c.b16 %v4426, %v4425
    %v4446 = vpack.c.b16 %v4428, %v4427
    %4465 = vmatpush.bf16.msra.mxu0 %v4356
    %4466 = vmatpush.bf16.msra.mxu0 %v4355
    %4467 = vmatpush.bf16.msra.mxu0 %v4354
    %4468 = vmatpush.bf16.msra.mxu0 %v4353
    %4469 = vmatpush.bf16.msra.mxu0 %v4352
    %4470 = vmatpush.bf16.msra.mxu0 %v4351
    %4471 = vmatpush.bf16.msra.mxu0 %v4350
    %4472 = vmatpush.bf16.msra.mxu0 %v4349
    %4473 = vmatmul.bf16.gmra.mxu0 %v4429
    %v4474 = vpop.f32.mrf.mxu0
    %v4475 = vadd.f32 0.0, %v4474
    %v4476 = vpop.f32.mrf.mxu0
    %v4477 = vadd.f32 0.0, %v4476
    %4478 = vmatmul.bf16.gmra.mxu0 %v4430
    %v4479 = vpop.f32.mrf.mxu0
    %v4480 = vadd.f32 0.0, %v4479
    %v4481 = vpop.f32.mrf.mxu0
    %v4482 = vadd.f32 0.0, %v4481
    %4483 = vmatmul.bf16.gmra.mxu0 %v4431
    %v4484 = vpop.f32.mrf.mxu0
    %v4485 = vadd.f32 0.0, %v4484
    %v4486 = vpop.f32.mrf.mxu0
    %v4487 = vadd.f32 0.0, %v4486
    %4488 = vmatmul.bf16.gmra.mxu0 %v4432
    %v4489 = vpop.f32.mrf.mxu0
    %v4490 = vadd.f32 0.0, %v4489
    %v4491 = vpop.f32.mrf.mxu0
    %v4492 = vadd.f32 0.0, %v4491
    %4493 = vmatmul.bf16.gmra.mxu0 %v4433
    %v4494 = vpop.f32.mrf.mxu0
    %v4495 = vadd.f32 0.0, %v4494
    %v4496 = vpop.f32.mrf.mxu0
    %v4497 = vadd.f32 0.0, %v4496
    %4498 = vmatmul.bf16.gmra.mxu0 %v4434
    %v4499 = vpop.f32.mrf.mxu0
    %v4500 = vadd.f32 0.0, %v4499
    %v4501 = vpop.f32.mrf.mxu0
    %v4502 = vadd.f32 0.0, %v4501
    %4503 = vmatmul.bf16.gmra.mxu0 %v4435
    %v4504 = vpop.f32.mrf.mxu0
    %v4505 = vadd.f32 0.0, %v4504
    %v4506 = vpop.f32.mrf.mxu0
    %v4507 = vadd.f32 0.0, %v4506
    %4508 = vmatmul.bf16.gmra.mxu0 %v4436
    %v4509 = vpop.f32.mrf.mxu0
    %v4510 = vadd.f32 0.0, %v4509
    %v4511 = vpop.f32.mrf.mxu0
    %v4512 = vadd.f32 0.0, %v4511
    %4513 = vmatmul.bf16.gmra.mxu0 %v4437
    %v4514 = vpop.f32.mrf.mxu0
    %v4515 = vadd.f32 0.0, %v4514
    %v4516 = vpop.f32.mrf.mxu0
    %v4517 = vadd.f32 0.0, %v4516
    %4518 = vmatmul.bf16.gmra.mxu0 %v4438
    %v4519 = vpop.f32.mrf.mxu0
    %v4520 = vadd.f32 0.0, %v4519
    %v4521 = vpop.f32.mrf.mxu0
    %v4522 = vadd.f32 0.0, %v4521
    %4523 = vmatmul.bf16.gmra.mxu0 %v4439
    %v4524 = vpop.f32.mrf.mxu0
    %v4525 = vadd.f32 0.0, %v4524
    %v4526 = vpop.f32.mrf.mxu0
    %v4527 = vadd.f32 0.0, %v4526
    %4528 = vmatmul.bf16.gmra.mxu0 %v4440
    %v4529 = vpop.f32.mrf.mxu0
    %v4530 = vadd.f32 0.0, %v4529
    %v4531 = vpop.f32.mrf.mxu0
    %v4532 = vadd.f32 0.0, %v4531
    %4533 = vmatmul.bf16.gmra.mxu0 %v4441
    %v4534 = vpop.f32.mrf.mxu0
    %v4535 = vadd.f32 0.0, %v4534
    %v4536 = vpop.f32.mrf.mxu0
    %v4537 = vadd.f32 0.0, %v4536
    %4538 = vmatmul.bf16.gmra.mxu0 %v4442
    %v4539 = vpop.f32.mrf.mxu0
    %v4540 = vadd.f32 0.0, %v4539
    %v4541 = vpop.f32.mrf.mxu0
    %v4542 = vadd.f32 0.0, %v4541
    %4543 = vmatmul.bf16.gmra.mxu0 %v4443
    %v4544 = vpop.f32.mrf.mxu0
    %v4545 = vadd.f32 0.0, %v4544
    %v4546 = vpop.f32.mrf.mxu0
    %v4547 = vadd.f32 0.0, %v4546
    %4548 = vmatmul.bf16.gmra.mxu0 %v4444
    %v4549 = vpop.f32.mrf.mxu0
    %v4550 = vadd.f32 0.0, %v4549
    %v4551 = vpop.f32.mrf.mxu0
    %v4552 = vadd.f32 0.0, %v4551
    %4553 = vmatmul.bf16.gmra.mxu0 %v4445
    %v4554 = vpop.f32.mrf.mxu0
    %v4555 = vadd.f32 0.0, %v4554
    %v4556 = vpop.f32.mrf.mxu0
    %v4557 = vadd.f32 0.0, %v4556
    %4558 = vmatmul.bf16.gmra.mxu0 %v4446
    %v4559 = vpop.f32.mrf.mxu0
    %v4560 = vadd.f32 0.0, %v4559
    %v4561 = vpop.f32.mrf.mxu0
    %v4562 = vadd.f32 0.0, %v4561
    %4563 = vdwg.mxu0
    %vm4564 = vcmask 97280
    %4565 = vst.msk [vmem:[#allocation3] sm:$0xff] %vm4564, %v4475
    %4566 = vst.msk [vmem:[#allocation3 + $0x8] sm:$0xff] %vm4564, %v4477
    %4567 = vst.msk [vmem:[#allocation3 + $0x10] sm:$0xff] %vm4564, %v4480
    %4568 = vst.msk [vmem:[#allocation3 + $0x18] sm:$0xff] %vm4564, %v4482
    %4573 = vrot.lane.b32.xlu0 %v4485, 12
    %v4574 = vpop.permute.xlu0 %4573
    %4575 = vrot.lane.b32.xlu0 %v4487, 12
    %v4576 = vpop.permute.xlu0 %4575
    %4577 = vrot.lane.b32.xlu0 %v4490, 12
    %v4578 = vpop.permute.xlu0 %4577
    %4579 = vrot.lane.b32.xlu0 %v4492, 12
    %v4580 = vpop.permute.xlu0 %4579
    %vm4585 = vcmask 195680
    %4586 = vst.msk [vmem:[#allocation3] sm:$0xff] %vm4585, %v4574
    %4587 = vst.msk [vmem:[#allocation3 + $0x8] sm:$0xff] %vm4585, %v4576
    %4588 = vst.msk [vmem:[#allocation3 + $0x10] sm:$0xff] %vm4585, %v4578
    %4589 = vst.msk [vmem:[#allocation3 + $0x18] sm:$0xff] %vm4585, %v4580
    %4594 = vrot.lane.b32.xlu0 %v4495, 24
    %v4595 = vpop.permute.xlu0 %4594
    %4596 = vrot.lane.b32.xlu0 %v4497, 24
    %v4597 = vpop.permute.xlu0 %4596
    %4598 = vrot.lane.b32.xlu0 %v4500, 24
    %v4599 = vpop.permute.xlu0 %4598
    %4600 = vrot.lane.b32.xlu0 %v4502, 24
    %v4601 = vpop.permute.xlu0 %4600
    %vm4606 = vcmask 294080
    %4607 = vst.msk [vmem:[#allocation3] sm:$0xff] %vm4606, %v4595
    %4608 = vst.msk [vmem:[#allocation3 + $0x8] sm:$0xff] %vm4606, %v4597
    %4609 = vst.msk [vmem:[#allocation3 + $0x10] sm:$0xff] %vm4606, %v4599
    %4610 = vst.msk [vmem:[#allocation3 + $0x18] sm:$0xff] %vm4606, %v4601
    %4615 = vrot.lane.b32.xlu0 %v4505, 36
    %v4616 = vpop.permute.xlu0 %4615
    %4617 = vrot.lane.b32.xlu0 %v4507, 36
    %v4618 = vpop.permute.xlu0 %4617
    %4619 = vrot.lane.b32.xlu0 %v4510, 36
    %v4620 = vpop.permute.xlu0 %4619
    %4621 = vrot.lane.b32.xlu0 %v4512, 36
    %v4622 = vpop.permute.xlu0 %4621
    %vm4627 = vcmask 392480
    %4628 = vst.msk [vmem:[#allocation3] sm:$0xff] %vm4627, %v4616
    %4629 = vst.msk [vmem:[#allocation3 + $0x8] sm:$0xff] %vm4627, %v4618
    %4630 = vst.msk [vmem:[#allocation3 + $0x10] sm:$0xff] %vm4627, %v4620
    %4631 = vst.msk [vmem:[#allocation3 + $0x18] sm:$0xff] %vm4627, %v4622
    %4636 = vrot.lane.b32.xlu0 %v4515, 48
    %v4637 = vpop.permute.xlu0 %4636
    %4638 = vrot.lane.b32.xlu0 %v4517, 48
    %v4639 = vpop.permute.xlu0 %4638
    %4640 = vrot.lane.b32.xlu0 %v4520, 48
    %v4641 = vpop.permute.xlu0 %4640
    %4642 = vrot.lane.b32.xlu0 %v4522, 48
    %v4643 = vpop.permute.xlu0 %4642
    %vm4648 = vcmask 490880
    %4649 = vst.msk [vmem:[#allocation3] sm:$0xff] %vm4648, %v4637
    %4650 = vst.msk [vmem:[#allocation3 + $0x8] sm:$0xff] %vm4648, %v4639
    %4651 = vst.msk [vmem:[#allocation3 + $0x10] sm:$0xff] %vm4648, %v4641
    %4652 = vst.msk [vmem:[#allocation3 + $0x18] sm:$0xff] %vm4648, %v4643
    %4657 = vrot.lane.b32.xlu0 %v4525, 60
    %v4658 = vpop.permute.xlu0 %4657
    %4659 = vrot.lane.b32.xlu0 %v4527, 60
    %v4660 = vpop.permute.xlu0 %4659
    %4661 = vrot.lane.b32.xlu0 %v4530, 60
    %v4662 = vpop.permute.xlu0 %4661
    %4663 = vrot.lane.b32.xlu0 %v4532, 60
    %v4664 = vpop.permute.xlu0 %4663
    %vm4669 = vcmask 589280
    %4670 = vst.msk [vmem:[#allocation3] sm:$0xff] %vm4669, %v4658
    %4671 = vst.msk [vmem:[#allocation3 + $0x8] sm:$0xff] %vm4669, %v4660
    %4672 = vst.msk [vmem:[#allocation3 + $0x10] sm:$0xff] %vm4669, %v4662
    %4673 = vst.msk [vmem:[#allocation3 + $0x18] sm:$0xff] %vm4669, %v4664
    %4678 = vrot.lane.b32.xlu0 %v4535, 72
    %v4679 = vpop.permute.xlu0 %4678
    %4680 = vrot.lane.b32.xlu0 %v4537, 72
    %v4681 = vpop.permute.xlu0 %4680
    %4682 = vrot.lane.b32.xlu0 %v4540, 72
    %v4683 = vpop.permute.xlu0 %4682
    %4684 = vrot.lane.b32.xlu0 %v4542, 72
    %v4685 = vpop.permute.xlu0 %4684
    %vm4690 = vcmask 687680
    %4691 = vst.msk [vmem:[#allocation3] sm:$0xff] %vm4690, %v4679
    %4692 = vst.msk [vmem:[#allocation3 + $0x8] sm:$0xff] %vm4690, %v4681
    %4693 = vst.msk [vmem:[#allocation3 + $0x10] sm:$0xff] %vm4690, %v4683
    %4694 = vst.msk [vmem:[#allocation3 + $0x18] sm:$0xff] %vm4690, %v4685
    %4699 = vrot.lane.b32.xlu0 %v4545, 84
    %v4700 = vpop.permute.xlu0 %4699
    %4701 = vrot.lane.b32.xlu0 %v4547, 84
    %v4702 = vpop.permute.xlu0 %4701
    %4703 = vrot.lane.b32.xlu0 %v4550, 84
    %v4704 = vpop.permute.xlu0 %4703
    %4705 = vrot.lane.b32.xlu0 %v4552, 84
    %v4706 = vpop.permute.xlu0 %4705
    %vm4711 = vcmask 786080
    %4712 = vst.msk [vmem:[#allocation3] sm:$0xff] %vm4711, %v4700
    %4713 = vst.msk [vmem:[#allocation3 + $0x8] sm:$0xff] %vm4711, %v4702
    %4714 = vst.msk [vmem:[#allocation3 + $0x10] sm:$0xff] %vm4711, %v4704
    %4715 = vst.msk [vmem:[#allocation3 + $0x18] sm:$0xff] %vm4711, %v4706
    %4720 = vrot.lane.b32.xlu0 %v4555, 96
    %v4721 = vpop.permute.xlu0 %4720
    %4722 = vrot.lane.b32.xlu0 %v4557, 96
    %v4723 = vpop.permute.xlu0 %4722
    %4724 = vrot.lane.b32.xlu0 %v4560, 96
    %v4725 = vpop.permute.xlu0 %4724
    %4726 = vrot.lane.b32.xlu0 %v4562, 96
    %v4727 = vpop.permute.xlu0 %4726
    %vm4732 = vcmask 884480
    %4733 = vst.msk [vmem:[#allocation3] sm:$0xff] %vm4732, %v4721
    %4734 = vst.msk [vmem:[#allocation3 + $0x8] sm:$0xff] %vm4732, %v4723
    %4735 = vst.msk [vmem:[#allocation3 + $0x10] sm:$0xff] %vm4732, %v4725
    %4736 = vst.msk [vmem:[#allocation3 + $0x18] sm:$0xff] %vm4732, %v4727
    %v4737 = vld [vmem:[#allocation3] sm:$0xff]
    %v4738 = vld [vmem:[#allocation3 + $0x8] sm:$0xff]
    %v4739 = vld [vmem:[#allocation3 + $0x10] sm:$0xff]
    %v4740 = vld [vmem:[#allocation3 + $0x18] sm:$0xff]
    %v4741 = vpack.c.bf16 %v4738, %v4737
    %v4742 = vpack.c.bf16 %v4740, %v4739
    %v4743 = vld [vmem:[#allocation13] sm:$0xf]
    %v4744 = vld [vmem:[#allocation13 + $0x4] sm:$0xf]
    %v4745 = vld [vmem:[#allocation13 + $0x8] sm:$0xf]
    %v4746 = vld [vmem:[#allocation13 + $0xc] sm:$0xf]
    %v4747 = vld [vmem:[#allocation13 + $0x10] sm:$0xf]
    %v4748 = vld [vmem:[#allocation13 + $0x14] sm:$0xf]
    %v4749 = vld [vmem:[#allocation13 + $0x18] sm:$0xf]
    %v4750 = vld [vmem:[#allocation13 + $0x1c] sm:$0xf]
    %v4751 = vld [vmem:[#allocation13 + $0x20] sm:$0xf]
    %v4752 = vld [vmem:[#allocation13 + $0x24] sm:$0xf]
    %v4753 = vld [vmem:[#allocation13 + $0x28] sm:$0xf]
    %v4754 = vld [vmem:[#allocation13 + $0x2c] sm:$0xf]
    %v4755 = vld [vmem:[#allocation13 + $0x30] sm:$0xf]
    %v4756 = vld [vmem:[#allocation13 + $0x34] sm:$0x3]
    %v4757 = vld [vmem:[#allocation14] sm:$0x1]
    %v4759 = vperm.slane %v4757, 0
    %v4775 = vunpack.c.l.b16 %v4743
    %v4776 = vunpack.c.l.b16 %v4744
    %v4777 = vunpack.c.l.b16 %v4745
    %v4778 = vunpack.c.l.b16 %v4746
    %v4779 = vunpack.c.l.b16 %v4747
    %v4780 = vunpack.c.l.b16 %v4748
    %v4781 = vunpack.c.l.b16 %v4749
    %v4782 = vunpack.c.l.b16 %v4750
    %v4783 = vunpack.c.l.b16 %v4751
    %v4784 = vunpack.c.l.b16 %v4752
    %v4785 = vunpack.c.l.b16 %v4753
    %v4786 = vunpack.c.l.b16 %v4754
    %v4787 = vunpack.c.l.b16 %v4755
    %v4788 = vunpack.c.l.b16 %v4756
    %v4789 = vpack.c.b16 %v4776, %v4775
    %v4790 = vpack.c.b16 %v4778, %v4777
    %v4791 = vpack.c.b16 %v4780, %v4779
    %v4792 = vpack.c.b16 %v4782, %v4781
    %v4793 = vpack.c.b16 %v4784, %v4783
    %v4794 = vpack.c.b16 %v4786, %v4785
    %v4795 = vpack.c.b16 %v4788, %v4787
    %vm4802 = vcmask 883712
    %v4804 = vsel %vm4802, %v4741, 0
    %v4807 = vsel %vm4802, %v4742, 0
    %v4810 = vsel %vm4258, %v4795, 0
    %4812 = vmatpush.bf16.msra.mxu0 0
    %4813 = vmatpush.bf16.msra.mxu0 %v4810
    %4814 = vmatpush.bf16.msra.mxu0 %v4794
    %4815 = vmatpush.bf16.msra.mxu0 %v4793
    %4816 = vmatpush.bf16.msra.mxu0 %v4792
    %4817 = vmatpush.bf16.msra.mxu0 %v4791
    %4818 = vmatpush.bf16.msra.mxu0 %v4790
    %4819 = vmatpush.bf16.msra.mxu0 %v4789
    %4820 = vmatmul.bf16.gmra.mxu0 %v4804
    %v4821 = vpop.f32.mrf.mxu0
    %v4822 = vadd.f32 %v4759, %v4821
    %v4823 = vpop.f32.mrf.mxu0
    %v4824 = vadd.f32 %v4759, %v4823
    %4825 = vmatmul.bf16.gmra.mxu0 %v4807
    %v4826 = vpop.f32.mrf.mxu0
    %v4827 = vadd.f32 %v4759, %v4826
    %v4828 = vpop.f32.mrf.mxu0
    %v4829 = vadd.f32 %v4759, %v4828
    %4830 = vdwg.mxu0
    %v4831 = vmax.f32 %v4822, 0.0
    %v4832 = vmax.f32 %v4824, 0.0
    %v4833 = vmax.f32 %v4827, 0.0
    %v4834 = vmax.f32 %v4829, 0.0
    %v4835 = vrot.slane %v4831, 3
    %v4836 = vrot.slane %v4832, 3
    %v4837 = vrot.slane %v4833, 3
    %v4838 = vrot.slane %v4834, 3
    %v4839 = vlaneseq
    %v4840 = vshrl.u32 %v4839, 7
    %vm4841 = vcmp.lt.s32.totalorder %v4840, 5
    %v4842 = vsel %vm4841, %v4837, %v4838
    %v4843 = vsel %vm4841, %v4836, %v4837
    %v4844 = vsel %vm4841, %v4835, %v4836
    %v4845 = vsel %vm4841, %v4838, %v4835
    %v4846 = vld [vmem:[#allocation16] sm:$0xff]
    %v4847 = vld [vmem:[#allocation16 + $0x8] sm:$0xff]
    %v4848 = vld [vmem:[#allocation16 + $0x10] sm:$0xff]
    %v4849 = vld [vmem:[#allocation16 + $0x18] sm:$0xff]
    %4851 = vset.pattern.permute.xlu0 0
    %4852 = vperm.xlu0 %4851, %v4846
    %v4853 = vpop.permute.xlu0 %4852
    %4856 = vset.pattern.permute.xlu0 0
    %4857 = vperm.xlu0 %4856, %v4847
    %v4858 = vpop.permute.xlu0 %4857
    %4861 = vset.pattern.permute.xlu0 0
    %4862 = vperm.xlu0 %4861, %v4848
    %v4863 = vpop.permute.xlu0 %4862
    %4866 = vset.pattern.permute.xlu0 0
    %4867 = vperm.xlu0 %4866, %v4849
    %v4868 = vpop.permute.xlu0 %4867
    %v4870 = vmul.f32 %v4845, %v4853
    %v4871 = vmul.f32 %v4844, %v4858
    %v4872 = vmul.f32 %v4843, %v4863
    %v4873 = vmul.f32 %v4842, %v4868
    %vm4874 = vcmask 130048
    %4875 = vst.msk [vmem:[#allocation4] sm:$0xff] %vm4874, %v4870
    %4876 = vst.msk [vmem:[#allocation4 + $0x10] sm:$0xff] %vm4874, %v4871
    %4877 = vst.msk [vmem:[#allocation4 + $0x20] sm:$0xff] %vm4874, %v4872
    %4878 = vst.msk [vmem:[#allocation4 + $0x30] sm:$0xff] %vm4874, %v4873
    %v4879 = vrot.slane %v4831, 4
    %v4880 = vrot.slane %v4832, 4
    %v4881 = vrot.slane %v4833, 4
    %v4882 = vrot.slane %v4834, 4
    %vm4883 = vcmp.lt.s32.totalorder %v4840, 4
    %v4884 = vsel %vm4883, %v4881, %v4882
    %v4885 = vsel %vm4883, %v4880, %v4881
    %v4886 = vsel %vm4883, %v4879, %v4880
    %v4887 = vsel %vm4883, %v4882, %v4879
    %s4888 = scalar_lea.vmem [#allocation16], 32
    %v4889 = vld [vmem:[%s4888] sm:$0xff]
    %v4890 = vld [vmem:[%s4888 + $0x8] sm:$0xff]
    %v4891 = vld [vmem:[%s4888 + $0x10] sm:$0xff]
    %v4892 = vld [vmem:[%s4888 + $0x18] sm:$0xff]
    %4894 = vset.pattern.permute.xlu0 0
    %4895 = vperm.xlu0 %4894, %v4889
    %v4896 = vpop.permute.xlu0 %4895
    %4899 = vset.pattern.permute.xlu0 0
    %4900 = vperm.xlu0 %4899, %v4890
    %v4901 = vpop.permute.xlu0 %4900
    %4904 = vset.pattern.permute.xlu0 0
    %4905 = vperm.xlu0 %4904, %v4891
    %v4906 = vpop.permute.xlu0 %4905
    %4909 = vset.pattern.permute.xlu0 0
    %4910 = vperm.xlu0 %4909, %v4892
    %v4911 = vpop.permute.xlu0 %4910
    %v4913 = vmul.f32 %v4887, %v4896
    %v4914 = vmul.f32 %v4886, %v4901
    %v4915 = vmul.f32 %v4885, %v4906
    %v4916 = vmul.f32 %v4884, %v4911
    %4921 = vrot.lane.b32.xlu0 %v4913, 16
    %v4922 = vpop.permute.xlu0 %4921
    %4923 = vrot.lane.b32.xlu0 %v4914, 16
    %v4924 = vpop.permute.xlu0 %4923
    %4925 = vrot.lane.b32.xlu0 %v4915, 16
    %v4926 = vpop.permute.xlu0 %4925
    %4927 = vrot.lane.b32.xlu0 %v4916, 16
    %v4928 = vpop.permute.xlu0 %4927
    %vm4933 = vcmask 261248
    %4934 = vst.msk [vmem:[#allocation4] sm:$0xff] %vm4933, %v4922
    %4935 = vst.msk [vmem:[#allocation4 + $0x10] sm:$0xff] %vm4933, %v4924
    %4936 = vst.msk [vmem:[#allocation4 + $0x20] sm:$0xff] %vm4933, %v4926
    %4937 = vst.msk [vmem:[#allocation4 + $0x30] sm:$0xff] %vm4933, %v4928
    %v4938 = vrot.slane %v4831, 5
    %v4939 = vrot.slane %v4832, 5
    %v4940 = vrot.slane %v4833, 5
    %v4941 = vrot.slane %v4834, 5
    %vm4942 = vcmp.lt.s32.totalorder %v4840, 3
    %v4943 = vsel %vm4942, %v4940, %v4941
    %v4944 = vsel %vm4942, %v4939, %v4940
    %v4945 = vsel %vm4942, %v4938, %v4939
    %v4946 = vsel %vm4942, %v4941, %v4938
    %s4947 = scalar_lea.vmem [#allocation16], 64
    %v4948 = vld [vmem:[%s4947] sm:$0xff]
    %v4949 = vld [vmem:[%s4947 + $0x8] sm:$0xff]
    %v4950 = vld [vmem:[%s4947 + $0x10] sm:$0xff]
    %v4951 = vld [vmem:[%s4947 + $0x18] sm:$0xff]
    %4953 = vset.pattern.permute.xlu0 0
    %4954 = vperm.xlu0 %4953, %v4948
    %v4955 = vpop.permute.xlu0 %4954
    %4958 = vset.pattern.permute.xlu0 0
    %4959 = vperm.xlu0 %4958, %v4949
    %v4960 = vpop.permute.xlu0 %4959
    %4963 = vset.pattern.permute.xlu0 0
    %4964 = vperm.xlu0 %4963, %v4950
    %v4965 = vpop.permute.xlu0 %4964
    %4968 = vset.pattern.permute.xlu0 0
    %4969 = vperm.xlu0 %4968, %v4951
    %v4970 = vpop.permute.xlu0 %4969
    %v4972 = vmul.f32 %v4946, %v4955
    %v4973 = vmul.f32 %v4945, %v4960
    %v4974 = vmul.f32 %v4944, %v4965
    %v4975 = vmul.f32 %v4943, %v4970
    %4980 = vrot.lane.b32.xlu0 %v4972, 32
    %v4981 = vpop.permute.xlu0 %4980
    %4982 = vrot.lane.b32.xlu0 %v4973, 32
    %v4983 = vpop.permute.xlu0 %4982
    %4984 = vrot.lane.b32.xlu0 %v4974, 32
    %v4985 = vpop.permute.xlu0 %4984
    %4986 = vrot.lane.b32.xlu0 %v4975, 32
    %v4987 = vpop.permute.xlu0 %4986
    %vm4992 = vcmask 392448
    %4993 = vst.msk [vmem:[#allocation4] sm:$0xff] %vm4992, %v4981
    %4994 = vst.msk [vmem:[#allocation4 + $0x10] sm:$0xff] %vm4992, %v4983
    %4995 = vst.msk [vmem:[#allocation4 + $0x20] sm:$0xff] %vm4992, %v4985
    %4996 = vst.msk [vmem:[#allocation4 + $0x30] sm:$0xff] %vm4992, %v4987
    %v4997 = vrot.slane %v4831, 7
    %v4998 = vrot.slane %v4832, 7
    %v4999 = vrot.slane %v4833, 7
    %v5000 = vrot.slane %v4834, 7
    %vm5001 = vcmp.lt.s32.totalorder %v4840, 1
    %v5002 = vsel %vm5001, %v4999, %v5000
    %v5003 = vsel %vm5001, %v4998, %v4999
    %v5004 = vsel %vm5001, %v4997, %v4998
    %v5005 = vsel %vm5001, %v5000, %v4997
    %s5006 = scalar_lea.vmem [#allocation16], 96
    %v5007 = vld [vmem:[%s5006] sm:$0xff]
    %v5008 = vld [vmem:[%s5006 + $0x8] sm:$0xff]
    %v5009 = vld [vmem:[%s5006 + $0x10] sm:$0xff]
    %v5010 = vld [vmem:[%s5006 + $0x18] sm:$0xff]
    %5012 = vset.pattern.permute.xlu0 0
    %5013 = vperm.xlu0 %5012, %v5007
    %v5014 = vpop.permute.xlu0 %5013
    %5017 = vset.pattern.permute.xlu0 0
    %5018 = vperm.xlu0 %5017, %v5008
    %v5019 = vpop.permute.xlu0 %5018
    %5022 = vset.pattern.permute.xlu0 0
    %5023 = vperm.xlu0 %5022, %v5009
    %v5024 = vpop.permute.xlu0 %5023
    %5027 = vset.pattern.permute.xlu0 0
    %5028 = vperm.xlu0 %5027, %v5010
    %v5029 = vpop.permute.xlu0 %5028
    %v5031 = vmul.f32 %v5005, %v5014
    %v5032 = vmul.f32 %v5004, %v5019
    %v5033 = vmul.f32 %v5003, %v5024
    %v5034 = vmul.f32 %v5002, %v5029
    %5039 = vrot.lane.b32.xlu0 %v5031, 48
    %v5040 = vpop.permute.xlu0 %5039
    %5041 = vrot.lane.b32.xlu0 %v5032, 48
    %v5042 = vpop.permute.xlu0 %5041
    %5043 = vrot.lane.b32.xlu0 %v5033, 48
    %v5044 = vpop.permute.xlu0 %5043
    %5045 = vrot.lane.b32.xlu0 %v5034, 48
    %v5046 = vpop.permute.xlu0 %5045
    %vm5051 = vcmask 523648
    %5052 = vst.msk [vmem:[#allocation4] sm:$0xff] %vm5051, %v5040
    %5053 = vst.msk [vmem:[#allocation4 + $0x10] sm:$0xff] %vm5051, %v5042
    %5054 = vst.msk [vmem:[#allocation4 + $0x20] sm:$0xff] %vm5051, %v5044
    %5055 = vst.msk [vmem:[#allocation4 + $0x30] sm:$0xff] %vm5051, %v5046
    %s5056 = scalar_lea.vmem [#allocation16], 128
    %v5057 = vld [vmem:[%s5056] sm:$0xff]
    %v5058 = vld [vmem:[%s5056 + $0x8] sm:$0xff]
    %v5059 = vld [vmem:[%s5056 + $0x10] sm:$0xff]
    %v5060 = vld [vmem:[%s5056 + $0x18] sm:$0xff]
    %5062 = vset.pattern.permute.xlu0 0
    %5063 = vperm.xlu0 %5062, %v5057
    %v5064 = vpop.permute.xlu0 %5063
    %5067 = vset.pattern.permute.xlu0 0
    %5068 = vperm.xlu0 %5067, %v5058
    %v5069 = vpop.permute.xlu0 %5068
    %5072 = vset.pattern.permute.xlu0 0
    %5073 = vperm.xlu0 %5072, %v5059
    %v5074 = vpop.permute.xlu0 %5073
    %5077 = vset.pattern.permute.xlu0 0
    %5078 = vperm.xlu0 %5077, %v5060
    %v5079 = vpop.permute.xlu0 %5078
    %v5081 = vmul.f32 %v4831, %v5064
    %v5082 = vmul.f32 %v4832, %v5069
    %v5083 = vmul.f32 %v4833, %v5074
    %v5084 = vmul.f32 %v4834, %v5079
    %5089 = vrot.lane.b32.xlu0 %v5081, 64
    %v5090 = vpop.permute.xlu0 %5089
    %5091 = vrot.lane.b32.xlu0 %v5082, 64
    %v5092 = vpop.permute.xlu0 %5091
    %5093 = vrot.lane.b32.xlu0 %v5083, 64
    %v5094 = vpop.permute.xlu0 %5093
    %5095 = vrot.lane.b32.xlu0 %v5084, 64
    %v5096 = vpop.permute.xlu0 %5095
    %vm5101 = vcmask 654848
    %5102 = vst.msk [vmem:[#allocation4] sm:$0xff] %vm5101, %v5090
    %5103 = vst.msk [vmem:[#allocation4 + $0x10] sm:$0xff] %vm5101, %v5092
    %5104 = vst.msk [vmem:[#allocation4 + $0x20] sm:$0xff] %vm5101, %v5094
    %5105 = vst.msk [vmem:[#allocation4 + $0x30] sm:$0xff] %vm5101, %v5096
    %v5106 = vrot.slane %v4831, 1
    %v5107 = vrot.slane %v4832, 1
    %v5108 = vrot.slane %v4833, 1
    %v5109 = vrot.slane %v4834, 1
    %vm5110 = vcmp.lt.s32.totalorder %v4840, 7
    %v5111 = vsel %vm5110, %v5108, %v5109
    %v5112 = vsel %vm5110, %v5107, %v5108
    %v5113 = vsel %vm5110, %v5106, %v5107
    %v5114 = vsel %vm5110, %v5109, %v5106
    %s5115 = scalar_lea.vmem [#allocation16], 160
    %v5116 = vld [vmem:[%s5115] sm:$0xff]
    %v5117 = vld [vmem:[%s5115 + $0x8] sm:$0xff]
    %v5118 = vld [vmem:[%s5115 + $0x10] sm:$0xff]
    %v5119 = vld [vmem:[%s5115 + $0x18] sm:$0xff]
    %5121 = vset.pattern.permute.xlu0 0
    %5122 = vperm.xlu0 %5121, %v5116
    %v5123 = vpop.permute.xlu0 %5122
    %5126 = vset.pattern.permute.xlu0 0
    %5127 = vperm.xlu0 %5126, %v5117
    %v5128 = vpop.permute.xlu0 %5127
    %5131 = vset.pattern.permute.xlu0 0
    %5132 = vperm.xlu0 %5131, %v5118
    %v5133 = vpop.permute.xlu0 %5132
    %5136 = vset.pattern.permute.xlu0 0
    %5137 = vperm.xlu0 %5136, %v5119
    %v5138 = vpop.permute.xlu0 %5137
    %v5140 = vmul.f32 %v5113, %v5123
    %v5141 = vmul.f32 %v5112, %v5128
    %v5142 = vmul.f32 %v5111, %v5133
    %v5143 = vmul.f32 %v5114, %v5138
    %5148 = vrot.lane.b32.xlu0 %v5140, 80
    %v5149 = vpop.permute.xlu0 %5148
    %5150 = vrot.lane.b32.xlu0 %v5141, 80
    %v5151 = vpop.permute.xlu0 %5150
    %5152 = vrot.lane.b32.xlu0 %v5142, 80
    %v5153 = vpop.permute.xlu0 %5152
    %5154 = vrot.lane.b32.xlu0 %v5143, 80
    %v5155 = vpop.permute.xlu0 %5154
    %vm5160 = vcmask 786048
    %5161 = vst.msk [vmem:[#allocation4] sm:$0xff] %vm5160, %v5149
    %5162 = vst.msk [vmem:[#allocation4 + $0x10] sm:$0xff] %vm5160, %v5151
    %5163 = vst.msk [vmem:[#allocation4 + $0x20] sm:$0xff] %vm5160, %v5153
    %5164 = vst.msk [vmem:[#allocation4 + $0x30] sm:$0xff] %vm5160, %v5155
    %s5165 = scalar_lea.vmem [#allocation16], 192
    %v5166 = vld [vmem:[%s5165] sm:$0xff]
    %v5167 = vld [vmem:[%s5165 + $0x8] sm:$0xff]
    %v5168 = vld [vmem:[%s5165 + $0x10] sm:$0xff]
    %v5169 = vld [vmem:[%s5165 + $0x18] sm:$0xff]
    %5171 = vset.pattern.permute.xlu0 0
    %5172 = vperm.xlu0 %5171, %v5166
    %v5173 = vpop.permute.xlu0 %5172
    %5176 = vset.pattern.permute.xlu0 0
    %5177 = vperm.xlu0 %5176, %v5167
    %v5178 = vpop.permute.xlu0 %5177
    %5181 = vset.pattern.permute.xlu0 0
    %5182 = vperm.xlu0 %5181, %v5168
    %v5183 = vpop.permute.xlu0 %5182
    %5186 = vset.pattern.permute.xlu0 0
    %5187 = vperm.xlu0 %5186, %v5169
    %v5188 = vpop.permute.xlu0 %5187
    %v5190 = vmul.f32 %v4844, %v5173
    %v5191 = vmul.f32 %v4843, %v5178
    %v5192 = vmul.f32 %v4842, %v5183
    %v5193 = vmul.f32 %v4845, %v5188
    %5198 = vrot.lane.b32.xlu0 %v5190, 96
    %v5199 = vpop.permute.xlu0 %5198
    %5200 = vrot.lane.b32.xlu0 %v5191, 96
    %v5201 = vpop.permute.xlu0 %5200
    %5202 = vrot.lane.b32.xlu0 %v5192, 96
    %v5203 = vpop.permute.xlu0 %5202
    %5204 = vrot.lane.b32.xlu0 %v5193, 96
    %v5205 = vpop.permute.xlu0 %5204
    %vm5210 = vcmask 917248
    %5211 = vst.msk [vmem:[#allocation4] sm:$0xff] %vm5210, %v5199
    %5212 = vst.msk [vmem:[#allocation4 + $0x10] sm:$0xff] %vm5210, %v5201
    %5213 = vst.msk [vmem:[#allocation4 + $0x20] sm:$0xff] %vm5210, %v5203
    %5214 = vst.msk [vmem:[#allocation4 + $0x30] sm:$0xff] %vm5210, %v5205
    %s5215 = scalar_lea.vmem [#allocation16], 224
    %v5216 = vld [vmem:[%s5215] sm:$0xff]
    %v5217 = vld [vmem:[%s5215 + $0x8] sm:$0xff]
    %v5218 = vld [vmem:[%s5215 + $0x10] sm:$0xff]
    %v5219 = vld [vmem:[%s5215 + $0x18] sm:$0xff]
    %5221 = vset.pattern.permute.xlu0 0
    %5222 = vperm.xlu0 %5221, %v5216
    %v5223 = vpop.permute.xlu0 %5222
    %5226 = vset.pattern.permute.xlu0 0
    %5227 = vperm.xlu0 %5226, %v5217
    %v5228 = vpop.permute.xlu0 %5227
    %5231 = vset.pattern.permute.xlu0 0
    %5232 = vperm.xlu0 %5231, %v5218
    %v5233 = vpop.permute.xlu0 %5232
    %5236 = vset.pattern.permute.xlu0 0
    %5237 = vperm.xlu0 %5236, %v5219
    %v5238 = vpop.permute.xlu0 %5237
    %v5240 = vmul.f32 %v4886, %v5223
    %v5241 = vmul.f32 %v4885, %v5228
    %v5242 = vmul.f32 %v4884, %v5233
    %v5243 = vmul.f32 %v4887, %v5238
    %5248 = vrot.lane.b32.xlu0 %v5240, 112
    %v5249 = vpop.permute.xlu0 %5248
    %5250 = vrot.lane.b32.xlu0 %v5241, 112
    %v5251 = vpop.permute.xlu0 %5250
    %5252 = vrot.lane.b32.xlu0 %v5242, 112
    %v5253 = vpop.permute.xlu0 %5252
    %5254 = vrot.lane.b32.xlu0 %v5243, 112
    %v5255 = vpop.permute.xlu0 %5254
    %vm5260 = vcmask 1048448
    %5261 = vst.msk [vmem:[#allocation4] sm:$0xff] %vm5260, %v5249
    %5262 = vst.msk [vmem:[#allocation4 + $0x10] sm:$0xff] %vm5260, %v5251
    %5263 = vst.msk [vmem:[#allocation4 + $0x20] sm:$0xff] %vm5260, %v5253
    %5264 = vst.msk [vmem:[#allocation4 + $0x30] sm:$0xff] %vm5260, %v5255
    %s5265 = scalar_lea.vmem [#allocation16], 256
    %v5266 = vld [vmem:[%s5265] sm:$0xff]
    %v5267 = vld [vmem:[%s5265 + $0x8] sm:$0xff]
    %v5268 = vld [vmem:[%s5265 + $0x10] sm:$0xff]
    %v5269 = vld [vmem:[%s5265 + $0x18] sm:$0xff]
    %5271 = vset.pattern.permute.xlu0 0
    %5272 = vperm.xlu0 %5271, %v5266
    %v5273 = vpop.permute.xlu0 %5272
    %5276 = vset.pattern.permute.xlu0 0
    %5277 = vperm.xlu0 %5276, %v5267
    %v5278 = vpop.permute.xlu0 %5277
    %5281 = vset.pattern.permute.xlu0 0
    %5282 = vperm.xlu0 %5281, %v5268
    %v5283 = vpop.permute.xlu0 %5282
    %5286 = vset.pattern.permute.xlu0 0
    %5287 = vperm.xlu0 %5286, %v5269
    %v5288 = vpop.permute.xlu0 %5287
    %v5290 = vmul.f32 %v4945, %v5273
    %v5291 = vmul.f32 %v4944, %v5278
    %v5292 = vmul.f32 %v4943, %v5283
    %v5293 = vmul.f32 %v4946, %v5288
    %5294 = vst.msk [vmem:[#allocation4 + $0x8] sm:$0xff] %vm4874, %v5290
    %5295 = vst.msk [vmem:[#allocation4 + $0x18] sm:$0xff] %vm4874, %v5291
    %5296 = vst.msk [vmem:[#allocation4 + $0x28] sm:$0xff] %vm4874, %v5292
    %5297 = vst.msk [vmem:[#allocation4 + $0x38] sm:$0xff] %vm4874, %v5293
    %v5298 = vld [vmem:[#allocation4] sm:$0xff]
    %v5299 = vld [vmem:[#allocation4 + $0x8] sm:$0xff]
    %v5300 = vld [vmem:[#allocation4 + $0x10] sm:$0xff]
    %v5301 = vld [vmem:[#allocation4 + $0x18] sm:$0xff]
    %v5302 = vld [vmem:[#allocation4 + $0x20] sm:$0xff]
    %v5303 = vld [vmem:[#allocation4 + $0x28] sm:$0xff]
    %v5304 = vld [vmem:[#allocation4 + $0x30] sm:$0xff]
    %v5305 = vld [vmem:[#allocation4 + $0x38] sm:$0xff]
    %v5306 = vpack.c.bf16 %v5300, %v5298
    %v5307 = vpack.c.bf16 %v5301, %v5299
    %v5308 = vpack.c.bf16 %v5304, %v5302
    %v5309 = vpack.c.bf16 %v5305, %v5303
    %v5310 = vld [vmem:[#allocation17] sm:$0xf]
    %v5311 = vld [vmem:[#allocation17 + $0x4] sm:$0xf]
    %v5312 = vld [vmem:[#allocation17 + $0x8] sm:$0xf]
    %v5313 = vld [vmem:[#allocation17 + $0xc] sm:$0xf]
    %v5314 = vld [vmem:[#allocation17 + $0x10] sm:$0xf]
    %v5315 = vld [vmem:[#allocation17 + $0x14] sm:$0xf]
    %v5316 = vld [vmem:[#allocation17 + $0x18] sm:$0xf]
    %v5317 = vld [vmem:[#allocation17 + $0x1c] sm:$0xf]
    %v5318 = vld [vmem:[#allocation17 + $0x20] sm:$0xf]
    %v5319 = vld [vmem:[#allocation17 + $0x24] sm:$0xf]
    %v5320 = vld [vmem:[#allocation17 + $0x28] sm:$0xf]
    %v5321 = vld [vmem:[#allocation17 + $0x2c] sm:$0xf]
    %v5322 = vld [vmem:[#allocation17 + $0x30] sm:$0xf]
    %v5323 = vld [vmem:[#allocation17 + $0x34] sm:$0xf]
    %v5324 = vld [vmem:[#allocation17 + $0x38] sm:$0xf]
    %v5325 = vld [vmem:[#allocation17 + $0x3c] sm:$0xf]
    %v5326 = vld [vmem:[#allocation17 + $0x40] sm:$0xf]
    %v5327 = vld [vmem:[#allocation17 + $0x44] sm:$0xf]
    %v5328 = vld [vmem:[#allocation19] sm:$0x1]
    %v5330 = vperm.slane %v5328, 0
    %v5350 = vunpack.c.l.b16 %v5310
    %v5351 = vunpack.c.l.b16 %v5311
    %v5352 = vunpack.c.l.b16 %v5312
    %v5353 = vunpack.c.l.b16 %v5313
    %v5354 = vunpack.c.l.b16 %v5314
    %v5355 = vunpack.c.l.b16 %v5315
    %v5356 = vunpack.c.l.b16 %v5316
    %v5357 = vunpack.c.l.b16 %v5317
    %v5358 = vunpack.c.l.b16 %v5318
    %v5359 = vunpack.c.l.b16 %v5319
    %v5360 = vunpack.c.l.b16 %v5320
    %v5361 = vunpack.c.l.b16 %v5321
    %v5362 = vunpack.c.l.b16 %v5322
    %v5363 = vunpack.c.l.b16 %v5323
    %v5364 = vunpack.c.l.b16 %v5324
    %v5365 = vunpack.c.l.b16 %v5325
    %v5366 = vunpack.c.l.b16 %v5326
    %v5367 = vunpack.c.l.b16 %v5327
    %v5368 = vpack.c.b16 %v5351, %v5350
    %v5369 = vpack.c.b16 %v5353, %v5352
    %v5370 = vpack.c.b16 %v5355, %v5354
    %v5371 = vpack.c.b16 %v5357, %v5356
    %v5372 = vpack.c.b16 %v5359, %v5358
    %v5373 = vpack.c.b16 %v5361, %v5360
    %v5374 = vpack.c.b16 %v5363, %v5362
    %v5375 = vpack.c.b16 %v5365, %v5364
    %v5376 = vpack.c.b16 %v5367, %v5366
    %v5387 = vsel %vm4874, %v5307, 0
    %v5390 = vsel %vm4874, %v5309, 0
    %5392 = vmatpush.bf16.msra.mxu0 %v5375
    %5393 = vmatpush.bf16.msra.mxu0 %v5374
    %5394 = vmatpush.bf16.msra.mxu0 %v5373
    %5395 = vmatpush.bf16.msra.mxu0 %v5372
    %5396 = vmatpush.bf16.msra.mxu0 %v5371
    %5397 = vmatpush.bf16.msra.mxu0 %v5370
    %5398 = vmatpush.bf16.msra.mxu0 %v5369
    %5399 = vmatpush.bf16.msra.mxu0 %v5368
    %5400 = vmatmul.bf16.gmra.mxu0 %v5306
    %v5401 = vpop.f32.mrf.mxu0
    %v5402 = vadd.f32 %v5330, %v5401
    %v5403 = vpop.f32.mrf.mxu0
    %v5404 = vadd.f32 %v5330, %v5403
    %5405 = vmatmul.bf16.gmra.mxu0 %v5308
    %v5406 = vpop.f32.mrf.mxu0
    %v5407 = vadd.f32 %v5330, %v5406
    %v5408 = vpop.f32.mrf.mxu0
    %v5409 = vadd.f32 %v5330, %v5408
    %5410 = vdwg.mxu0
    %5411 = vmatpush.bf16.msra.mxu0 0
    %5412 = vmatpush.bf16.msra.mxu0 0
    %5413 = vmatpush.bf16.msra.mxu0 0
    %5414 = vmatpush.bf16.msra.mxu0 0
    %5415 = vmatpush.bf16.msra.mxu0 0
    %5416 = vmatpush.bf16.msra.mxu0 0
    %5417 = vmatpush.bf16.msra.mxu0 0
    %5418 = vmatpush.bf16.msra.mxu0 %v5376
    %5419 = vmatmul.bf16.gmra.mxu0 %v5387
    %v5420 = vpop.f32.mrf.mxu0
    %v5421 = vadd.f32 %v5402, %v5420
    %v5422 = vpop.f32.mrf.mxu0
    %v5423 = vadd.f32 %v5404, %v5422
    %5424 = vmatmul.bf16.gmra.mxu0 %v5390
    %v5425 = vpop.f32.mrf.mxu0
    %v5426 = vadd.f32 %v5407, %v5425
    %v5427 = vpop.f32.mrf.mxu0
    %v5428 = vadd.f32 %v5409, %v5427
    %5429 = vdwg.mxu0
    %v5430 = vmax.f32 %v5421, 0.0
    %v5431 = vmax.f32 %v5423, 0.0
    %v5432 = vmax.f32 %v5426, 0.0
    %v5433 = vmax.f32 %v5428, 0.0
    %v5434 = vrot.slane %v5430, 3
    %v5435 = vrot.slane %v5431, 3
    %v5436 = vrot.slane %v5432, 3
    %v5437 = vrot.slane %v5433, 3
    %v5438 = vsel %vm4841, %v5436, %v5437
    %v5439 = vsel %vm4841, %v5435, %v5436
    %v5440 = vsel %vm4841, %v5434, %v5435
    %v5441 = vsel %vm4841, %v5437, %v5434
    %v5442 = vld [vmem:[#allocation20] sm:$0xff]
    %v5443 = vld [vmem:[#allocation20 + $0x8] sm:$0xff]
    %v5444 = vld [vmem:[#allocation20 + $0x10] sm:$0xff]
    %v5445 = vld [vmem:[#allocation20 + $0x18] sm:$0xff]
    %5447 = vset.pattern.permute.xlu0 0
    %5448 = vperm.xlu0 %5447, %v5442
    %v5449 = vpop.permute.xlu0 %5448
    %5452 = vset.pattern.permute.xlu0 0
    %5453 = vperm.xlu0 %5452, %v5443
    %v5454 = vpop.permute.xlu0 %5453
    %5457 = vset.pattern.permute.xlu0 0
    %5458 = vperm.xlu0 %5457, %v5444
    %v5459 = vpop.permute.xlu0 %5458
    %5462 = vset.pattern.permute.xlu0 0
    %5463 = vperm.xlu0 %5462, %v5445
    %v5464 = vpop.permute.xlu0 %5463
    %v5466 = vmul.f32 %v5441, %v5449
    %v5467 = vmul.f32 %v5440, %v5454
    %v5468 = vmul.f32 %v5439, %v5459
    %v5469 = vmul.f32 %v5438, %v5464
    %5470 = vst.msk [vmem:[#allocation5] sm:$0xff] %vm4874, %v5466
    %5471 = vst.msk [vmem:[#allocation5 + $0x10] sm:$0xff] %vm4874, %v5467
    %5472 = vst.msk [vmem:[#allocation5 + $0x20] sm:$0xff] %vm4874, %v5468
    %5473 = vst.msk [vmem:[#allocation5 + $0x30] sm:$0xff] %vm4874, %v5469
    %v5474 = vrot.slane %v5430, 4
    %v5475 = vrot.slane %v5431, 4
    %v5476 = vrot.slane %v5432, 4
    %v5477 = vrot.slane %v5433, 4
    %v5478 = vsel %vm4883, %v5476, %v5477
    %v5479 = vsel %vm4883, %v5475, %v5476
    %v5480 = vsel %vm4883, %v5474, %v5475
    %v5481 = vsel %vm4883, %v5477, %v5474
    %s5482 = scalar_lea.vmem [#allocation20], 32
    %v5483 = vld [vmem:[%s5482] sm:$0xff]
    %v5484 = vld [vmem:[%s5482 + $0x8] sm:$0xff]
    %v5485 = vld [vmem:[%s5482 + $0x10] sm:$0xff]
    %v5486 = vld [vmem:[%s5482 + $0x18] sm:$0xff]
    %5488 = vset.pattern.permute.xlu0 0
    %5489 = vperm.xlu0 %5488, %v5483
    %v5490 = vpop.permute.xlu0 %5489
    %5493 = vset.pattern.permute.xlu0 0
    %5494 = vperm.xlu0 %5493, %v5484
    %v5495 = vpop.permute.xlu0 %5494
    %5498 = vset.pattern.permute.xlu0 0
    %5499 = vperm.xlu0 %5498, %v5485
    %v5500 = vpop.permute.xlu0 %5499
    %5503 = vset.pattern.permute.xlu0 0
    %5504 = vperm.xlu0 %5503, %v5486
    %v5505 = vpop.permute.xlu0 %5504
    %v5507 = vmul.f32 %v5481, %v5490
    %v5508 = vmul.f32 %v5480, %v5495
    %v5509 = vmul.f32 %v5479, %v5500
    %v5510 = vmul.f32 %v5478, %v5505
    %5515 = vrot.lane.b32.xlu0 %v5507, 16
    %v5516 = vpop.permute.xlu0 %5515
    %5517 = vrot.lane.b32.xlu0 %v5508, 16
    %v5518 = vpop.permute.xlu0 %5517
    %5519 = vrot.lane.b32.xlu0 %v5509, 16
    %v5520 = vpop.permute.xlu0 %5519
    %5521 = vrot.lane.b32.xlu0 %v5510, 16
    %v5522 = vpop.permute.xlu0 %5521
    %5527 = vst.msk [vmem:[#allocation5] sm:$0xff] %vm4933, %v5516
    %5528 = vst.msk [vmem:[#allocation5 + $0x10] sm:$0xff] %vm4933, %v5518
    %5529 = vst.msk [vmem:[#allocation5 + $0x20] sm:$0xff] %vm4933, %v5520
    %5530 = vst.msk [vmem:[#allocation5 + $0x30] sm:$0xff] %vm4933, %v5522
    %v5531 = vrot.slane %v5430, 5
    %v5532 = vrot.slane %v5431, 5
    %v5533 = vrot.slane %v5432, 5
    %v5534 = vrot.slane %v5433, 5
    %v5535 = vsel %vm4942, %v5533, %v5534
    %v5536 = vsel %vm4942, %v5532, %v5533
    %v5537 = vsel %vm4942, %v5531, %v5532
    %v5538 = vsel %vm4942, %v5534, %v5531
    %s5539 = scalar_lea.vmem [#allocation20], 64
    %v5540 = vld [vmem:[%s5539] sm:$0xff]
    %v5541 = vld [vmem:[%s5539 + $0x8] sm:$0xff]
    %v5542 = vld [vmem:[%s5539 + $0x10] sm:$0xff]
    %v5543 = vld [vmem:[%s5539 + $0x18] sm:$0xff]
    %5545 = vset.pattern.permute.xlu0 0
    %5546 = vperm.xlu0 %5545, %v5540
    %v5547 = vpop.permute.xlu0 %5546
    %5550 = vset.pattern.permute.xlu0 0
    %5551 = vperm.xlu0 %5550, %v5541
    %v5552 = vpop.permute.xlu0 %5551
    %5555 = vset.pattern.permute.xlu0 0
    %5556 = vperm.xlu0 %5555, %v5542
    %v5557 = vpop.permute.xlu0 %5556
    %5560 = vset.pattern.permute.xlu0 0
    %5561 = vperm.xlu0 %5560, %v5543
    %v5562 = vpop.permute.xlu0 %5561
    %v5564 = vmul.f32 %v5538, %v5547
    %v5565 = vmul.f32 %v5537, %v5552
    %v5566 = vmul.f32 %v5536, %v5557
    %v5567 = vmul.f32 %v5535, %v5562
    %5572 = vrot.lane.b32.xlu0 %v5564, 32
    %v5573 = vpop.permute.xlu0 %5572
    %5574 = vrot.lane.b32.xlu0 %v5565, 32
    %v5575 = vpop.permute.xlu0 %5574
    %5576 = vrot.lane.b32.xlu0 %v5566, 32
    %v5577 = vpop.permute.xlu0 %5576
    %5578 = vrot.lane.b32.xlu0 %v5567, 32
    %v5579 = vpop.permute.xlu0 %5578
    %5584 = vst.msk [vmem:[#allocation5] sm:$0xff] %vm4992, %v5573
    %5585 = vst.msk [vmem:[#allocation5 + $0x10] sm:$0xff] %vm4992, %v5575
    %5586 = vst.msk [vmem:[#allocation5 + $0x20] sm:$0xff] %vm4992, %v5577
    %5587 = vst.msk [vmem:[#allocation5 + $0x30] sm:$0xff] %vm4992, %v5579
    %v5588 = vrot.slane %v5430, 7
    %v5589 = vrot.slane %v5431, 7
    %v5590 = vrot.slane %v5432, 7
    %v5591 = vrot.slane %v5433, 7
    %v5592 = vsel %vm5001, %v5590, %v5591
    %v5593 = vsel %vm5001, %v5589, %v5590
    %v5594 = vsel %vm5001, %v5588, %v5589
    %v5595 = vsel %vm5001, %v5591, %v5588
    %s5596 = scalar_lea.vmem [#allocation20], 96
    %v5597 = vld [vmem:[%s5596] sm:$0xff]
    %v5598 = vld [vmem:[%s5596 + $0x8] sm:$0xff]
    %v5599 = vld [vmem:[%s5596 + $0x10] sm:$0xff]
    %v5600 = vld [vmem:[%s5596 + $0x18] sm:$0xff]
    %5602 = vset.pattern.permute.xlu0 0
    %5603 = vperm.xlu0 %5602, %v5597
    %v5604 = vpop.permute.xlu0 %5603
    %5607 = vset.pattern.permute.xlu0 0
    %5608 = vperm.xlu0 %5607, %v5598
    %v5609 = vpop.permute.xlu0 %5608
    %5612 = vset.pattern.permute.xlu0 0
    %5613 = vperm.xlu0 %5612, %v5599
    %v5614 = vpop.permute.xlu0 %5613
    %5617 = vset.pattern.permute.xlu0 0
    %5618 = vperm.xlu0 %5617, %v5600
    %v5619 = vpop.permute.xlu0 %5618
    %v5621 = vmul.f32 %v5595, %v5604
    %v5622 = vmul.f32 %v5594, %v5609
    %v5623 = vmul.f32 %v5593, %v5614
    %v5624 = vmul.f32 %v5592, %v5619
    %5629 = vrot.lane.b32.xlu0 %v5621, 48
    %v5630 = vpop.permute.xlu0 %5629
    %5631 = vrot.lane.b32.xlu0 %v5622, 48
    %v5632 = vpop.permute.xlu0 %5631
    %5633 = vrot.lane.b32.xlu0 %v5623, 48
    %v5634 = vpop.permute.xlu0 %5633
    %5635 = vrot.lane.b32.xlu0 %v5624, 48
    %v5636 = vpop.permute.xlu0 %5635
    %5641 = vst.msk [vmem:[#allocation5] sm:$0xff] %vm5051, %v5630
    %5642 = vst.msk [vmem:[#allocation5 + $0x10] sm:$0xff] %vm5051, %v5632
    %5643 = vst.msk [vmem:[#allocation5 + $0x20] sm:$0xff] %vm5051, %v5634
    %5644 = vst.msk [vmem:[#allocation5 + $0x30] sm:$0xff] %vm5051, %v5636
    %s5645 = scalar_lea.vmem [#allocation20], 128
    %v5646 = vld [vmem:[%s5645] sm:$0xff]
    %v5647 = vld [vmem:[%s5645 + $0x8] sm:$0xff]
    %v5648 = vld [vmem:[%s5645 + $0x10] sm:$0xff]
    %v5649 = vld [vmem:[%s5645 + $0x18] sm:$0xff]
    %5651 = vset.pattern.permute.xlu0 0
    %5652 = vperm.xlu0 %5651, %v5646
    %v5653 = vpop.permute.xlu0 %5652
    %5656 = vset.pattern.permute.xlu0 0
    %5657 = vperm.xlu0 %5656, %v5647
    %v5658 = vpop.permute.xlu0 %5657
    %5661 = vset.pattern.permute.xlu0 0
    %5662 = vperm.xlu0 %5661, %v5648
    %v5663 = vpop.permute.xlu0 %5662
    %5666 = vset.pattern.permute.xlu0 0
    %5667 = vperm.xlu0 %5666, %v5649
    %v5668 = vpop.permute.xlu0 %5667
    %v5670 = vmul.f32 %v5430, %v5653
    %v5671 = vmul.f32 %v5431, %v5658
    %v5672 = vmul.f32 %v5432, %v5663
    %v5673 = vmul.f32 %v5433, %v5668
    %5678 = vrot.lane.b32.xlu0 %v5670, 64
    %v5679 = vpop.permute.xlu0 %5678
    %5680 = vrot.lane.b32.xlu0 %v5671, 64
    %v5681 = vpop.permute.xlu0 %5680
    %5682 = vrot.lane.b32.xlu0 %v5672, 64
    %v5683 = vpop.permute.xlu0 %5682
    %5684 = vrot.lane.b32.xlu0 %v5673, 64
    %v5685 = vpop.permute.xlu0 %5684
    %5690 = vst.msk [vmem:[#allocation5] sm:$0xff] %vm5101, %v5679
    %5691 = vst.msk [vmem:[#allocation5 + $0x10] sm:$0xff] %vm5101, %v5681
    %5692 = vst.msk [vmem:[#allocation5 + $0x20] sm:$0xff] %vm5101, %v5683
    %5693 = vst.msk [vmem:[#allocation5 + $0x30] sm:$0xff] %vm5101, %v5685
    %v5694 = vrot.slane %v5430, 1
    %v5695 = vrot.slane %v5431, 1
    %v5696 = vrot.slane %v5432, 1
    %v5697 = vrot.slane %v5433, 1
    %v5698 = vsel %vm5110, %v5696, %v5697
    %v5699 = vsel %vm5110, %v5695, %v5696
    %v5700 = vsel %vm5110, %v5694, %v5695
    %v5701 = vsel %vm5110, %v5697, %v5694
    %s5702 = scalar_lea.vmem [#allocation20], 160
    %v5703 = vld [vmem:[%s5702] sm:$0xff]
    %v5704 = vld [vmem:[%s5702 + $0x8] sm:$0xff]
    %v5705 = vld [vmem:[%s5702 + $0x10] sm:$0xff]
    %v5706 = vld [vmem:[%s5702 + $0x18] sm:$0xff]
    %5708 = vset.pattern.permute.xlu0 0
    %5709 = vperm.xlu0 %5708, %v5703
    %v5710 = vpop.permute.xlu0 %5709
    %5713 = vset.pattern.permute.xlu0 0
    %5714 = vperm.xlu0 %5713, %v5704
    %v5715 = vpop.permute.xlu0 %5714
    %5718 = vset.pattern.permute.xlu0 0
    %5719 = vperm.xlu0 %5718, %v5705
    %v5720 = vpop.permute.xlu0 %5719
    %5723 = vset.pattern.permute.xlu0 0
    %5724 = vperm.xlu0 %5723, %v5706
    %v5725 = vpop.permute.xlu0 %5724
    %v5727 = vmul.f32 %v5700, %v5710
    %v5728 = vmul.f32 %v5699, %v5715
    %v5729 = vmul.f32 %v5698, %v5720
    %v5730 = vmul.f32 %v5701, %v5725
    %5735 = vrot.lane.b32.xlu0 %v5727, 80
    %v5736 = vpop.permute.xlu0 %5735
    %5737 = vrot.lane.b32.xlu0 %v5728, 80
    %v5738 = vpop.permute.xlu0 %5737
    %5739 = vrot.lane.b32.xlu0 %v5729, 80
    %v5740 = vpop.permute.xlu0 %5739
    %5741 = vrot.lane.b32.xlu0 %v5730, 80
    %v5742 = vpop.permute.xlu0 %5741
    %5747 = vst.msk [vmem:[#allocation5] sm:$0xff] %vm5160, %v5736
    %5748 = vst.msk [vmem:[#allocation5 + $0x10] sm:$0xff] %vm5160, %v5738
    %5749 = vst.msk [vmem:[#allocation5 + $0x20] sm:$0xff] %vm5160, %v5740
    %5750 = vst.msk [vmem:[#allocation5 + $0x30] sm:$0xff] %vm5160, %v5742
    %s5751 = scalar_lea.vmem [#allocation20], 192
    %v5752 = vld [vmem:[%s5751] sm:$0xff]
    %v5753 = vld [vmem:[%s5751 + $0x8] sm:$0xff]
    %v5754 = vld [vmem:[%s5751 + $0x10] sm:$0xff]
    %v5755 = vld [vmem:[%s5751 + $0x18] sm:$0xff]
    %5757 = vset.pattern.permute.xlu0 0
    %5758 = vperm.xlu0 %5757, %v5752
    %v5759 = vpop.permute.xlu0 %5758
    %5762 = vset.pattern.permute.xlu0 0
    %5763 = vperm.xlu0 %5762, %v5753
    %v5764 = vpop.permute.xlu0 %5763
    %5767 = vset.pattern.permute.xlu0 0
    %5768 = vperm.xlu0 %5767, %v5754
    %v5769 = vpop.permute.xlu0 %5768
    %5772 = vset.pattern.permute.xlu0 0
    %5773 = vperm.xlu0 %5772, %v5755
    %v5774 = vpop.permute.xlu0 %5773
    %v5776 = vmul.f32 %v5440, %v5759
    %v5777 = vmul.f32 %v5439, %v5764
    %v5778 = vmul.f32 %v5438, %v5769
    %v5779 = vmul.f32 %v5441, %v5774
    %5784 = vrot.lane.b32.xlu0 %v5776, 96
    %v5785 = vpop.permute.xlu0 %5784
    %5786 = vrot.lane.b32.xlu0 %v5777, 96
    %v5787 = vpop.permute.xlu0 %5786
    %5788 = vrot.lane.b32.xlu0 %v5778, 96
    %v5789 = vpop.permute.xlu0 %5788
    %5790 = vrot.lane.b32.xlu0 %v5779, 96
    %v5791 = vpop.permute.xlu0 %5790
    %5796 = vst.msk [vmem:[#allocation5] sm:$0xff] %vm5210, %v5785
    %5797 = vst.msk [vmem:[#allocation5 + $0x10] sm:$0xff] %vm5210, %v5787
    %5798 = vst.msk [vmem:[#allocation5 + $0x20] sm:$0xff] %vm5210, %v5789
    %5799 = vst.msk [vmem:[#allocation5 + $0x30] sm:$0xff] %vm5210, %v5791
    %s5800 = scalar_lea.vmem [#allocation20], 224
    %v5801 = vld [vmem:[%s5800] sm:$0xff]
    %v5802 = vld [vmem:[%s5800 + $0x8] sm:$0xff]
    %v5803 = vld [vmem:[%s5800 + $0x10] sm:$0xff]
    %v5804 = vld [vmem:[%s5800 + $0x18] sm:$0xff]
    %5806 = vset.pattern.permute.xlu0 0
    %5807 = vperm.xlu0 %5806, %v5801
    %v5808 = vpop.permute.xlu0 %5807
    %5811 = vset.pattern.permute.xlu0 0
    %5812 = vperm.xlu0 %5811, %v5802
    %v5813 = vpop.permute.xlu0 %5812
    %5816 = vset.pattern.permute.xlu0 0
    %5817 = vperm.xlu0 %5816, %v5803
    %v5818 = vpop.permute.xlu0 %5817
    %5821 = vset.pattern.permute.xlu0 0
    %5822 = vperm.xlu0 %5821, %v5804
    %v5823 = vpop.permute.xlu0 %5822
    %v5825 = vmul.f32 %v5480, %v5808
    %v5826 = vmul.f32 %v5479, %v5813
    %v5827 = vmul.f32 %v5478, %v5818
    %v5828 = vmul.f32 %v5481, %v5823
    %5833 = vrot.lane.b32.xlu0 %v5825, 112
    %v5834 = vpop.permute.xlu0 %5833
    %5835 = vrot.lane.b32.xlu0 %v5826, 112
    %v5836 = vpop.permute.xlu0 %5835
    %5837 = vrot.lane.b32.xlu0 %v5827, 112
    %v5838 = vpop.permute.xlu0 %5837
    %5839 = vrot.lane.b32.xlu0 %v5828, 112
    %v5840 = vpop.permute.xlu0 %5839
    %5845 = vst.msk [vmem:[#allocation5] sm:$0xff] %vm5260, %v5834
    %5846 = vst.msk [vmem:[#allocation5 + $0x10] sm:$0xff] %vm5260, %v5836
    %5847 = vst.msk [vmem:[#allocation5 + $0x20] sm:$0xff] %vm5260, %v5838
    %5848 = vst.msk [vmem:[#allocation5 + $0x30] sm:$0xff] %vm5260, %v5840
    %s5849 = scalar_lea.vmem [#allocation20], 256
    %v5850 = vld [vmem:[%s5849] sm:$0xff]
    %v5851 = vld [vmem:[%s5849 + $0x8] sm:$0xff]
    %v5852 = vld [vmem:[%s5849 + $0x10] sm:$0xff]
    %v5853 = vld [vmem:[%s5849 + $0x18] sm:$0xff]
    %5855 = vset.pattern.permute.xlu0 0
    %5856 = vperm.xlu0 %5855, %v5850
    %v5857 = vpop.permute.xlu0 %5856
    %5860 = vset.pattern.permute.xlu0 0
    %5861 = vperm.xlu0 %5860, %v5851
    %v5862 = vpop.permute.xlu0 %5861
    %5865 = vset.pattern.permute.xlu0 0
    %5866 = vperm.xlu0 %5865, %v5852
    %v5867 = vpop.permute.xlu0 %5866
    %5870 = vset.pattern.permute.xlu0 0
    %5871 = vperm.xlu0 %5870, %v5853
    %v5872 = vpop.permute.xlu0 %5871
    %v5874 = vmul.f32 %v5537, %v5857
    %v5875 = vmul.f32 %v5536, %v5862
    %v5876 = vmul.f32 %v5535, %v5867
    %v5877 = vmul.f32 %v5538, %v5872
    %5878 = vst.msk [vmem:[#allocation5 + $0x8] sm:$0xff] %vm4874, %v5874
    %5879 = vst.msk [vmem:[#allocation5 + $0x18] sm:$0xff] %vm4874, %v5875
    %5880 = vst.msk [vmem:[#allocation5 + $0x28] sm:$0xff] %vm4874, %v5876
    %5881 = vst.msk [vmem:[#allocation5 + $0x38] sm:$0xff] %vm4874, %v5877
    %v5882 = vld [vmem:[#allocation5] sm:$0xff]
    %v5883 = vld [vmem:[#allocation5 + $0x8] sm:$0xff]
    %v5884 = vld [vmem:[#allocation5 + $0x10] sm:$0xff]
    %v5885 = vld [vmem:[#allocation5 + $0x18] sm:$0xff]
    %v5886 = vld [vmem:[#allocation5 + $0x20] sm:$0xff]
    %v5887 = vld [vmem:[#allocation5 + $0x28] sm:$0xff]
    %v5888 = vld [vmem:[#allocation5 + $0x30] sm:$0xff]
    %v5889 = vld [vmem:[#allocation5 + $0x38] sm:$0xff]
    %v5890 = vpack.c.bf16 %v5884, %v5882
    %v5891 = vpack.c.bf16 %v5885, %v5883
    %v5892 = vpack.c.bf16 %v5888, %v5886
    %v5893 = vpack.c.bf16 %v5889, %v5887
    %v5894 = vld [vmem:[#allocation22] sm:$0xf]
    %v5895 = vld [vmem:[#allocation22 + $0x4] sm:$0xf]
    %v5896 = vld [vmem:[#allocation22 + $0x8] sm:$0xf]
    %v5897 = vld [vmem:[#allocation22 + $0xc] sm:$0xf]
    %v5898 = vld [vmem:[#allocation22 + $0x10] sm:$0xf]
    %v5899 = vld [vmem:[#allocation22 + $0x14] sm:$0xf]
    %v5900 = vld [vmem:[#allocation22 + $0x18] sm:$0xf]
    %v5901 = vld [vmem:[#allocation22 + $0x1c] sm:$0xf]
    %v5902 = vld [vmem:[#allocation22 + $0x20] sm:$0xf]
    %v5903 = vld [vmem:[#allocation22 + $0x24] sm:$0xf]
    %v5904 = vld [vmem:[#allocation22 + $0x28] sm:$0xf]
    %v5905 = vld [vmem:[#allocation22 + $0x2c] sm:$0xf]
    %v5906 = vld [vmem:[#allocation22 + $0x30] sm:$0xf]
    %v5907 = vld [vmem:[#allocation22 + $0x34] sm:$0xf]
    %v5908 = vld [vmem:[#allocation22 + $0x38] sm:$0xf]
    %v5909 = vld [vmem:[#allocation22 + $0x3c] sm:$0xf]
    %v5910 = vld [vmem:[#allocation22 + $0x40] sm:$0xf]
    %v5911 = vld [vmem:[#allocation22 + $0x44] sm:$0xf]
    %v5912 = vld [vmem:[#allocation23] sm:$0x1]
    %v5914 = vperm.slane %v5912, 0
    %v5934 = vunpack.c.l.b16 %v5894
    %v5935 = vunpack.c.l.b16 %v5895
    %v5936 = vunpack.c.l.b16 %v5896
    %v5937 = vunpack.c.l.b16 %v5897
    %v5938 = vunpack.c.l.b16 %v5898
    %v5939 = vunpack.c.l.b16 %v5899
    %v5940 = vunpack.c.l.b16 %v5900
    %v5941 = vunpack.c.l.b16 %v5901
    %v5942 = vunpack.c.l.b16 %v5902
    %v5943 = vunpack.c.l.b16 %v5903
    %v5944 = vunpack.c.l.b16 %v5904
    %v5945 = vunpack.c.l.b16 %v5905
    %v5946 = vunpack.c.l.b16 %v5906
    %v5947 = vunpack.c.l.b16 %v5907
    %v5948 = vunpack.c.l.b16 %v5908
    %v5949 = vunpack.c.l.b16 %v5909
    %v5950 = vunpack.c.l.b16 %v5910
    %v5951 = vunpack.c.l.b16 %v5911
    %v5952 = vpack.c.b16 %v5935, %v5934
    %v5953 = vpack.c.b16 %v5937, %v5936
    %v5954 = vpack.c.b16 %v5939, %v5938
    %v5955 = vpack.c.b16 %v5941, %v5940
    %v5956 = vpack.c.b16 %v5943, %v5942
    %v5957 = vpack.c.b16 %v5945, %v5944
    %v5958 = vpack.c.b16 %v5947, %v5946
    %v5959 = vpack.c.b16 %v5949, %v5948
    %v5960 = vpack.c.b16 %v5951, %v5950
    %v5971 = vsel %vm4874, %v5891, 0
    %v5974 = vsel %vm4874, %v5893, 0
    %5976 = vmatpush.bf16.msra.mxu0 %v5959
    %5977 = vmatpush.bf16.msra.mxu0 %v5958
    %5978 = vmatpush.bf16.msra.mxu0 %v5957
    %5979 = vmatpush.bf16.msra.mxu0 %v5956
    %5980 = vmatpush.bf16.msra.mxu0 %v5955
    %5981 = vmatpush.bf16.msra.mxu0 %v5954
    %5982 = vmatpush.bf16.msra.mxu0 %v5953
    %5983 = vmatpush.bf16.msra.mxu0 %v5952
    %5984 = vmatmul.bf16.gmra.mxu0 %v5890
    %v5985 = vpop.f32.mrf.mxu0
    %v5986 = vadd.f32 %v5914, %v5985
    %v5987 = vpop.f32.mrf.mxu0
    %v5988 = vadd.f32 %v5914, %v5987
    %5989 = vmatmul.bf16.gmra.mxu0 %v5892
    %v5990 = vpop.f32.mrf.mxu0
    %v5991 = vadd.f32 %v5914, %v5990
    %v5992 = vpop.f32.mrf.mxu0
    %v5993 = vadd.f32 %v5914, %v5992
    %5994 = vdwg.mxu0
    %5995 = vmatpush.bf16.msra.mxu0 0
    %5996 = vmatpush.bf16.msra.mxu0 0
    %5997 = vmatpush.bf16.msra.mxu0 0
    %5998 = vmatpush.bf16.msra.mxu0 0
    %5999 = vmatpush.bf16.msra.mxu0 0
    %6000 = vmatpush.bf16.msra.mxu0 0
    %6001 = vmatpush.bf16.msra.mxu0 0
    %6002 = vmatpush.bf16.msra.mxu0 %v5960
    %6003 = vmatmul.bf16.gmra.mxu0 %v5971
    %v6004 = vpop.f32.mrf.mxu0
    %v6005 = vadd.f32 %v5986, %v6004
    %v6006 = vpop.f32.mrf.mxu0
    %v6007 = vadd.f32 %v5988, %v6006
    %6008 = vmatmul.bf16.gmra.mxu0 %v5974
    %v6009 = vpop.f32.mrf.mxu0
    %v6010 = vadd.f32 %v5991, %v6009
    %v6011 = vpop.f32.mrf.mxu0
    %v6012 = vadd.f32 %v5993, %v6011
    %6013 = vdwg.mxu0
    %v6014 = vmax.f32 %v6005, 0.0
    %v6015 = vmax.f32 %v6007, 0.0
    %v6016 = vmax.f32 %v6010, 0.0
    %v6017 = vmax.f32 %v6012, 0.0
    %v6018 = vmin.f32 %v6014, 1.0
    %v6019 = vmin.f32 %v6015, 1.0
    %v6020 = vmin.f32 %v6016, 1.0
    %v6021 = vmin.f32 %v6017, 1.0
    %6022 = vst.msk [vmem:[%s13] sm:$0xff] %vm3524, %v6018
    %6023 = vst.msk [vmem:[%s13 + $0x8] sm:$0xff] %vm3524, %v6019
    %6024 = vst.msk [vmem:[%s13 + $0x10] sm:$0xff] %vm3524, %v6020
    %6025 = vst.msk [vmem:[%s13 + $0x18] sm:$0xff] %vm3524, %v6021
    // Predicated region
    $region102: #{_lambda_.1} parent=1 // pred_check
      _
    $region103: #{_lambda_.1} parent=1 // pred_check_branch
      %6027 = sbr.rel (0) target = $region105
    $region104: #{_lambda_.1} parent=1 // pred_region
      _
    $region105: #{_lambda_.1} parent=1 // pred_fallthru
      _
    // Predicated region
    $region106: #{_lambda_.1} parent=1 // pred_check
      _
    $region107: #{_lambda_.1} parent=1 // pred_check_branch
      %6029 = sbr.rel (0) target = $region109
    $region108: #{_lambda_.1} parent=1 // pred_region
      _
    $region109: #{_lambda_.1} parent=1 // pred_fallthru
      _
    %6030 = vsyncpa [#allocation7], 1
    %6031 = vsyncpa [#allocation9], 1
    %6032 = vsyncpa [#allocation12], 1
    %6033 = vsyncpa [#allocation15], 1
    %6034 = vsyncpa [#allocation18], 1
    %6035 = vsyncpa [#allocation21], 1
    %6036 = vsyncpa [#allocation24], 1

</llo_original>
